<compile_context>
chip_gen: v7x
topology: tpu7x:2x2x1
jax: 0.10.0
libtpu: 0.0.40
codegen_flags: <defaults>
</compile_context>

<pallas_src>
import functools

import jax
import jax.numpy as jnp
from jax.experimental import pallas as pl
from jax.experimental.pallas import tpu as pltpu


_VMEM = pl.BlockSpec(memory_space=pltpu.MemorySpace.VMEM)


# ----------------------------------------------------------------------------
# Fused forward kernel: Kipfblock1 + skip1  ->  Kipfblock2 + skip2  ->  conv_mix
# ----------------------------------------------------------------------------
def kipfnet_fused_kernel(L_ref, x_ref, w1_ref, b1_ref, w2_ref, b2_ref,
                         wm_ref, bm_ref, o_ref, *, K, K_mix, nh1, nh2):
    L = L_ref[...]            # (N, N) bf16 — loaded once, reused by every recurrence
    x = x_ref[...]            # (N, F_in) f32

    def cheb_stack(x_in, k_order):
        """[T_0 | T_1 | ... | T_{k-1}] stacked along lanes, returned as bf16.

        The three-term recurrence (2*L@T - T_prev) is kept in f32; only the dot
        operands are cast to bf16 (f32 accumulation on the MXU).
        """
        ts = [x_in]
        if k_order > 1:
            t1 = jnp.dot(L, x_in.astype(jnp.bfloat16),
                         preferred_element_type=jnp.float32)
            ts.append(t1)
            tm2, tm1 = x_in, t1
            for _ in range(2, k_order):
                tk = 2.0 * jnp.dot(L, tm1.astype(jnp.bfloat16),
                                   preferred_element_type=jnp.float32) - tm2
                ts.append(tk)
                tm2, tm1 = tm1, tk
        return jnp.concatenate(ts, axis=1).astype(jnp.bfloat16)

    def block(x_in, w_ref, b_ref, nh):
        # w_ref: (K*F_in, 2*nh) bf16 — main ChebConv weights stacked over k in the
        # first nh output columns, K=1 skip-projection weights (zero-padded for
        # k>=1) in the last nh columns.  One wide MXU matmul does both.
        tcat = cheb_stack(x_in, K)                              # (N, K*F_in) bf16
        out = jnp.dot(tcat, w_ref[...],
                      preferred_element_type=jnp.float32) + b_ref[...]
        # TODO(synk): Kipfblock's F.dropout(p=0.5) is training-mode only; eval-mode
        #             (identity) is implemented here.
        return jnp.maximum(out[:, :nh], 0.0) + out[:, nh:]      # relu(main) + skip

    h1 = block(x, w1_ref, b1_ref, nh1)                          # (N, nh1)
    h2 = block(h1, w2_ref, b2_ref, nh2)                         # (N, nh2)

    # inout_skipconn: conv_mix(cat(h2, x)) — single recurrence on the wide operand.
    xm = jnp.concatenate([h2, x], axis=1)                       # (N, nh2 + F_in) f32
    tcat_m = cheb_stack(xm, K_mix)                              # (N, K_mix*(nh2+F_in))
    o_ref[...] = jnp.dot(tcat_m, wm_ref[...],
                         preferred_element_type=jnp.float32) + bm_ref[...]


# ----------------------------------------------------------------------------
# Host-side weight preprocessing
# ----------------------------------------------------------------------------
def fold_block_weights(w, b, ws, bs):
    """Stack ChebConv weights over k and fold the K=1 skip projection alongside.

    w : (K, F_in, nh), b : (nh,)   -- main ChebConv
    ws: (1, F_in, nh), bs: (nh,)   -- skip_project (K=1)
    returns w_big (K*F_in, 2*nh) bf16, b_big (1, 2*nh) f32
    """
    K, f_in, nh = w.shape
    w_main = w.reshape(K * f_in, nh)
    w_skip = jnp.zeros((K * f_in, nh), w.dtype).at[:f_in].set(ws[0])
    w_big = jnp.concatenate([w_main, w_skip], axis=1).astype(jnp.bfloat16)
    b_big = jnp.concatenate([b, bs]).reshape(1, 2 * nh).astype(jnp.float32)
    return w_big, b_big


def build_lhat(edge_index, num_nodes):
    """Dense scaled Laplacian matching PyG ChebConv (sym norm, lambda_max=2)."""
    src, dst = edge_index
    adj = jnp.zeros((num_nodes, num_nodes), jnp.float32).at[src, dst].add(1.0)
    deg = adj.sum(axis=1)
    dinv = jnp.where(deg > 0, 1.0 / jnp.sqrt(deg), 0.0)
    sym = dinv[:, None] * adj * dinv[None, :]        # S[src, dst]
    # message from src aggregated at dst  =>  L_hat[dst, src] = -S[src, dst]
    return -sym.T                                     # zero diagonal (lambda_max=2)


def init_cheb_params(key, K, f_in, f_out):
    kw, _ = jax.random.split(key)
    scale = jnp.sqrt(2.0 / (f_in + f_out)).astype(jnp.float32)
    w = jax.random.normal(kw, (K, f_in, f_out), jnp.float32) * scale
    b = jnp.zeros((f_out,), jnp.float32)   # PyG ChebConv initializes bias to zeros
    return w, b


class KipfNetResd2Params:
    def __init__(self, key, num_features, num_classes, nh1=64, nh2=32, K=8, K_mix=2):
        ks = jax.random.split(key, 5)
        self.w1, self.b1 = init_cheb_params(ks[0], K, num_features, nh1)       # Kipfblock1
        self.ws1, self.bs1 = init_cheb_params(ks[1], 1, num_features, nh1)     # skip_project1
        self.w2, self.b2 = init_cheb_params(ks[2], K, nh1, nh2)                # Kipfblock2
        self.ws2, self.bs2 = init_cheb_params(ks[3], 1, nh1, nh2)              # skip_project2
        self.wm, self.bm = init_cheb_params(ks[4], K_mix, nh2 + num_features, num_classes)


# ----------------------------------------------------------------------------
# Full forward pass (single fused pallas_call)
# ----------------------------------------------------------------------------
def kipfnet_resd2_forward(params, x, edge_index):
    n = x.shape[0]
    f_in = x.shape[1]
    K = params.w1.shape[0]
    K_mix = params.wm.shape[0]
    nh1 = params.w1.shape[2]
    nh2 = params.w2.shape[2]
    n_classes = params.wm.shape[2]

    # L stored bf16 (half the VMEM/DMA footprint); recurrence still accumulates in f32.
    L = build_lhat(edge_index, n).astype(jnp.bfloat16)

    w1_big, b1_big = fold_block_weights(params.w1, params.b1, params.ws1, params.bs1)
    w2_big, b2_big = fold_block_weights(params.w2, params.b2, params.ws2, params.bs2)
    wm_big = params.wm.reshape(K_mix * (nh2 + f_in), n_classes).astype(jnp.bfloat16)
    bm = params.bm.reshape(1, n_classes).astype(jnp.float32)

    flops = int(
        2 * (K - 1) * n * n * f_in + 2 * n * (K * f_in) * (2 * nh1)        # block1
        + 2 * (K - 1) * n * n * nh1 + 2 * n * (K * nh1) * (2 * nh2)        # block2
        + 2 * (K_mix - 1) * n * n * (nh2 + f_in)                           # mix recurrence
        + 2 * n * (K_mix * (nh2 + f_in)) * n_classes                       # mix weights
    )
    bytes_accessed = int(
        L.size * 2 + x.size * 4
        + w1_big.size * 2 + b1_big.size * 4
        + w2_big.size * 2 + b2_big.size * 4
        + wm_big.size * 2 + bm.size * 4
        + n * n_classes * 4
    )

    kernel = functools.partial(kipfnet_fused_kernel,
                               K=K, K_mix=K_mix, nh1=nh1, nh2=nh2)

    # NOTE: at this toy N everything (L + activations + weights) fits in VMEM on every
    # chip generation; for large N the L input would move to a row-tiled BlockSpec
    # with a grid (and "parallel" semantics for v7x's two TensorCores).
    return pl.pallas_call(
        kernel,
        out_shape=jax.ShapeDtypeStruct((n, n_classes), jnp.float32),
        in_specs=[_VMEM] * 8,
        out_specs=_VMEM,
        compiler_params=pltpu.CompilerParams(vmem_limit_bytes=32 * 1024 * 1024),
        cost_estimate=pl.CostEstimate(flops=flops, transcendentals=0,
                                      bytes_accessed=bytes_accessed),
    )(L, x, w1_big, b1_big, w2_big, b2_big, wm_big, bm)


if __name__ == "__main__":
    # Small deterministic problem: 128 nodes, 16 input features, 8 classes.
    N, F_IN, N_CLASSES = 128, 16, 8
    NH1, NH2, K, K_MIX = 64, 32, 8, 2

    key = jax.random.PRNGKey(0)
    kx, kp = jax.random.split(key)

    x = jax.random.normal(kx, (N, F_IN), jnp.float32)

    # Deterministic bidirectional ring graph (+ a few chords) as edge_index (2, E).
    idx = jnp.arange(N)
    src = jnp.concatenate([idx, (idx + 1) % N, idx, (idx + 5) % N])
    dst = jnp.concatenate([(idx + 1) % N, idx, (idx + 5) % N, idx])
    edge_index = jnp.stack([src, dst], axis=0)

    params = KipfNetResd2Params(kp, F_IN, N_CLASSES, nh1=NH1, nh2=NH2, K=K, K_mix=K_MIX)

    out = kipfnet_resd2_forward(params, x, edge_index)
    out = jax.block_until_ready(out)
    assert out.shape == (N, N_CLASSES)
    assert bool(jnp.all(jnp.isfinite(out)))
    print("KERNEL_OK")
</pallas_src>

<mosaic_0001>
module attributes {stable_mosaic.version = 11 : i64} {
  func.func @kipfnet_fused_kernel(%arg0: memref<128x128xbf16, #tpu.memory_space<vmem>>, %arg1: memref<128x16xf32, #tpu.memory_space<vmem>>, %arg2: memref<128x128xbf16, #tpu.memory_space<vmem>>, %arg3: memref<1x128xf32, #tpu.memory_space<vmem>>, %arg4: memref<512x64xbf16, #tpu.memory_space<vmem>>, %arg5: memref<1x64xf32, #tpu.memory_space<vmem>>, %arg6: memref<96x8xbf16, #tpu.memory_space<vmem>>, %arg7: memref<1x8xf32, #tpu.memory_space<vmem>>, %arg8: memref<128x8xf32, #tpu.memory_space<vmem>>) attributes {dimension_semantics = [], scalar_prefetch = 0 : i64, scratch_operands = 0 : i64, tpu.core_type = #tpu.core_type<tc>} {
    %c0 = arith.constant 0 : index
    %c0_0 = arith.constant 0 : index
    %0 = vector.load %arg0[%c0, %c0_0] : memref<128x128xbf16, #tpu.memory_space<vmem>>, vector<128x128xbf16>
    %c0_1 = arith.constant 0 : index
    %c0_2 = arith.constant 0 : index
    %1 = vector.load %arg1[%c0_1, %c0_2] : memref<128x16xf32, #tpu.memory_space<vmem>>, vector<128x16xf32>
    %2 = arith.truncf %1 : vector<128x16xf32> to vector<128x16xbf16>
    %cst = arith.constant dense<0.000000e+00> : vector<128x16xf32>
    %3 = tpu.matmul %0, %2, %cst {dimension_numbers = #tpu.dot_dimension_numbers<[1], [0], [0], [1], [0, 0, 1, 1], [], []>} : vector<128x128xbf16>, vector<128x16xbf16>, vector<128x16xf32> -> vector<128x16xf32>
    %4 = arith.truncf %3 : vector<128x16xf32> to vector<128x16xbf16>
    %cst_3 = arith.constant dense<0.000000e+00> : vector<128x16xf32>
    %5 = tpu.matmul %0, %4, %cst_3 {dimension_numbers = #tpu.dot_dimension_numbers<[1], [0], [0], [1], [0, 0, 1, 1], [], []>} : vector<128x128xbf16>, vector<128x16xbf16>, vector<128x16xf32> -> vector<128x16xf32>
    %cst_4 = arith.constant 2.000000e+00 : f32
    %6 = vector.broadcast %cst_4 : f32 to vector<128x16xf32>
    %7 = arith.mulf %6, %5 : vector<128x16xf32>
    %8 = arith.subf %7, %1 : vector<128x16xf32>
    %9 = arith.truncf %8 : vector<128x16xf32> to vector<128x16xbf16>
    %cst_5 = arith.constant dense<0.000000e+00> : vector<128x16xf32>
    %10 = tpu.matmul %0, %9, %cst_5 {dimension_numbers = #tpu.dot_dimension_numbers<[1], [0], [0], [1], [0, 0, 1, 1], [], []>} : vector<128x128xbf16>, vector<128x16xbf16>, vector<128x16xf32> -> vector<128x16xf32>
    %cst_6 = arith.constant 2.000000e+00 : f32
    %11 = vector.broadcast %cst_6 : f32 to vector<128x16xf32>
    %12 = arith.mulf %11, %10 : vector<128x16xf32>
    %13 = arith.subf %12, %3 : vector<128x16xf32>
    %14 = arith.truncf %13 : vector<128x16xf32> to vector<128x16xbf16>
    %cst_7 = arith.constant dense<0.000000e+00> : vector<128x16xf32>
    %15 = tpu.matmul %0, %14, %cst_7 {dimension_numbers = #tpu.dot_dimension_numbers<[1], [0], [0], [1], [0, 0, 1, 1], [], []>} : vector<128x128xbf16>, vector<128x16xbf16>, vector<128x16xf32> -> vector<128x16xf32>
    %cst_8 = arith.constant 2.000000e+00 : f32
    %16 = vector.broadcast %cst_8 : f32 to vector<128x16xf32>
    %17 = arith.mulf %16, %15 : vector<128x16xf32>
    %18 = arith.subf %17, %8 : vector<128x16xf32>
    %19 = arith.truncf %18 : vector<128x16xf32> to vector<128x16xbf16>
    %cst_9 = arith.constant dense<0.000000e+00> : vector<128x16xf32>
    %20 = tpu.matmul %0, %19, %cst_9 {dimension_numbers = #tpu.dot_dimension_numbers<[1], [0], [0], [1], [0, 0, 1, 1], [], []>} : vector<128x128xbf16>, vector<128x16xbf16>, vector<128x16xf32> -> vector<128x16xf32>
    %cst_10 = arith.constant 2.000000e+00 : f32
    %21 = vector.broadcast %cst_10 : f32 to vector<128x16xf32>
    %22 = arith.mulf %21, %20 : vector<128x16xf32>
    %23 = arith.subf %22, %13 : vector<128x16xf32>
    %24 = arith.truncf %23 : vector<128x16xf32> to vector<128x16xbf16>
    %cst_11 = arith.constant dense<0.000000e+00> : vector<128x16xf32>
    %25 = tpu.matmul %0, %24, %cst_11 {dimension_numbers = #tpu.dot_dimension_numbers<[1], [0], [0], [1], [0, 0, 1, 1], [], []>} : vector<128x128xbf16>, vector<128x16xbf16>, vector<128x16xf32> -> vector<128x16xf32>
    %cst_12 = arith.constant 2.000000e+00 : f32
    %26 = vector.broadcast %cst_12 : f32 to vector<128x16xf32>
    %27 = arith.mulf %26, %25 : vector<128x16xf32>
    %28 = arith.subf %27, %18 : vector<128x16xf32>
    %29 = arith.truncf %28 : vector<128x16xf32> to vector<128x16xbf16>
    %cst_13 = arith.constant dense<0.000000e+00> : vector<128x16xf32>
    %30 = tpu.matmul %0, %29, %cst_13 {dimension_numbers = #tpu.dot_dimension_numbers<[1], [0], [0], [1], [0, 0, 1, 1], [], []>} : vector<128x128xbf16>, vector<128x16xbf16>, vector<128x16xf32> -> vector<128x16xf32>
    %cst_14 = arith.constant 2.000000e+00 : f32
    %31 = vector.broadcast %cst_14 : f32 to vector<128x16xf32>
    %32 = arith.mulf %31, %30 : vector<128x16xf32>
    %33 = arith.subf %32, %23 : vector<128x16xf32>
    %34 = tpu.concatenate %1, %3, %8, %13, %18, %23, %28, %33 in 1 : vector<128x16xf32>, vector<128x16xf32>, vector<128x16xf32>, vector<128x16xf32>, vector<128x16xf32>, vector<128x16xf32>, vector<128x16xf32>, vector<128x16xf32> -> vector<128x128xf32>
    %35 = arith.truncf %34 : vector<128x128xf32> to vector<128x128xbf16>
    %c0_15 = arith.constant 0 : index
    %c0_16 = arith.constant 0 : index
    %36 = vector.load %arg2[%c0_15, %c0_16] : memref<128x128xbf16, #tpu.memory_space<vmem>>, vector<128x128xbf16>
    %cst_17 = arith.constant dense<0.000000e+00> : vector<128x128xf32>
    %37 = tpu.matmul %35, %36, %cst_17 {dimension_numbers = #tpu.dot_dimension_numbers<[1], [0], [0], [1], [0, 0, 1, 1], [], []>} : vector<128x128xbf16>, vector<128x128xbf16>, vector<128x128xf32> -> vector<128x128xf32>
    %c0_18 = arith.constant 0 : index
    %c0_19 = arith.constant 0 : index
    %38 = vector.load %arg3[%c0_18, %c0_19] : memref<1x128xf32, #tpu.memory_space<vmem>>, vector<1x128xf32>
    %39 = vector.broadcast %38 : vector<1x128xf32> to vector<128x128xf32>
    %40 = arith.addf %37, %39 : vector<128x128xf32>
    %41 = vector.extract_strided_slice %40 {offsets = [0, 0], sizes = [128, 64], strides = [1, 1]} : vector<128x128xf32> to vector<128x64xf32>
    %cst_20 = arith.constant 0.000000e+00 : f32
    %42 = vector.broadcast %cst_20 : f32 to vector<128x64xf32>
    %43 = arith.maximumf %41, %42 : vector<128x64xf32>
    %44 = vector.extract_strided_slice %40 {offsets = [0, 64], sizes = [128, 64], strides = [1, 1]} : vector<128x128xf32> to vector<128x64xf32>
    %45 = arith.addf %43, %44 : vector<128x64xf32>
    %46 = arith.truncf %45 : vector<128x64xf32> to vector<128x64xbf16>
    %cst_21 = arith.constant dense<0.000000e+00> : vector<128x64xf32>
    %47 = tpu.matmul %0, %46, %cst_21 {dimension_numbers = #tpu.dot_dimension_numbers<[1], [0], [0], [1], [0, 0, 1, 1], [], []>} : vector<128x128xbf16>, vector<128x64xbf16>, vector<128x64xf32> -> vector<128x64xf32>
    %48 = arith.truncf %47 : vector<128x64xf32> to vector<128x64xbf16>
    %cst_22 = arith.constant dense<0.000000e+00> : vector<128x64xf32>
    %49 = tpu.matmul %0, %48, %cst_22 {dimension_numbers = #tpu.dot_dimension_numbers<[1], [0], [0], [1], [0, 0, 1, 1], [], []>} : vector<128x128xbf16>, vector<128x64xbf16>, vector<128x64xf32> -> vector<128x64xf32>
    %cst_23 = arith.constant 2.000000e+00 : f32
    %50 = vector.broadcast %cst_23 : f32 to vector<128x64xf32>
    %51 = arith.mulf %50, %49 : vector<128x64xf32>
    %52 = arith.subf %51, %45 : vector<128x64xf32>
    %53 = arith.truncf %52 : vector<128x64xf32> to vector<128x64xbf16>
    %cst_24 = arith.constant dense<0.000000e+00> : vector<128x64xf32>
    %54 = tpu.matmul %0, %53, %cst_24 {dimension_numbers = #tpu.dot_dimension_numbers<[1], [0], [0], [1], [0, 0, 1, 1], [], []>} : vector<128x128xbf16>, vector<128x64xbf16>, vector<128x64xf32> -> vector<128x64xf32>
    %cst_25 = arith.constant 2.000000e+00 : f32
    %55 = vector.broadcast %cst_25 : f32 to vector<128x64xf32>
    %56 = arith.mulf %55, %54 : vector<128x64xf32>
    %57 = arith.subf %56, %47 : vector<128x64xf32>
    %58 = arith.truncf %57 : vector<128x64xf32> to vector<128x64xbf16>
    %cst_26 = arith.constant dense<0.000000e+00> : vector<128x64xf32>
    %59 = tpu.matmul %0, %58, %cst_26 {dimension_numbers = #tpu.dot_dimension_numbers<[1], [0], [0], [1], [0, 0, 1, 1], [], []>} : vector<128x128xbf16>, vector<128x64xbf16>, vector<128x64xf32> -> vector<128x64xf32>
    %cst_27 = arith.constant 2.000000e+00 : f32
    %60 = vector.broadcast %cst_27 : f32 to vector<128x64xf32>
    %61 = arith.mulf %60, %59 : vector<128x64xf32>
    %62 = arith.subf %61, %52 : vector<128x64xf32>
    %63 = arith.truncf %62 : vector<128x64xf32> to vector<128x64xbf16>
    %cst_28 = arith.constant dense<0.000000e+00> : vector<128x64xf32>
    %64 = tpu.matmul %0, %63, %cst_28 {dimension_numbers = #tpu.dot_dimension_numbers<[1], [0], [0], [1], [0, 0, 1, 1], [], []>} : vector<128x128xbf16>, vector<128x64xbf16>, vector<128x64xf32> -> vector<128x64xf32>
    %cst_29 = arith.constant 2.000000e+00 : f32
    %65 = vector.broadcast %cst_29 : f32 to vector<128x64xf32>
    %66 = arith.mulf %65, %64 : vector<128x64xf32>
    %67 = arith.subf %66, %57 : vector<128x64xf32>
    %68 = arith.truncf %67 : vector<128x64xf32> to vector<128x64xbf16>
    %cst_30 = arith.constant dense<0.000000e+00> : vector<128x64xf32>
    %69 = tpu.matmul %0, %68, %cst_30 {dimension_numbers = #tpu.dot_dimension_numbers<[1], [0], [0], [1], [0, 0, 1, 1], [], []>} : vector<128x128xbf16>, vector<128x64xbf16>, vector<128x64xf32> -> vector<128x64xf32>
    %cst_31 = arith.constant 2.000000e+00 : f32
    %70 = vector.broadcast %cst_31 : f32 to vector<128x64xf32>
    %71 = arith.mulf %70, %69 : vector<128x64xf32>
    %72 = arith.subf %71, %62 : vector<128x64xf32>
    %73 = arith.truncf %72 : vector<128x64xf32> to vector<128x64xbf16>
    %cst_32 = arith.constant dense<0.000000e+00> : vector<128x64xf32>
    %74 = tpu.matmul %0, %73, %cst_32 {dimension_numbers = #tpu.dot_dimension_numbers<[1], [0], [0], [1], [0, 0, 1, 1], [], []>} : vector<128x128xbf16>, vector<128x64xbf16>, vector<128x64xf32> -> vector<128x64xf32>
    %cst_33 = arith.constant 2.000000e+00 : f32
    %75 = vector.broadcast %cst_33 : f32 to vector<128x64xf32>
    %76 = arith.mulf %75, %74 : vector<128x64xf32>
    %77 = arith.subf %76, %67 : vector<128x64xf32>
    %78 = tpu.concatenate %45, %47, %52, %57, %62, %67, %72, %77 in 1 : vector<128x64xf32>, vector<128x64xf32>, vector<128x64xf32>, vector<128x64xf32>, vector<128x64xf32>, vector<128x64xf32>, vector<128x64xf32>, vector<128x64xf32> -> vector<128x512xf32>
    %79 = arith.truncf %78 : vector<128x512xf32> to vector<128x512xbf16>
    %c0_34 = arith.constant 0 : index
    %c0_35 = arith.constant 0 : index
    %80 = vector.load %arg4[%c0_34, %c0_35] : memref<512x64xbf16, #tpu.memory_space<vmem>>, vector<512x64xbf16>
    %cst_36 = arith.constant dense<0.000000e+00> : vector<128x64xf32>
    %81 = tpu.matmul %79, %80, %cst_36 {dimension_numbers = #tpu.dot_dimension_numbers<[1], [0], [0], [1], [0, 0, 1, 1], [], []>} : vector<128x512xbf16>, vector<512x64xbf16>, vector<128x64xf32> -> vector<128x64xf32>
    %c0_37 = arith.constant 0 : index
    %c0_38 = arith.constant 0 : index
    %82 = vector.load %arg5[%c0_37, %c0_38] : memref<1x64xf32, #tpu.memory_space<vmem>>, vector<1x64xf32>
    %83 = vector.broadcast %82 : vector<1x64xf32> to vector<128x64xf32>
    %84 = arith.addf %81, %83 : vector<128x64xf32>
    %85 = vector.extract_strided_slice %84 {offsets = [0, 0], sizes = [128, 32], strides = [1, 1]} : vector<128x64xf32> to vector<128x32xf32>
    %cst_39 = arith.constant 0.000000e+00 : f32
    %86 = vector.broadcast %cst_39 : f32 to vector<128x32xf32>
    %87 = arith.maximumf %85, %86 : vector<128x32xf32>
    %88 = vector.extract_strided_slice %84 {offsets = [0, 32], sizes = [128, 32], strides = [1, 1]} : vector<128x64xf32> to vector<128x32xf32>
    %89 = arith.addf %87, %88 : vector<128x32xf32>
    %90 = tpu.concatenate %89, %1 in 1 : vector<128x32xf32>, vector<128x16xf32> -> vector<128x48xf32>
    %91 = arith.truncf %90 : vector<128x48xf32> to vector<128x48xbf16>
    %cst_40 = arith.constant dense<0.000000e+00> : vector<128x48xf32>
    %92 = tpu.matmul %0, %91, %cst_40 {dimension_numbers = #tpu.dot_dimension_numbers<[1], [0], [0], [1], [0, 0, 1, 1], [], []>} : vector<128x128xbf16>, vector<128x48xbf16>, vector<128x48xf32> -> vector<128x48xf32>
    %93 = tpu.concatenate %90, %92 in 1 : vector<128x48xf32>, vector<128x48xf32> -> vector<128x96xf32>
    %94 = arith.truncf %93 : vector<128x96xf32> to vector<128x96xbf16>
    %c0_41 = arith.constant 0 : index
    %c0_42 = arith.constant 0 : index
    %95 = vector.load %arg6[%c0_41, %c0_42] : memref<96x8xbf16, #tpu.memory_space<vmem>>, vector<96x8xbf16>
    %cst_43 = arith.constant dense<0.000000e+00> : vector<128x8xf32>
    %96 = tpu.matmul %94, %95, %cst_43 {dimension_numbers = #tpu.dot_dimension_numbers<[1], [0], [0], [1], [0, 0, 1, 1], [], []>} : vector<128x96xbf16>, vector<96x8xbf16>, vector<128x8xf32> -> vector<128x8xf32>
    %c0_44 = arith.constant 0 : index
    %c0_45 = arith.constant 0 : index
    %97 = vector.load %arg7[%c0_44, %c0_45] : memref<1x8xf32, #tpu.memory_space<vmem>>, vector<1x8xf32>
    %98 = vector.broadcast %97 : vector<1x8xf32> to vector<128x8xf32>
    %99 = arith.addf %96, %98 : vector<128x8xf32>
    %c0_46 = arith.constant 0 : index
    %c0_47 = arith.constant 0 : index
    %100 = vector.load %arg8[%c0_46, %c0_47] : memref<128x8xf32, #tpu.memory_space<vmem>>, vector<128x8xf32>
    tpu.vector_store %arg8[%c0_46, %c0_47], %99 {strides = array<i32>} : memref<128x8xf32, #tpu.memory_space<vmem>>, vector<128x8xf32>,
    return
  }
}

</mosaic_0001>

<llo_original>
// kernel: tpu_custom_call.1
$region0: #{tpu_custom_call.1}
  #allocation0 [shape = 'u32[]', space=smem, size = 0x4, offset = 0x4, fixed_abs, tag = 'smem constant byte address 0x4 - core index']
  #allocation1 [shape = 'u32[144,128]{1,0:T(1,128)}', space=vmem, size = 0x12000, scoped, tag = 'internal scratch']
  %s0 = inlined_call_operand.vmem [shape: bf16[128,128], index: 0, kind: input, shape index: {}]
  %s1 = inlined_call_operand.vmem [shape: f32[128,16], index: 1, kind: input, shape index: {}]
  %s2 = inlined_call_operand.vmem [shape: bf16[128,128], index: 2, kind: input, shape index: {}]
  %s3 = inlined_call_operand.vmem [shape: f32[1,128], index: 3, kind: input, shape index: {}]
  %s4 = inlined_call_operand.vmem [shape: bf16[512,64], index: 4, kind: input, shape index: {}]
  %s5 = inlined_call_operand.vmem [shape: f32[1,64], index: 5, kind: input, shape index: {}]
  %s6 = inlined_call_operand.vmem [shape: bf16[96,8], index: 6, kind: input, shape index: {}]
  %s7 = inlined_call_operand.vmem [shape: f32[1,8], index: 7, kind: input, shape index: {}]
  %s8 = inlined_call_operand.vmem [shape: f32[128,8], index: 8, kind: output, shape index: {}]
  %s9 = sld [smem:[#allocation0]]
  $region42: #{tpu_custom_call.1} parent=0
    _
  %s11 = ssub.s32 1, %s9
  %s12 = scalar_select 0, %s11, %s9
  // Predicated region
  $region2: #{tpu_custom_call.1} parent=0 // pred_check
    _
  $region3: #{tpu_custom_call.1} parent=0 // pred_check_branch
    %14 = sbr.rel (0) target = $region5
  $region4: #{tpu_custom_call.1} parent=0 // pred_region
    _
  $region5: #{tpu_custom_call.1} parent=0 // pred_fallthru
    _
  // Predicated region
  $region6: #{tpu_custom_call.1} parent=0 // pred_check
    _
  $region7: #{tpu_custom_call.1} parent=0 // pred_check_branch
    %16 = sbr.rel (0) target = $region9
  $region8: #{tpu_custom_call.1} parent=0 // pred_region
    _
  $region9: #{tpu_custom_call.1} parent=0 // pred_fallthru
    _
  // Predicated region
  $region10: #{tpu_custom_call.1} parent=0 // pred_check
    _
  $region11: #{tpu_custom_call.1} parent=0 // pred_check_branch
    %18 = sbr.rel (0) target = $region13
  $region12: #{tpu_custom_call.1} parent=0 // pred_region
    _
  $region13: #{tpu_custom_call.1} parent=0 // pred_fallthru
    _
  // Predicated region
  $region14: #{tpu_custom_call.1} parent=0 // pred_check
    _
  $region15: #{tpu_custom_call.1} parent=0 // pred_check_branch
    %20 = sbr.rel (0) target = $region17
  $region16: #{tpu_custom_call.1} parent=0 // pred_region
    _
  $region17: #{tpu_custom_call.1} parent=0 // pred_fallthru
    _
  // Predicated region
  $region18: #{tpu_custom_call.1} parent=0 // pred_check
    _
  $region19: #{tpu_custom_call.1} parent=0 // pred_check_branch
    %22 = sbr.rel (0) target = $region21
  $region20: #{tpu_custom_call.1} parent=0 // pred_region
    _
  $region21: #{tpu_custom_call.1} parent=0 // pred_fallthru
    _
  // Predicated region
  $region22: #{tpu_custom_call.1} parent=0 // pred_check
    _
  $region23: #{tpu_custom_call.1} parent=0 // pred_check_branch
    %24 = sbr.rel (0) target = $region25
  $region24: #{tpu_custom_call.1} parent=0 // pred_region
    _
  $region25: #{tpu_custom_call.1} parent=0 // pred_fallthru
    _
  // Predicated region
  $region26: #{tpu_custom_call.1} parent=0 // pred_check
    _
  $region27: #{tpu_custom_call.1} parent=0 // pred_check_branch
    %26 = sbr.rel (0) target = $region29
  $region28: #{tpu_custom_call.1} parent=0 // pred_region
    _
  $region29: #{tpu_custom_call.1} parent=0 // pred_fallthru
    _
  // Predicated region
  $region30: #{tpu_custom_call.1} parent=0 // pred_check
    _
  $region31: #{tpu_custom_call.1} parent=0 // pred_check_branch
    %28 = sbr.rel (0) target = $region33
  $region32: #{tpu_custom_call.1} parent=0 // pred_region
    _
  $region33: #{tpu_custom_call.1} parent=0 // pred_fallthru
    _
  %v30 = vld [vmem:[%s0] sm:$0xf]
  %v31 = vld [vmem:[%s0 + $0x4] sm:$0xf]
  %v32 = vld [vmem:[%s0 + $0x8] sm:$0xf]
  %v33 = vld [vmem:[%s0 + $0xc] sm:$0xf]
  %v34 = vld [vmem:[%s0 + $0x10] sm:$0xf]
  %v35 = vld [vmem:[%s0 + $0x14] sm:$0xf]
  %v36 = vld [vmem:[%s0 + $0x18] sm:$0xf]
  %v37 = vld [vmem:[%s0 + $0x1c] sm:$0xf]
  %v38 = vld [vmem:[%s0 + $0x20] sm:$0xf]
  %v39 = vld [vmem:[%s0 + $0x24] sm:$0xf]
  %v40 = vld [vmem:[%s0 + $0x28] sm:$0xf]
  %v41 = vld [vmem:[%s0 + $0x2c] sm:$0xf]
  %v42 = vld [vmem:[%s0 + $0x30] sm:$0xf]
  %v43 = vld [vmem:[%s0 + $0x34] sm:$0xf]
  %v44 = vld [vmem:[%s0 + $0x38] sm:$0xf]
  %v45 = vld [vmem:[%s0 + $0x3c] sm:$0xf]
  %v46 = vld [vmem:[%s1] sm:$0xff]
  %v47 = vld [vmem:[%s1 + $0x8] sm:$0xff]
  %v48 = vld [vmem:[%s1 + $0x10] sm:$0xff]
  %v49 = vld [vmem:[%s1 + $0x18] sm:$0xff]
  %v50 = vld [vmem:[%s1 + $0x20] sm:$0xff]
  %v51 = vld [vmem:[%s1 + $0x28] sm:$0xff]
  %v52 = vld [vmem:[%s1 + $0x30] sm:$0xff]
  %v53 = vld [vmem:[%s1 + $0x38] sm:$0xff]
  %v54 = vld [vmem:[%s1 + $0x40] sm:$0xff]
  %v55 = vld [vmem:[%s1 + $0x48] sm:$0xff]
  %v56 = vld [vmem:[%s1 + $0x50] sm:$0xff]
  %v57 = vld [vmem:[%s1 + $0x58] sm:$0xff]
  %v58 = vld [vmem:[%s1 + $0x60] sm:$0xff]
  %v59 = vld [vmem:[%s1 + $0x68] sm:$0xff]
  %v60 = vld [vmem:[%s1 + $0x70] sm:$0xff]
  %v61 = vld [vmem:[%s1 + $0x78] sm:$0xff]
  %v62 = vpack.c.bf16 %v47, %v46
  %v63 = vpack.c.bf16 %v49, %v48
  %v64 = vpack.c.bf16 %v51, %v50
  %v65 = vpack.c.bf16 %v53, %v52
  %v66 = vpack.c.bf16 %v55, %v54
  %v67 = vpack.c.bf16 %v57, %v56
  %v68 = vpack.c.bf16 %v59, %v58
  %v69 = vpack.c.bf16 %v61, %v60
  %v86 = vunpack.c.l.b16 %v30
  %v87 = vunpack.c.l.b16 %v31
  %v88 = vunpack.c.l.b16 %v32
  %v89 = vunpack.c.l.b16 %v33
  %v90 = vunpack.c.l.b16 %v34
  %v91 = vunpack.c.l.b16 %v35
  %v92 = vunpack.c.l.b16 %v36
  %v93 = vunpack.c.l.b16 %v37
  %v94 = vunpack.c.l.b16 %v38
  %v95 = vunpack.c.l.b16 %v39
  %v96 = vunpack.c.l.b16 %v40
  %v97 = vunpack.c.l.b16 %v41
  %v98 = vunpack.c.l.b16 %v42
  %v99 = vunpack.c.l.b16 %v43
  %v100 = vunpack.c.l.b16 %v44
  %v101 = vunpack.c.l.b16 %v45
  %v102 = vpack.c.b16 %v87, %v86
  %v103 = vpack.c.b16 %v89, %v88
  %v104 = vpack.c.b16 %v91, %v90
  %v105 = vpack.c.b16 %v93, %v92
  %v106 = vpack.c.b16 %v95, %v94
  %v107 = vpack.c.b16 %v97, %v96
  %v108 = vpack.c.b16 %v99, %v98
  %v109 = vpack.c.b16 %v101, %v100
  %118 = vmatprep.subr.bf16.mxu0 0
  %119 = vmatpush1.bf16.msra.mxu0 %v62
  %120 = vmatprep.subr.bf16.mxu0 0
  %121 = vmatpush1.bf16.msra.mxu0 %v63
  %122 = vmatprep.subr.bf16.mxu0 0
  %123 = vmatpush1.bf16.msra.mxu0 %v64
  %124 = vmatprep.subr.bf16.mxu0 0
  %125 = vmatpush1.bf16.msra.mxu0 %v65
  %126 = vmatprep.subr.bf16.mxu0 0
  %127 = vmatpush1.bf16.msra.mxu0 %v66
  %128 = vmatprep.subr.bf16.mxu0 0
  %129 = vmatpush1.bf16.msra.mxu0 %v67
  %130 = vmatprep.subr.bf16.mxu0 0
  %131 = vmatpush1.bf16.msra.mxu0 %v68
  %132 = vmatprep.subr.bf16.mxu0 0
  %133 = vmatpush1.bf16.msra.mxu0 %v69
  %134 = vmatprep.subr.bf16.mxu0 0
  %135 = vmatpush1.bf16.msra.mxu0 0
  %136 = vmatprep.subr.bf16.mxu0 0
  %137 = vmatpush1.bf16.msra.mxu0 0
  %138 = vmatprep.subr.bf16.mxu0 0
  %139 = vmatpush1.bf16.msra.mxu0 0
  %140 = vmatprep.subr.bf16.mxu0 0
  %141 = vmatpush1.bf16.msra.mxu0 0
  %142 = vmatprep.subr.bf16.mxu0 0
  %143 = vmatpush1.bf16.msra.mxu0 0
  %144 = vmatprep.subr.bf16.mxu0 0
  %145 = vmatpush1.bf16.msra.mxu0 0
  %146 = vmatprep.subr.bf16.mxu0 0
  %147 = vmatpush1.bf16.msra.mxu0 0
  %148 = vmatprep.subr.bf16.mxu0 0
  %149 = vmatpush1.bf16.msra.mxu0 0
  %150 = vmatprep.mubr.bf16.mxu0 0
  %151 = vmatmul.mubr.bf16.gmra.mrb[0].mxu0 %v102
  %v152 = vpop.f32.mrb[0].mxu0
  %v153 = vadd.f32 0.0, %v152
  %v154 = vpop.f32.mrb[0].mxu0
  %v155 = vpop.f32.mrb[0].mxu0
  %v156 = vadd.f32 0.0, %v155
  %v157 = vpop.f32.mrb[0].mxu0
  %158 = vmatprep.mubr.bf16.mxu0 0
  %159 = vmatmul.mubr.bf16.gmra.mrb[0].mxu0 %v103
  %v160 = vpop.f32.mrb[0].mxu0
  %v161 = vadd.f32 0.0, %v160
  %v162 = vpop.f32.mrb[0].mxu0
  %v163 = vpop.f32.mrb[0].mxu0
  %v164 = vadd.f32 0.0, %v163
  %v165 = vpop.f32.mrb[0].mxu0
  %166 = vmatprep.mubr.bf16.mxu0 0
  %167 = vmatmul.mubr.bf16.gmra.mrb[0].mxu0 %v104
  %v168 = vpop.f32.mrb[0].mxu0
  %v169 = vadd.f32 0.0, %v168
  %v170 = vpop.f32.mrb[0].mxu0
  %v171 = vpop.f32.mrb[0].mxu0
  %v172 = vadd.f32 0.0, %v171
  %v173 = vpop.f32.mrb[0].mxu0
  %174 = vmatprep.mubr.bf16.mxu0 0
  %175 = vmatmul.mubr.bf16.gmra.mrb[0].mxu0 %v105
  %v176 = vpop.f32.mrb[0].mxu0
  %v177 = vadd.f32 0.0, %v176
  %v178 = vpop.f32.mrb[0].mxu0
  %v179 = vpop.f32.mrb[0].mxu0
  %v180 = vadd.f32 0.0, %v179
  %v181 = vpop.f32.mrb[0].mxu0
  %182 = vmatprep.mubr.bf16.mxu0 0
  %183 = vmatmul.mubr.bf16.gmra.mrb[0].mxu0 %v106
  %v184 = vpop.f32.mrb[0].mxu0
  %v185 = vadd.f32 0.0, %v184
  %v186 = vpop.f32.mrb[0].mxu0
  %v187 = vpop.f32.mrb[0].mxu0
  %v188 = vadd.f32 0.0, %v187
  %v189 = vpop.f32.mrb[0].mxu0
  %190 = vmatprep.mubr.bf16.mxu0 0
  %191 = vmatmul.mubr.bf16.gmra.mrb[0].mxu0 %v107
  %v192 = vpop.f32.mrb[0].mxu0
  %v193 = vadd.f32 0.0, %v192
  %v194 = vpop.f32.mrb[0].mxu0
  %v195 = vpop.f32.mrb[0].mxu0
  %v196 = vadd.f32 0.0, %v195
  %v197 = vpop.f32.mrb[0].mxu0
  %198 = vmatprep.mubr.bf16.mxu0 0
  %199 = vmatmul.mubr.bf16.gmra.mrb[0].mxu0 %v108
  %v200 = vpop.f32.mrb[0].mxu0
  %v201 = vadd.f32 0.0, %v200
  %v202 = vpop.f32.mrb[0].mxu0
  %v203 = vpop.f32.mrb[0].mxu0
  %v204 = vadd.f32 0.0, %v203
  %v205 = vpop.f32.mrb[0].mxu0
  %206 = vmatprep.mubr.bf16.mxu0 0
  %207 = vmatmul.mubr.bf16.gmra.mrb[0].mxu0 %v109
  %v208 = vpop.f32.mrb[0].mxu0
  %v209 = vadd.f32 0.0, %v208
  %v210 = vpop.f32.mrb[0].mxu0
  %v211 = vpop.f32.mrb[0].mxu0
  %v212 = vadd.f32 0.0, %v211
  %v213 = vpop.f32.mrb[0].mxu0
  %214 = vdwg.mxu0
  %v215 = vpack.c.bf16 %v156, %v153
  %v216 = vpack.c.bf16 %v164, %v161
  %v217 = vpack.c.bf16 %v172, %v169
  %v218 = vpack.c.bf16 %v180, %v177
  %v219 = vpack.c.bf16 %v188, %v185
  %v220 = vpack.c.bf16 %v196, %v193
  %v221 = vpack.c.bf16 %v204, %v201
  %v222 = vpack.c.bf16 %v212, %v209
  %223 = vmatprep.subr.bf16.mxu0 0
  %224 = vmatpush1.bf16.msra.mxu0 %v215
  %225 = vmatprep.subr.bf16.mxu0 0
  %226 = vmatpush1.bf16.msra.mxu0 %v216
  %227 = vmatprep.subr.bf16.mxu0 0
  %228 = vmatpush1.bf16.msra.mxu0 %v217
  %229 = vmatprep.subr.bf16.mxu0 0
  %230 = vmatpush1.bf16.msra.mxu0 %v218
  %231 = vmatprep.subr.bf16.mxu0 0
  %232 = vmatpush1.bf16.msra.mxu0 %v219
  %233 = vmatprep.subr.bf16.mxu0 0
  %234 = vmatpush1.bf16.msra.mxu0 %v220
  %235 = vmatprep.subr.bf16.mxu0 0
  %236 = vmatpush1.bf16.msra.mxu0 %v221
  %237 = vmatprep.subr.bf16.mxu0 0
  %238 = vmatpush1.bf16.msra.mxu0 %v222
  %239 = vmatprep.subr.bf16.mxu0 0
  %240 = vmatpush1.bf16.msra.mxu0 0
  %241 = vmatprep.subr.bf16.mxu0 0
  %242 = vmatpush1.bf16.msra.mxu0 0
  %243 = vmatprep.subr.bf16.mxu0 0
  %244 = vmatpush1.bf16.msra.mxu0 0
  %245 = vmatprep.subr.bf16.mxu0 0
  %246 = vmatpush1.bf16.msra.mxu0 0
  %247 = vmatprep.subr.bf16.mxu0 0
  %248 = vmatpush1.bf16.msra.mxu0 0
  %249 = vmatprep.subr.bf16.mxu0 0
  %250 = vmatpush1.bf16.msra.mxu0 0
  %251 = vmatprep.subr.bf16.mxu0 0
  %252 = vmatpush1.bf16.msra.mxu0 0
  %253 = vmatprep.subr.bf16.mxu0 0
  %254 = vmatpush1.bf16.msra.mxu0 0
  %255 = vmatprep.mubr.bf16.mxu0 0
  %256 = vmatmul.mubr.bf16.gmra.mrb[0].mxu0 %v102
  %v257 = vpop.f32.mrb[0].mxu0
  %v258 = vadd.f32 0.0, %v257
  %v259 = vpop.f32.mrb[0].mxu0
  %v260 = vpop.f32.mrb[0].mxu0
  %v261 = vadd.f32 0.0, %v260
  %v262 = vpop.f32.mrb[0].mxu0
  %263 = vmatprep.mubr.bf16.mxu0 0
  %264 = vmatmul.mubr.bf16.gmra.mrb[0].mxu0 %v103
  %v265 = vpop.f32.mrb[0].mxu0
  %v266 = vadd.f32 0.0, %v265
  %v267 = vpop.f32.mrb[0].mxu0
  %v268 = vpop.f32.mrb[0].mxu0
  %v269 = vadd.f32 0.0, %v268
  %v270 = vpop.f32.mrb[0].mxu0
  %271 = vmatprep.mubr.bf16.mxu0 0
  %272 = vmatmul.mubr.bf16.gmra.mrb[0].mxu0 %v104
  %v273 = vpop.f32.mrb[0].mxu0
  %v274 = vadd.f32 0.0, %v273
  %v275 = vpop.f32.mrb[0].mxu0
  %v276 = vpop.f32.mrb[0].mxu0
  %v277 = vadd.f32 0.0, %v276
  %v278 = vpop.f32.mrb[0].mxu0
  %279 = vmatprep.mubr.bf16.mxu0 0
  %280 = vmatmul.mubr.bf16.gmra.mrb[0].mxu0 %v105
  %v281 = vpop.f32.mrb[0].mxu0
  %v282 = vadd.f32 0.0, %v281
  %v283 = vpop.f32.mrb[0].mxu0
  %v284 = vpop.f32.mrb[0].mxu0
  %v285 = vadd.f32 0.0, %v284
  %v286 = vpop.f32.mrb[0].mxu0
  %287 = vmatprep.mubr.bf16.mxu0 0
  %288 = vmatmul.mubr.bf16.gmra.mrb[0].mxu0 %v106
  %v289 = vpop.f32.mrb[0].mxu0
  %v290 = vadd.f32 0.0, %v289
  %v291 = vpop.f32.mrb[0].mxu0
  %v292 = vpop.f32.mrb[0].mxu0
  %v293 = vadd.f32 0.0, %v292
  %v294 = vpop.f32.mrb[0].mxu0
  %295 = vmatprep.mubr.bf16.mxu0 0
  %296 = vmatmul.mubr.bf16.gmra.mrb[0].mxu0 %v107
  %v297 = vpop.f32.mrb[0].mxu0
  %v298 = vadd.f32 0.0, %v297
  %v299 = vpop.f32.mrb[0].mxu0
  %v300 = vpop.f32.mrb[0].mxu0
  %v301 = vadd.f32 0.0, %v300
  %v302 = vpop.f32.mrb[0].mxu0
  %303 = vmatprep.mubr.bf16.mxu0 0
  %304 = vmatmul.mubr.bf16.gmra.mrb[0].mxu0 %v108
  %v305 = vpop.f32.mrb[0].mxu0
  %v306 = vadd.f32 0.0, %v305
  %v307 = vpop.f32.mrb[0].mxu0
  %v308 = vpop.f32.mrb[0].mxu0
  %v309 = vadd.f32 0.0, %v308
  %v310 = vpop.f32.mrb[0].mxu0
  %311 = vmatprep.mubr.bf16.mxu0 0
  %312 = vmatmul.mubr.bf16.gmra.mrb[0].mxu0 %v109
  %v313 = vpop.f32.mrb[0].mxu0
  %v314 = vadd.f32 0.0, %v313
  %v315 = vpop.f32.mrb[0].mxu0
  %v316 = vpop.f32.mrb[0].mxu0
  %v317 = vadd.f32 0.0, %v316
  %v318 = vpop.f32.mrb[0].mxu0
  %319 = vdwg.mxu0
  %v320 = vmul.f32 %v258, 2.0
  %v321 = vmul.f32 %v261, 2.0
  %v322 = vmul.f32 %v266, 2.0
  %v323 = vmul.f32 %v269, 2.0
  %v324 = vmul.f32 %v274, 2.0
  %v325 = vmul.f32 %v277, 2.0
  %v326 = vmul.f32 %v282, 2.0
  %v327 = vmul.f32 %v285, 2.0
  %v328 = vmul.f32 %v290, 2.0
  %v329 = vmul.f32 %v293, 2.0
  %v330 = vmul.f32 %v298, 2.0
  %v331 = vmul.f32 %v301, 2.0
  %v332 = vmul.f32 %v306, 2.0
  %v333 = vmul.f32 %v309, 2.0
  %v334 = vmul.f32 %v314, 2.0
  %v335 = vmul.f32 %v317, 2.0
  %v336 = vsub.f32 %v320, %v46
  %v337 = vsub.f32 %v321, %v47
  %v338 = vsub.f32 %v322, %v48
  %v339 = vsub.f32 %v323, %v49
  %v340 = vsub.f32 %v324, %v50
  %v341 = vsub.f32 %v325, %v51
  %v342 = vsub.f32 %v326, %v52
  %v343 = vsub.f32 %v327, %v53
  %v344 = vsub.f32 %v328, %v54
  %v345 = vsub.f32 %v329, %v55
  %v346 = vsub.f32 %v330, %v56
  %v347 = vsub.f32 %v331, %v57
  %v348 = vsub.f32 %v332, %v58
  %v349 = vsub.f32 %v333, %v59
  %v350 = vsub.f32 %v334, %v60
  %v351 = vsub.f32 %v335, %v61
  %v352 = vpack.c.bf16 %v337, %v336
  %v353 = vpack.c.bf16 %v339, %v338
  %v354 = vpack.c.bf16 %v341, %v340
  %v355 = vpack.c.bf16 %v343, %v342
  %v356 = vpack.c.bf16 %v345, %v344
  %v357 = vpack.c.bf16 %v347, %v346
  %v358 = vpack.c.bf16 %v349, %v348
  %v359 = vpack.c.bf16 %v351, %v350
  %360 = vmatprep.subr.bf16.mxu0 0
  %361 = vmatpush1.bf16.msra.mxu0 %v352
  %362 = vmatprep.subr.bf16.mxu0 0
  %363 = vmatpush1.bf16.msra.mxu0 %v353
  %364 = vmatprep.subr.bf16.mxu0 0
  %365 = vmatpush1.bf16.msra.mxu0 %v354
  %366 = vmatprep.subr.bf16.mxu0 0
  %367 = vmatpush1.bf16.msra.mxu0 %v355
  %368 = vmatprep.subr.bf16.mxu0 0
  %369 = vmatpush1.bf16.msra.mxu0 %v356
  %370 = vmatprep.subr.bf16.mxu0 0
  %371 = vmatpush1.bf16.msra.mxu0 %v357
  %372 = vmatprep.subr.bf16.mxu0 0
  %373 = vmatpush1.bf16.msra.mxu0 %v358
  %374 = vmatprep.subr.bf16.mxu0 0
  %375 = vmatpush1.bf16.msra.mxu0 %v359
  %376 = vmatprep.subr.bf16.mxu0 0
  %377 = vmatpush1.bf16.msra.mxu0 0
  %378 = vmatprep.subr.bf16.mxu0 0
  %379 = vmatpush1.bf16.msra.mxu0 0
  %380 = vmatprep.subr.bf16.mxu0 0
  %381 = vmatpush1.bf16.msra.mxu0 0
  %382 = vmatprep.subr.bf16.mxu0 0
  %383 = vmatpush1.bf16.msra.mxu0 0
  %384 = vmatprep.subr.bf16.mxu0 0
  %385 = vmatpush1.bf16.msra.mxu0 0
  %386 = vmatprep.subr.bf16.mxu0 0
  %387 = vmatpush1.bf16.msra.mxu0 0
  %388 = vmatprep.subr.bf16.mxu0 0
  %389 = vmatpush1.bf16.msra.mxu0 0
  %390 = vmatprep.subr.bf16.mxu0 0
  %391 = vmatpush1.bf16.msra.mxu0 0
  %392 = vmatprep.mubr.bf16.mxu0 0
  %393 = vmatmul.mubr.bf16.gmra.mrb[0].mxu0 %v102
  %v394 = vpop.f32.mrb[0].mxu0
  %v395 = vadd.f32 0.0, %v394
  %v396 = vpop.f32.mrb[0].mxu0
  %v397 = vpop.f32.mrb[0].mxu0
  %v398 = vadd.f32 0.0, %v397
  %v399 = vpop.f32.mrb[0].mxu0
  %400 = vmatprep.mubr.bf16.mxu0 0
  %401 = vmatmul.mubr.bf16.gmra.mrb[0].mxu0 %v103
  %v402 = vpop.f32.mrb[0].mxu0
  %v403 = vadd.f32 0.0, %v402
  %v404 = vpop.f32.mrb[0].mxu0
  %v405 = vpop.f32.mrb[0].mxu0
  %v406 = vadd.f32 0.0, %v405
  %v407 = vpop.f32.mrb[0].mxu0
  %408 = vmatprep.mubr.bf16.mxu0 0
  %409 = vmatmul.mubr.bf16.gmra.mrb[0].mxu0 %v104
  %v410 = vpop.f32.mrb[0].mxu0
  %v411 = vadd.f32 0.0, %v410
  %v412 = vpop.f32.mrb[0].mxu0
  %v413 = vpop.f32.mrb[0].mxu0
  %v414 = vadd.f32 0.0, %v413
  %v415 = vpop.f32.mrb[0].mxu0
  %416 = vmatprep.mubr.bf16.mxu0 0
  %417 = vmatmul.mubr.bf16.gmra.mrb[0].mxu0 %v105
  %v418 = vpop.f32.mrb[0].mxu0
  %v419 = vadd.f32 0.0, %v418
  %v420 = vpop.f32.mrb[0].mxu0
  %v421 = vpop.f32.mrb[0].mxu0
  %v422 = vadd.f32 0.0, %v421
  %v423 = vpop.f32.mrb[0].mxu0
  %424 = vmatprep.mubr.bf16.mxu0 0
  %425 = vmatmul.mubr.bf16.gmra.mrb[0].mxu0 %v106
  %v426 = vpop.f32.mrb[0].mxu0
  %v427 = vadd.f32 0.0, %v426
  %v428 = vpop.f32.mrb[0].mxu0
  %v429 = vpop.f32.mrb[0].mxu0
  %v430 = vadd.f32 0.0, %v429
  %v431 = vpop.f32.mrb[0].mxu0
  %432 = vmatprep.mubr.bf16.mxu0 0
  %433 = vmatmul.mubr.bf16.gmra.mrb[0].mxu0 %v107
  %v434 = vpop.f32.mrb[0].mxu0
  %v435 = vadd.f32 0.0, %v434
  %v436 = vpop.f32.mrb[0].mxu0
  %v437 = vpop.f32.mrb[0].mxu0
  %v438 = vadd.f32 0.0, %v437
  %v439 = vpop.f32.mrb[0].mxu0
  %440 = vmatprep.mubr.bf16.mxu0 0
  %441 = vmatmul.mubr.bf16.gmra.mrb[0].mxu0 %v108
  %v442 = vpop.f32.mrb[0].mxu0
  %v443 = vadd.f32 0.0, %v442
  %v444 = vpop.f32.mrb[0].mxu0
  %v445 = vpop.f32.mrb[0].mxu0
  %v446 = vadd.f32 0.0, %v445
  %v447 = vpop.f32.mrb[0].mxu0
  %448 = vmatprep.mubr.bf16.mxu0 0
  %449 = vmatmul.mubr.bf16.gmra.mrb[0].mxu0 %v109
  %v450 = vpop.f32.mrb[0].mxu0
  %v451 = vadd.f32 0.0, %v450
  %v452 = vpop.f32.mrb[0].mxu0
  %v453 = vpop.f32.mrb[0].mxu0
  %v454 = vadd.f32 0.0, %v453
  %v455 = vpop.f32.mrb[0].mxu0
  %456 = vdwg.mxu0
  %v457 = vmul.f32 %v395, 2.0
  %v458 = vmul.f32 %v398, 2.0
  %v459 = vmul.f32 %v403, 2.0
  %v460 = vmul.f32 %v406, 2.0
  %v461 = vmul.f32 %v411, 2.0
  %v462 = vmul.f32 %v414, 2.0
  %v463 = vmul.f32 %v419, 2.0
  %v464 = vmul.f32 %v422, 2.0
  %v465 = vmul.f32 %v427, 2.0
  %v466 = vmul.f32 %v430, 2.0
  %v467 = vmul.f32 %v435, 2.0
  %v468 = vmul.f32 %v438, 2.0
  %v469 = vmul.f32 %v443, 2.0
  %v470 = vmul.f32 %v446, 2.0
  %v471 = vmul.f32 %v451, 2.0
  %v472 = vmul.f32 %v454, 2.0
  %v473 = vsub.f32 %v457, %v153
  %v474 = vsub.f32 %v458, %v156
  %v475 = vsub.f32 %v459, %v161
  %v476 = vsub.f32 %v460, %v164
  %v477 = vsub.f32 %v461, %v169
  %v478 = vsub.f32 %v462, %v172
  %v479 = vsub.f32 %v463, %v177
  %v480 = vsub.f32 %v464, %v180
  %v481 = vsub.f32 %v465, %v185
  %v482 = vsub.f32 %v466, %v188
  %v483 = vsub.f32 %v467, %v193
  %v484 = vsub.f32 %v468, %v196
  %v485 = vsub.f32 %v469, %v201
  %v486 = vsub.f32 %v470, %v204
  %v487 = vsub.f32 %v471, %v209
  %v488 = vsub.f32 %v472, %v212
  %v489 = vpack.c.bf16 %v474, %v473
  %v490 = vpack.c.bf16 %v476, %v475
  %v491 = vpack.c.bf16 %v478, %v477
  %v492 = vpack.c.bf16 %v480, %v479
  %v493 = vpack.c.bf16 %v482, %v481
  %v494 = vpack.c.bf16 %v484, %v483
  %v495 = vpack.c.bf16 %v486, %v485
  %v496 = vpack.c.bf16 %v488, %v487
  %497 = vmatprep.subr.bf16.mxu0 0
  %498 = vmatpush1.bf16.msra.mxu0 %v489
  %499 = vmatprep.subr.bf16.mxu0 0
  %500 = vmatpush1.bf16.msra.mxu0 %v490
  %501 = vmatprep.subr.bf16.mxu0 0
  %502 = vmatpush1.bf16.msra.mxu0 %v491
  %503 = vmatprep.subr.bf16.mxu0 0
  %504 = vmatpush1.bf16.msra.mxu0 %v492
  %505 = vmatprep.subr.bf16.mxu0 0
  %506 = vmatpush1.bf16.msra.mxu0 %v493
  %507 = vmatprep.subr.bf16.mxu0 0
  %508 = vmatpush1.bf16.msra.mxu0 %v494
  %509 = vmatprep.subr.bf16.mxu0 0
  %510 = vmatpush1.bf16.msra.mxu0 %v495
  %511 = vmatprep.subr.bf16.mxu0 0
  %512 = vmatpush1.bf16.msra.mxu0 %v496
  %513 = vmatprep.subr.bf16.mxu0 0
  %514 = vmatpush1.bf16.msra.mxu0 0
  %515 = vmatprep.subr.bf16.mxu0 0
  %516 = vmatpush1.bf16.msra.mxu0 0
  %517 = vmatprep.subr.bf16.mxu0 0
  %518 = vmatpush1.bf16.msra.mxu0 0
  %519 = vmatprep.subr.bf16.mxu0 0
  %520 = vmatpush1.bf16.msra.mxu0 0
  %521 = vmatprep.subr.bf16.mxu0 0
  %522 = vmatpush1.bf16.msra.mxu0 0
  %523 = vmatprep.subr.bf16.mxu0 0
  %524 = vmatpush1.bf16.msra.mxu0 0
  %525 = vmatprep.subr.bf16.mxu0 0
  %526 = vmatpush1.bf16.msra.mxu0 0
  %527 = vmatprep.subr.bf16.mxu0 0
  %528 = vmatpush1.bf16.msra.mxu0 0
  %529 = vmatprep.mubr.bf16.mxu0 0
  %530 = vmatmul.mubr.bf16.gmra.mrb[0].mxu0 %v102
  %v531 = vpop.f32.mrb[0].mxu0
  %v532 = vadd.f32 0.0, %v531
  %v533 = vpop.f32.mrb[0].mxu0
  %v534 = vpop.f32.mrb[0].mxu0
  %v535 = vadd.f32 0.0, %v534
  %v536 = vpop.f32.mrb[0].mxu0
  %537 = vmatprep.mubr.bf16.mxu0 0
  %538 = vmatmul.mubr.bf16.gmra.mrb[0].mxu0 %v103
  %v539 = vpop.f32.mrb[0].mxu0
  %v540 = vadd.f32 0.0, %v539
  %v541 = vpop.f32.mrb[0].mxu0
  %v542 = vpop.f32.mrb[0].mxu0
  %v543 = vadd.f32 0.0, %v542
  %v544 = vpop.f32.mrb[0].mxu0
  %545 = vmatprep.mubr.bf16.mxu0 0
  %546 = vmatmul.mubr.bf16.gmra.mrb[0].mxu0 %v104
  %v547 = vpop.f32.mrb[0].mxu0
  %v548 = vadd.f32 0.0, %v547
  %v549 = vpop.f32.mrb[0].mxu0
  %v550 = vpop.f32.mrb[0].mxu0
  %v551 = vadd.f32 0.0, %v550
  %v552 = vpop.f32.mrb[0].mxu0
  %553 = vmatprep.mubr.bf16.mxu0 0
  %554 = vmatmul.mubr.bf16.gmra.mrb[0].mxu0 %v105
  %v555 = vpop.f32.mrb[0].mxu0
  %v556 = vadd.f32 0.0, %v555
  %v557 = vpop.f32.mrb[0].mxu0
  %v558 = vpop.f32.mrb[0].mxu0
  %v559 = vadd.f32 0.0, %v558
  %v560 = vpop.f32.mrb[0].mxu0
  %561 = vmatprep.mubr.bf16.mxu0 0
  %562 = vmatmul.mubr.bf16.gmra.mrb[0].mxu0 %v106
  %v563 = vpop.f32.mrb[0].mxu0
  %v564 = vadd.f32 0.0, %v563
  %v565 = vpop.f32.mrb[0].mxu0
  %v566 = vpop.f32.mrb[0].mxu0
  %v567 = vadd.f32 0.0, %v566
  %v568 = vpop.f32.mrb[0].mxu0
  %569 = vmatprep.mubr.bf16.mxu0 0
  %570 = vmatmul.mubr.bf16.gmra.mrb[0].mxu0 %v107
  %v571 = vpop.f32.mrb[0].mxu0
  %v572 = vadd.f32 0.0, %v571
  %v573 = vpop.f32.mrb[0].mxu0
  %v574 = vpop.f32.mrb[0].mxu0
  %v575 = vadd.f32 0.0, %v574
  %v576 = vpop.f32.mrb[0].mxu0
  %577 = vmatprep.mubr.bf16.mxu0 0
  %578 = vmatmul.mubr.bf16.gmra.mrb[0].mxu0 %v108
  %v579 = vpop.f32.mrb[0].mxu0
  %v580 = vadd.f32 0.0, %v579
  %v581 = vpop.f32.mrb[0].mxu0
  %v582 = vpop.f32.mrb[0].mxu0
  %v583 = vadd.f32 0.0, %v582
  %v584 = vpop.f32.mrb[0].mxu0
  %585 = vmatprep.mubr.bf16.mxu0 0
  %586 = vmatmul.mubr.bf16.gmra.mrb[0].mxu0 %v109
  %v587 = vpop.f32.mrb[0].mxu0
  %v588 = vadd.f32 0.0, %v587
  %v589 = vpop.f32.mrb[0].mxu0
  %v590 = vpop.f32.mrb[0].mxu0
  %v591 = vadd.f32 0.0, %v590
  %v592 = vpop.f32.mrb[0].mxu0
  %593 = vdwg.mxu0
  %v594 = vmul.f32 %v532, 2.0
  %v595 = vmul.f32 %v535, 2.0
  %v596 = vmul.f32 %v540, 2.0
  %v597 = vmul.f32 %v543, 2.0
  %v598 = vmul.f32 %v548, 2.0
  %v599 = vmul.f32 %v551, 2.0
  %v600 = vmul.f32 %v556, 2.0
  %v601 = vmul.f32 %v559, 2.0
  %v602 = vmul.f32 %v564, 2.0
  %v603 = vmul.f32 %v567, 2.0
  %v604 = vmul.f32 %v572, 2.0
  %v605 = vmul.f32 %v575, 2.0
  %v606 = vmul.f32 %v580, 2.0
  %v607 = vmul.f32 %v583, 2.0
  %v608 = vmul.f32 %v588, 2.0
  %v609 = vmul.f32 %v591, 2.0
  %v610 = vsub.f32 %v594, %v336
  %v611 = vsub.f32 %v595, %v337
  %v612 = vsub.f32 %v596, %v338
  %v613 = vsub.f32 %v597, %v339
  %v614 = vsub.f32 %v598, %v340
  %v615 = vsub.f32 %v599, %v341
  %v616 = vsub.f32 %v600, %v342
  %v617 = vsub.f32 %v601, %v343
  %v618 = vsub.f32 %v602, %v344
  %v619 = vsub.f32 %v603, %v345
  %v620 = vsub.f32 %v604, %v346
  %v621 = vsub.f32 %v605, %v347
  %v622 = vsub.f32 %v606, %v348
  %v623 = vsub.f32 %v607, %v349
  %v624 = vsub.f32 %v608, %v350
  %v625 = vsub.f32 %v609, %v351
  %v626 = vpack.c.bf16 %v611, %v610
  %v627 = vpack.c.bf16 %v613, %v612
  %v628 = vpack.c.bf16 %v615, %v614
  %v629 = vpack.c.bf16 %v617, %v616
  %v630 = vpack.c.bf16 %v619, %v618
  %v631 = vpack.c.bf16 %v621, %v620
  %v632 = vpack.c.bf16 %v623, %v622
  %v633 = vpack.c.bf16 %v625, %v624
  %634 = vmatprep.subr.bf16.mxu0 0
  %635 = vmatpush1.bf16.msra.mxu0 %v626
  %636 = vmatprep.subr.bf16.mxu0 0
  %637 = vmatpush1.bf16.msra.mxu0 %v627
  %638 = vmatprep.subr.bf16.mxu0 0
  %639 = vmatpush1.bf16.msra.mxu0 %v628
  %640 = vmatprep.subr.bf16.mxu0 0
  %641 = vmatpush1.bf16.msra.mxu0 %v629
  %642 = vmatprep.subr.bf16.mxu0 0
  %643 = vmatpush1.bf16.msra.mxu0 %v630
  %644 = vmatprep.subr.bf16.mxu0 0
  %645 = vmatpush1.bf16.msra.mxu0 %v631
  %646 = vmatprep.subr.bf16.mxu0 0
  %647 = vmatpush1.bf16.msra.mxu0 %v632
  %648 = vmatprep.subr.bf16.mxu0 0
  %649 = vmatpush1.bf16.msra.mxu0 %v633
  %650 = vmatprep.subr.bf16.mxu0 0
  %651 = vmatpush1.bf16.msra.mxu0 0
  %652 = vmatprep.subr.bf16.mxu0 0
  %653 = vmatpush1.bf16.msra.mxu0 0
  %654 = vmatprep.subr.bf16.mxu0 0
  %655 = vmatpush1.bf16.msra.mxu0 0
  %656 = vmatprep.subr.bf16.mxu0 0
  %657 = vmatpush1.bf16.msra.mxu0 0
  %658 = vmatprep.subr.bf16.mxu0 0
  %659 = vmatpush1.bf16.msra.mxu0 0
  %660 = vmatprep.subr.bf16.mxu0 0
  %661 = vmatpush1.bf16.msra.mxu0 0
  %662 = vmatprep.subr.bf16.mxu0 0
  %663 = vmatpush1.bf16.msra.mxu0 0
  %664 = vmatprep.subr.bf16.mxu0 0
  %665 = vmatpush1.bf16.msra.mxu0 0
  %666 = vmatprep.mubr.bf16.mxu0 0
  %667 = vmatmul.mubr.bf16.gmra.mrb[0].mxu0 %v102
  %v668 = vpop.f32.mrb[0].mxu0
  %v669 = vadd.f32 0.0, %v668
  %v670 = vpop.f32.mrb[0].mxu0
  %v671 = vpop.f32.mrb[0].mxu0
  %v672 = vadd.f32 0.0, %v671
  %v673 = vpop.f32.mrb[0].mxu0
  %674 = vmatprep.mubr.bf16.mxu0 0
  %675 = vmatmul.mubr.bf16.gmra.mrb[0].mxu0 %v103
  %v676 = vpop.f32.mrb[0].mxu0
  %v677 = vadd.f32 0.0, %v676
  %v678 = vpop.f32.mrb[0].mxu0
  %v679 = vpop.f32.mrb[0].mxu0
  %v680 = vadd.f32 0.0, %v679
  %v681 = vpop.f32.mrb[0].mxu0
  %682 = vmatprep.mubr.bf16.mxu0 0
  %683 = vmatmul.mubr.bf16.gmra.mrb[0].mxu0 %v104
  %v684 = vpop.f32.mrb[0].mxu0
  %v685 = vadd.f32 0.0, %v684
  %v686 = vpop.f32.mrb[0].mxu0
  %v687 = vpop.f32.mrb[0].mxu0
  %v688 = vadd.f32 0.0, %v687
  %v689 = vpop.f32.mrb[0].mxu0
  %690 = vmatprep.mubr.bf16.mxu0 0
  %691 = vmatmul.mubr.bf16.gmra.mrb[0].mxu0 %v105
  %v692 = vpop.f32.mrb[0].mxu0
  %v693 = vadd.f32 0.0, %v692
  %v694 = vpop.f32.mrb[0].mxu0
  %v695 = vpop.f32.mrb[0].mxu0
  %v696 = vadd.f32 0.0, %v695
  %v697 = vpop.f32.mrb[0].mxu0
  %698 = vmatprep.mubr.bf16.mxu0 0
  %699 = vmatmul.mubr.bf16.gmra.mrb[0].mxu0 %v106
  %v700 = vpop.f32.mrb[0].mxu0
  %v701 = vadd.f32 0.0, %v700
  %v702 = vpop.f32.mrb[0].mxu0
  %v703 = vpop.f32.mrb[0].mxu0
  %v704 = vadd.f32 0.0, %v703
  %v705 = vpop.f32.mrb[0].mxu0
  %706 = vmatprep.mubr.bf16.mxu0 0
  %707 = vmatmul.mubr.bf16.gmra.mrb[0].mxu0 %v107
  %v708 = vpop.f32.mrb[0].mxu0
  %v709 = vadd.f32 0.0, %v708
  %v710 = vpop.f32.mrb[0].mxu0
  %v711 = vpop.f32.mrb[0].mxu0
  %v712 = vadd.f32 0.0, %v711
  %v713 = vpop.f32.mrb[0].mxu0
  %714 = vmatprep.mubr.bf16.mxu0 0
  %715 = vmatmul.mubr.bf16.gmra.mrb[0].mxu0 %v108
  %v716 = vpop.f32.mrb[0].mxu0
  %v717 = vadd.f32 0.0, %v716
  %v718 = vpop.f32.mrb[0].mxu0
  %v719 = vpop.f32.mrb[0].mxu0
  %v720 = vadd.f32 0.0, %v719
  %v721 = vpop.f32.mrb[0].mxu0
  %722 = vmatprep.mubr.bf16.mxu0 0
  %723 = vmatmul.mubr.bf16.gmra.mrb[0].mxu0 %v109
  %v724 = vpop.f32.mrb[0].mxu0
  %v725 = vadd.f32 0.0, %v724
  %v726 = vpop.f32.mrb[0].mxu0
  %v727 = vpop.f32.mrb[0].mxu0
  %v728 = vadd.f32 0.0, %v727
  %v729 = vpop.f32.mrb[0].mxu0
  %730 = vdwg.mxu0
  %v731 = vmul.f32 %v669, 2.0
  %v732 = vmul.f32 %v672, 2.0
  %v733 = vmul.f32 %v677, 2.0
  %v734 = vmul.f32 %v680, 2.0
  %v735 = vmul.f32 %v685, 2.0
  %v736 = vmul.f32 %v688, 2.0
  %v737 = vmul.f32 %v693, 2.0
  %v738 = vmul.f32 %v696, 2.0
  %v739 = vmul.f32 %v701, 2.0
  %v740 = vmul.f32 %v704, 2.0
  %v741 = vmul.f32 %v709, 2.0
  %v742 = vmul.f32 %v712, 2.0
  %v743 = vmul.f32 %v717, 2.0
  %v744 = vmul.f32 %v720, 2.0
  %v745 = vmul.f32 %v725, 2.0
  %v746 = vmul.f32 %v728, 2.0
  %v747 = vsub.f32 %v731, %v473
  %v748 = vsub.f32 %v732, %v474
  %v749 = vsub.f32 %v733, %v475
  %v750 = vsub.f32 %v734, %v476
  %v751 = vsub.f32 %v735, %v477
  %v752 = vsub.f32 %v736, %v478
  %v753 = vsub.f32 %v737, %v479
  %v754 = vsub.f32 %v738, %v480
  %v755 = vsub.f32 %v739, %v481
  %v756 = vsub.f32 %v740, %v482
  %v757 = vsub.f32 %v741, %v483
  %v758 = vsub.f32 %v742, %v484
  %v759 = vsub.f32 %v743, %v485
  %v760 = vsub.f32 %v744, %v486
  %v761 = vsub.f32 %v745, %v487
  %v762 = vsub.f32 %v746, %v488
  %v763 = vpack.c.bf16 %v748, %v747
  %v764 = vpack.c.bf16 %v750, %v749
  %v765 = vpack.c.bf16 %v752, %v751
  %v766 = vpack.c.bf16 %v754, %v753
  %v767 = vpack.c.bf16 %v756, %v755
  %v768 = vpack.c.bf16 %v758, %v757
  %v769 = vpack.c.bf16 %v760, %v759
  %v770 = vpack.c.bf16 %v762, %v761
  %771 = vmatprep.subr.bf16.mxu0 0
  %772 = vmatpush1.bf16.msra.mxu0 %v763
  %773 = vmatprep.subr.bf16.mxu0 0
  %774 = vmatpush1.bf16.msra.mxu0 %v764
  %775 = vmatprep.subr.bf16.mxu0 0
  %776 = vmatpush1.bf16.msra.mxu0 %v765
  %777 = vmatprep.subr.bf16.mxu0 0
  %778 = vmatpush1.bf16.msra.mxu0 %v766
  %779 = vmatprep.subr.bf16.mxu0 0
  %780 = vmatpush1.bf16.msra.mxu0 %v767
  %781 = vmatprep.subr.bf16.mxu0 0
  %782 = vmatpush1.bf16.msra.mxu0 %v768
  %783 = vmatprep.subr.bf16.mxu0 0
  %784 = vmatpush1.bf16.msra.mxu0 %v769
  %785 = vmatprep.subr.bf16.mxu0 0
  %786 = vmatpush1.bf16.msra.mxu0 %v770
  %787 = vmatprep.subr.bf16.mxu0 0
  %788 = vmatpush1.bf16.msra.mxu0 0
  %789 = vmatprep.subr.bf16.mxu0 0
  %790 = vmatpush1.bf16.msra.mxu0 0
  %791 = vmatprep.subr.bf16.mxu0 0
  %792 = vmatpush1.bf16.msra.mxu0 0
  %793 = vmatprep.subr.bf16.mxu0 0
  %794 = vmatpush1.bf16.msra.mxu0 0
  %795 = vmatprep.subr.bf16.mxu0 0
  %796 = vmatpush1.bf16.msra.mxu0 0
  %797 = vmatprep.subr.bf16.mxu0 0
  %798 = vmatpush1.bf16.msra.mxu0 0
  %799 = vmatprep.subr.bf16.mxu0 0
  %800 = vmatpush1.bf16.msra.mxu0 0
  %801 = vmatprep.subr.bf16.mxu0 0
  %802 = vmatpush1.bf16.msra.mxu0 0
  %803 = vmatprep.mubr.bf16.mxu0 0
  %804 = vmatmul.mubr.bf16.gmra.mrb[0].mxu0 %v102
  %v805 = vpop.f32.mrb[0].mxu0
  %v806 = vadd.f32 0.0, %v805
  %v807 = vpop.f32.mrb[0].mxu0
  %v808 = vpop.f32.mrb[0].mxu0
  %v809 = vadd.f32 0.0, %v808
  %v810 = vpop.f32.mrb[0].mxu0
  %811 = vmatprep.mubr.bf16.mxu0 0
  %812 = vmatmul.mubr.bf16.gmra.mrb[0].mxu0 %v103
  %v813 = vpop.f32.mrb[0].mxu0
  %v814 = vadd.f32 0.0, %v813
  %v815 = vpop.f32.mrb[0].mxu0
  %v816 = vpop.f32.mrb[0].mxu0
  %v817 = vadd.f32 0.0, %v816
  %v818 = vpop.f32.mrb[0].mxu0
  %819 = vmatprep.mubr.bf16.mxu0 0
  %820 = vmatmul.mubr.bf16.gmra.mrb[0].mxu0 %v104
  %v821 = vpop.f32.mrb[0].mxu0
  %v822 = vadd.f32 0.0, %v821
  %v823 = vpop.f32.mrb[0].mxu0
  %v824 = vpop.f32.mrb[0].mxu0
  %v825 = vadd.f32 0.0, %v824
  %v826 = vpop.f32.mrb[0].mxu0
  %827 = vmatprep.mubr.bf16.mxu0 0
  %828 = vmatmul.mubr.bf16.gmra.mrb[0].mxu0 %v105
  %v829 = vpop.f32.mrb[0].mxu0
  %v830 = vadd.f32 0.0, %v829
  %v831 = vpop.f32.mrb[0].mxu0
  %v832 = vpop.f32.mrb[0].mxu0
  %v833 = vadd.f32 0.0, %v832
  %v834 = vpop.f32.mrb[0].mxu0
  %835 = vmatprep.mubr.bf16.mxu0 0
  %836 = vmatmul.mubr.bf16.gmra.mrb[0].mxu0 %v106
  %v837 = vpop.f32.mrb[0].mxu0
  %v838 = vadd.f32 0.0, %v837
  %v839 = vpop.f32.mrb[0].mxu0
  %v840 = vpop.f32.mrb[0].mxu0
  %v841 = vadd.f32 0.0, %v840
  %v842 = vpop.f32.mrb[0].mxu0
  %843 = vmatprep.mubr.bf16.mxu0 0
  %844 = vmatmul.mubr.bf16.gmra.mrb[0].mxu0 %v107
  %v845 = vpop.f32.mrb[0].mxu0
  %v846 = vadd.f32 0.0, %v845
  %v847 = vpop.f32.mrb[0].mxu0
  %v848 = vpop.f32.mrb[0].mxu0
  %v849 = vadd.f32 0.0, %v848
  %v850 = vpop.f32.mrb[0].mxu0
  %851 = vmatprep.mubr.bf16.mxu0 0
  %852 = vmatmul.mubr.bf16.gmra.mrb[0].mxu0 %v108
  %v853 = vpop.f32.mrb[0].mxu0
  %v854 = vadd.f32 0.0, %v853
  %v855 = vpop.f32.mrb[0].mxu0
  %v856 = vpop.f32.mrb[0].mxu0
  %v857 = vadd.f32 0.0, %v856
  %v858 = vpop.f32.mrb[0].mxu0
  %859 = vmatprep.mubr.bf16.mxu0 0
  %860 = vmatmul.mubr.bf16.gmra.mrb[0].mxu0 %v109
  %v861 = vpop.f32.mrb[0].mxu0
  %v862 = vadd.f32 0.0, %v861
  %v863 = vpop.f32.mrb[0].mxu0
  %v864 = vpop.f32.mrb[0].mxu0
  %v865 = vadd.f32 0.0, %v864
  %v866 = vpop.f32.mrb[0].mxu0
  %867 = vdwg.mxu0
  %v868 = vmul.f32 %v806, 2.0
  %v869 = vmul.f32 %v809, 2.0
  %v870 = vmul.f32 %v814, 2.0
  %v871 = vmul.f32 %v817, 2.0
  %v872 = vmul.f32 %v822, 2.0
  %v873 = vmul.f32 %v825, 2.0
  %v874 = vmul.f32 %v830, 2.0
  %v875 = vmul.f32 %v833, 2.0
  %v876 = vmul.f32 %v838, 2.0
  %v877 = vmul.f32 %v841, 2.0
  %v878 = vmul.f32 %v846, 2.0
  %v879 = vmul.f32 %v849, 2.0
  %v880 = vmul.f32 %v854, 2.0
  %v881 = vmul.f32 %v857, 2.0
  %v882 = vmul.f32 %v862, 2.0
  %v883 = vmul.f32 %v865, 2.0
  %v884 = vsub.f32 %v868, %v610
  %v885 = vsub.f32 %v869, %v611
  %v886 = vsub.f32 %v870, %v612
  %v887 = vsub.f32 %v871, %v613
  %v888 = vsub.f32 %v872, %v614
  %v889 = vsub.f32 %v873, %v615
  %v890 = vsub.f32 %v874, %v616
  %v891 = vsub.f32 %v875, %v617
  %v892 = vsub.f32 %v876, %v618
  %v893 = vsub.f32 %v877, %v619
  %v894 = vsub.f32 %v878, %v620
  %v895 = vsub.f32 %v879, %v621
  %v896 = vsub.f32 %v880, %v622
  %v897 = vsub.f32 %v881, %v623
  %v898 = vsub.f32 %v882, %v624
  %v899 = vsub.f32 %v883, %v625
  %v900 = vpack.c.bf16 %v885, %v884
  %v901 = vpack.c.bf16 %v887, %v886
  %v902 = vpack.c.bf16 %v889, %v888
  %v903 = vpack.c.bf16 %v891, %v890
  %v904 = vpack.c.bf16 %v893, %v892
  %v905 = vpack.c.bf16 %v895, %v894
  %v906 = vpack.c.bf16 %v897, %v896
  %v907 = vpack.c.bf16 %v899, %v898
  %908 = vmatprep.subr.bf16.mxu0 0
  %909 = vmatpush1.bf16.msra.mxu0 %v900
  %910 = vmatprep.subr.bf16.mxu0 0
  %911 = vmatpush1.bf16.msra.mxu0 %v901
  %912 = vmatprep.subr.bf16.mxu0 0
  %913 = vmatpush1.bf16.msra.mxu0 %v902
  %914 = vmatprep.subr.bf16.mxu0 0
  %915 = vmatpush1.bf16.msra.mxu0 %v903
  %916 = vmatprep.subr.bf16.mxu0 0
  %917 = vmatpush1.bf16.msra.mxu0 %v904
  %918 = vmatprep.subr.bf16.mxu0 0
  %919 = vmatpush1.bf16.msra.mxu0 %v905
  %920 = vmatprep.subr.bf16.mxu0 0
  %921 = vmatpush1.bf16.msra.mxu0 %v906
  %922 = vmatprep.subr.bf16.mxu0 0
  %923 = vmatpush1.bf16.msra.mxu0 %v907
  %924 = vmatprep.subr.bf16.mxu0 0
  %925 = vmatpush1.bf16.msra.mxu0 0
  %926 = vmatprep.subr.bf16.mxu0 0
  %927 = vmatpush1.bf16.msra.mxu0 0
  %928 = vmatprep.subr.bf16.mxu0 0
  %929 = vmatpush1.bf16.msra.mxu0 0
  %930 = vmatprep.subr.bf16.mxu0 0
  %931 = vmatpush1.bf16.msra.mxu0 0
  %932 = vmatprep.subr.bf16.mxu0 0
  %933 = vmatpush1.bf16.msra.mxu0 0
  %934 = vmatprep.subr.bf16.mxu0 0
  %935 = vmatpush1.bf16.msra.mxu0 0
  %936 = vmatprep.subr.bf16.mxu0 0
  %937 = vmatpush1.bf16.msra.mxu0 0
  %938 = vmatprep.subr.bf16.mxu0 0
  %939 = vmatpush1.bf16.msra.mxu0 0
  %940 = vmatprep.mubr.bf16.mxu0 0
  %941 = vmatmul.mubr.bf16.gmra.mrb[0].mxu0 %v102
  %v942 = vpop.f32.mrb[0].mxu0
  %v943 = vadd.f32 0.0, %v942
  %v944 = vpop.f32.mrb[0].mxu0
  %v945 = vpop.f32.mrb[0].mxu0
  %v946 = vadd.f32 0.0, %v945
  %v947 = vpop.f32.mrb[0].mxu0
  %948 = vmatprep.mubr.bf16.mxu0 0
  %949 = vmatmul.mubr.bf16.gmra.mrb[0].mxu0 %v103
  %v950 = vpop.f32.mrb[0].mxu0
  %v951 = vadd.f32 0.0, %v950
  %v952 = vpop.f32.mrb[0].mxu0
  %v953 = vpop.f32.mrb[0].mxu0
  %v954 = vadd.f32 0.0, %v953
  %v955 = vpop.f32.mrb[0].mxu0
  %956 = vmatprep.mubr.bf16.mxu0 0
  %957 = vmatmul.mubr.bf16.gmra.mrb[0].mxu0 %v104
  %v958 = vpop.f32.mrb[0].mxu0
  %v959 = vadd.f32 0.0, %v958
  %v960 = vpop.f32.mrb[0].mxu0
  %v961 = vpop.f32.mrb[0].mxu0
  %v962 = vadd.f32 0.0, %v961
  %v963 = vpop.f32.mrb[0].mxu0
  %964 = vmatprep.mubr.bf16.mxu0 0
  %965 = vmatmul.mubr.bf16.gmra.mrb[0].mxu0 %v105
  %v966 = vpop.f32.mrb[0].mxu0
  %v967 = vadd.f32 0.0, %v966
  %v968 = vpop.f32.mrb[0].mxu0
  %v969 = vpop.f32.mrb[0].mxu0
  %v970 = vadd.f32 0.0, %v969
  %v971 = vpop.f32.mrb[0].mxu0
  %972 = vmatprep.mubr.bf16.mxu0 0
  %973 = vmatmul.mubr.bf16.gmra.mrb[0].mxu0 %v106
  %v974 = vpop.f32.mrb[0].mxu0
  %v975 = vadd.f32 0.0, %v974
  %v976 = vpop.f32.mrb[0].mxu0
  %v977 = vpop.f32.mrb[0].mxu0
  %v978 = vadd.f32 0.0, %v977
  %v979 = vpop.f32.mrb[0].mxu0
  %980 = vmatprep.mubr.bf16.mxu0 0
  %981 = vmatmul.mubr.bf16.gmra.mrb[0].mxu0 %v107
  %v982 = vpop.f32.mrb[0].mxu0
  %v983 = vadd.f32 0.0, %v982
  %v984 = vpop.f32.mrb[0].mxu0
  %v985 = vpop.f32.mrb[0].mxu0
  %v986 = vadd.f32 0.0, %v985
  %v987 = vpop.f32.mrb[0].mxu0
  %988 = vmatprep.mubr.bf16.mxu0 0
  %989 = vmatmul.mubr.bf16.gmra.mrb[0].mxu0 %v108
  %v990 = vpop.f32.mrb[0].mxu0
  %v991 = vadd.f32 0.0, %v990
  %v992 = vpop.f32.mrb[0].mxu0
  %v993 = vpop.f32.mrb[0].mxu0
  %v994 = vadd.f32 0.0, %v993
  %v995 = vpop.f32.mrb[0].mxu0
  %996 = vmatprep.mubr.bf16.mxu0 0
  %997 = vmatmul.mubr.bf16.gmra.mrb[0].mxu0 %v109
  %v998 = vpop.f32.mrb[0].mxu0
  %v999 = vadd.f32 0.0, %v998
  %v1000 = vpop.f32.mrb[0].mxu0
  %v1001 = vpop.f32.mrb[0].mxu0
  %v1002 = vadd.f32 0.0, %v1001
  %v1003 = vpop.f32.mrb[0].mxu0
  %1004 = vdwg.mxu0
  %v1005 = vmul.f32 %v943, 2.0
  %v1006 = vmul.f32 %v946, 2.0
  %v1007 = vmul.f32 %v951, 2.0
  %v1008 = vmul.f32 %v954, 2.0
  %v1009 = vmul.f32 %v959, 2.0
  %v1010 = vmul.f32 %v962, 2.0
  %v1011 = vmul.f32 %v967, 2.0
  %v1012 = vmul.f32 %v970, 2.0
  %v1013 = vmul.f32 %v975, 2.0
  %v1014 = vmul.f32 %v978, 2.0
  %v1015 = vmul.f32 %v983, 2.0
  %v1016 = vmul.f32 %v986, 2.0
  %v1017 = vmul.f32 %v991, 2.0
  %v1018 = vmul.f32 %v994, 2.0
  %v1019 = vmul.f32 %v999, 2.0
  %v1020 = vmul.f32 %v1002, 2.0
  %v1021 = vsub.f32 %v1005, %v747
  %v1022 = vsub.f32 %v1006, %v748
  %v1023 = vsub.f32 %v1007, %v749
  %v1024 = vsub.f32 %v1008, %v750
  %v1025 = vsub.f32 %v1009, %v751
  %v1026 = vsub.f32 %v1010, %v752
  %v1027 = vsub.f32 %v1011, %v753
  %v1028 = vsub.f32 %v1012, %v754
  %v1029 = vsub.f32 %v1013, %v755
  %v1030 = vsub.f32 %v1014, %v756
  %v1031 = vsub.f32 %v1015, %v757
  %v1032 = vsub.f32 %v1016, %v758
  %v1033 = vsub.f32 %v1017, %v759
  %v1034 = vsub.f32 %v1018, %v760
  %v1035 = vsub.f32 %v1019, %v761
  %v1036 = vsub.f32 %v1020, %v762
  %1053 = vrot.lane.b32.xlu0 %v153, 16
  %v1054 = vpop.permute.xlu0 %1053
  %1055 = vrot.lane.b32.xlu0 %v156, 16
  %v1056 = vpop.permute.xlu0 %1055
  %1057 = vrot.lane.b32.xlu0 %v161, 16
  %v1058 = vpop.permute.xlu0 %1057
  %1059 = vrot.lane.b32.xlu0 %v164, 16
  %v1060 = vpop.permute.xlu0 %1059
  %1061 = vrot.lane.b32.xlu0 %v169, 16
  %v1062 = vpop.permute.xlu0 %1061
  %1063 = vrot.lane.b32.xlu0 %v172, 16
  %v1064 = vpop.permute.xlu0 %1063
  %1065 = vrot.lane.b32.xlu0 %v177, 16
  %v1066 = vpop.permute.xlu0 %1065
  %1067 = vrot.lane.b32.xlu0 %v180, 16
  %v1068 = vpop.permute.xlu0 %1067
  %1069 = vrot.lane.b32.xlu0 %v185, 16
  %v1070 = vpop.permute.xlu0 %1069
  %1071 = vrot.lane.b32.xlu0 %v188, 16
  %v1072 = vpop.permute.xlu0 %1071
  %1073 = vrot.lane.b32.xlu0 %v193, 16
  %v1074 = vpop.permute.xlu0 %1073
  %1075 = vrot.lane.b32.xlu0 %v196, 16
  %v1076 = vpop.permute.xlu0 %1075
  %1077 = vrot.lane.b32.xlu0 %v201, 16
  %v1078 = vpop.permute.xlu0 %1077
  %1079 = vrot.lane.b32.xlu0 %v204, 16
  %v1080 = vpop.permute.xlu0 %1079
  %1081 = vrot.lane.b32.xlu0 %v209, 16
  %v1082 = vpop.permute.xlu0 %1081
  %1083 = vrot.lane.b32.xlu0 %v212, 16
  %v1084 = vpop.permute.xlu0 %1083
  %1117 = vrot.lane.b32.xlu0 %v336, 32
  %v1118 = vpop.permute.xlu0 %1117
  %1119 = vrot.lane.b32.xlu0 %v337, 32
  %v1120 = vpop.permute.xlu0 %1119
  %1121 = vrot.lane.b32.xlu0 %v338, 32
  %v1122 = vpop.permute.xlu0 %1121
  %1123 = vrot.lane.b32.xlu0 %v339, 32
  %v1124 = vpop.permute.xlu0 %1123
  %1125 = vrot.lane.b32.xlu0 %v340, 32
  %v1126 = vpop.permute.xlu0 %1125
  %1127 = vrot.lane.b32.xlu0 %v341, 32
  %v1128 = vpop.permute.xlu0 %1127
  %1129 = vrot.lane.b32.xlu0 %v342, 32
  %v1130 = vpop.permute.xlu0 %1129
  %1131 = vrot.lane.b32.xlu0 %v343, 32
  %v1132 = vpop.permute.xlu0 %1131
  %1133 = vrot.lane.b32.xlu0 %v344, 32
  %v1134 = vpop.permute.xlu0 %1133
  %1135 = vrot.lane.b32.xlu0 %v345, 32
  %v1136 = vpop.permute.xlu0 %1135
  %1137 = vrot.lane.b32.xlu0 %v346, 32
  %v1138 = vpop.permute.xlu0 %1137
  %1139 = vrot.lane.b32.xlu0 %v347, 32
  %v1140 = vpop.permute.xlu0 %1139
  %1141 = vrot.lane.b32.xlu0 %v348, 32
  %v1142 = vpop.permute.xlu0 %1141
  %1143 = vrot.lane.b32.xlu0 %v349, 32
  %v1144 = vpop.permute.xlu0 %1143
  %1145 = vrot.lane.b32.xlu0 %v350, 32
  %v1146 = vpop.permute.xlu0 %1145
  %1147 = vrot.lane.b32.xlu0 %v351, 32
  %v1148 = vpop.permute.xlu0 %1147
  %1181 = vrot.lane.b32.xlu0 %v473, 48
  %v1182 = vpop.permute.xlu0 %1181
  %1183 = vrot.lane.b32.xlu0 %v474, 48
  %v1184 = vpop.permute.xlu0 %1183
  %1185 = vrot.lane.b32.xlu0 %v475, 48
  %v1186 = vpop.permute.xlu0 %1185
  %1187 = vrot.lane.b32.xlu0 %v476, 48
  %v1188 = vpop.permute.xlu0 %1187
  %1189 = vrot.lane.b32.xlu0 %v477, 48
  %v1190 = vpop.permute.xlu0 %1189
  %1191 = vrot.lane.b32.xlu0 %v478, 48
  %v1192 = vpop.permute.xlu0 %1191
  %1193 = vrot.lane.b32.xlu0 %v479, 48
  %v1194 = vpop.permute.xlu0 %1193
  %1195 = vrot.lane.b32.xlu0 %v480, 48
  %v1196 = vpop.permute.xlu0 %1195
  %1197 = vrot.lane.b32.xlu0 %v481, 48
  %v1198 = vpop.permute.xlu0 %1197
  %1199 = vrot.lane.b32.xlu0 %v482, 48
  %v1200 = vpop.permute.xlu0 %1199
  %1201 = vrot.lane.b32.xlu0 %v483, 48
  %v1202 = vpop.permute.xlu0 %1201
  %1203 = vrot.lane.b32.xlu0 %v484, 48
  %v1204 = vpop.permute.xlu0 %1203
  %1205 = vrot.lane.b32.xlu0 %v485, 48
  %v1206 = vpop.permute.xlu0 %1205
  %1207 = vrot.lane.b32.xlu0 %v486, 48
  %v1208 = vpop.permute.xlu0 %1207
  %1209 = vrot.lane.b32.xlu0 %v487, 48
  %v1210 = vpop.permute.xlu0 %1209
  %1211 = vrot.lane.b32.xlu0 %v488, 48
  %v1212 = vpop.permute.xlu0 %1211
  %1245 = vrot.lane.b32.xlu0 %v610, 64
  %v1246 = vpop.permute.xlu0 %1245
  %1247 = vrot.lane.b32.xlu0 %v611, 64
  %v1248 = vpop.permute.xlu0 %1247
  %1249 = vrot.lane.b32.xlu0 %v612, 64
  %v1250 = vpop.permute.xlu0 %1249
  %1251 = vrot.lane.b32.xlu0 %v613, 64
  %v1252 = vpop.permute.xlu0 %1251
  %1253 = vrot.lane.b32.xlu0 %v614, 64
  %v1254 = vpop.permute.xlu0 %1253
  %1255 = vrot.lane.b32.xlu0 %v615, 64
  %v1256 = vpop.permute.xlu0 %1255
  %1257 = vrot.lane.b32.xlu0 %v616, 64
  %v1258 = vpop.permute.xlu0 %1257
  %1259 = vrot.lane.b32.xlu0 %v617, 64
  %v1260 = vpop.permute.xlu0 %1259
  %1261 = vrot.lane.b32.xlu0 %v618, 64
  %v1262 = vpop.permute.xlu0 %1261
  %1263 = vrot.lane.b32.xlu0 %v619, 64
  %v1264 = vpop.permute.xlu0 %1263
  %1265 = vrot.lane.b32.xlu0 %v620, 64
  %v1266 = vpop.permute.xlu0 %1265
  %1267 = vrot.lane.b32.xlu0 %v621, 64
  %v1268 = vpop.permute.xlu0 %1267
  %1269 = vrot.lane.b32.xlu0 %v622, 64
  %v1270 = vpop.permute.xlu0 %1269
  %1271 = vrot.lane.b32.xlu0 %v623, 64
  %v1272 = vpop.permute.xlu0 %1271
  %1273 = vrot.lane.b32.xlu0 %v624, 64
  %v1274 = vpop.permute.xlu0 %1273
  %1275 = vrot.lane.b32.xlu0 %v625, 64
  %v1276 = vpop.permute.xlu0 %1275
  %1309 = vrot.lane.b32.xlu0 %v747, 80
  %v1310 = vpop.permute.xlu0 %1309
  %1311 = vrot.lane.b32.xlu0 %v748, 80
  %v1312 = vpop.permute.xlu0 %1311
  %1313 = vrot.lane.b32.xlu0 %v749, 80
  %v1314 = vpop.permute.xlu0 %1313
  %1315 = vrot.lane.b32.xlu0 %v750, 80
  %v1316 = vpop.permute.xlu0 %1315
  %1317 = vrot.lane.b32.xlu0 %v751, 80
  %v1318 = vpop.permute.xlu0 %1317
  %1319 = vrot.lane.b32.xlu0 %v752, 80
  %v1320 = vpop.permute.xlu0 %1319
  %1321 = vrot.lane.b32.xlu0 %v753, 80
  %v1322 = vpop.permute.xlu0 %1321
  %1323 = vrot.lane.b32.xlu0 %v754, 80
  %v1324 = vpop.permute.xlu0 %1323
  %1325 = vrot.lane.b32.xlu0 %v755, 80
  %v1326 = vpop.permute.xlu0 %1325
  %1327 = vrot.lane.b32.xlu0 %v756, 80
  %v1328 = vpop.permute.xlu0 %1327
  %1329 = vrot.lane.b32.xlu0 %v757, 80
  %v1330 = vpop.permute.xlu0 %1329
  %1331 = vrot.lane.b32.xlu0 %v758, 80
  %v1332 = vpop.permute.xlu0 %1331
  %1333 = vrot.lane.b32.xlu0 %v759, 80
  %v1334 = vpop.permute.xlu0 %1333
  %1335 = vrot.lane.b32.xlu0 %v760, 80
  %v1336 = vpop.permute.xlu0 %1335
  %1337 = vrot.lane.b32.xlu0 %v761, 80
  %v1338 = vpop.permute.xlu0 %1337
  %1339 = vrot.lane.b32.xlu0 %v762, 80
  %v1340 = vpop.permute.xlu0 %1339
  %1373 = vrot.lane.b32.xlu0 %v884, 96
  %v1374 = vpop.permute.xlu0 %1373
  %1375 = vrot.lane.b32.xlu0 %v885, 96
  %v1376 = vpop.permute.xlu0 %1375
  %1377 = vrot.lane.b32.xlu0 %v886, 96
  %v1378 = vpop.permute.xlu0 %1377
  %1379 = vrot.lane.b32.xlu0 %v887, 96
  %v1380 = vpop.permute.xlu0 %1379
  %1381 = vrot.lane.b32.xlu0 %v888, 96
  %v1382 = vpop.permute.xlu0 %1381
  %1383 = vrot.lane.b32.xlu0 %v889, 96
  %v1384 = vpop.permute.xlu0 %1383
  %1385 = vrot.lane.b32.xlu0 %v890, 96
  %v1386 = vpop.permute.xlu0 %1385
  %1387 = vrot.lane.b32.xlu0 %v891, 96
  %v1388 = vpop.permute.xlu0 %1387
  %1389 = vrot.lane.b32.xlu0 %v892, 96
  %v1390 = vpop.permute.xlu0 %1389
  %1391 = vrot.lane.b32.xlu0 %v893, 96
  %v1392 = vpop.permute.xlu0 %1391
  %1393 = vrot.lane.b32.xlu0 %v894, 96
  %v1394 = vpop.permute.xlu0 %1393
  %1395 = vrot.lane.b32.xlu0 %v895, 96
  %v1396 = vpop.permute.xlu0 %1395
  %1397 = vrot.lane.b32.xlu0 %v896, 96
  %v1398 = vpop.permute.xlu0 %1397
  %1399 = vrot.lane.b32.xlu0 %v897, 96
  %v1400 = vpop.permute.xlu0 %1399
  %1401 = vrot.lane.b32.xlu0 %v898, 96
  %v1402 = vpop.permute.xlu0 %1401
  %1403 = vrot.lane.b32.xlu0 %v899, 96
  %v1404 = vpop.permute.xlu0 %1403
  %1437 = vrot.lane.b32.xlu0 %v1021, 112
  %v1438 = vpop.permute.xlu0 %1437
  %1439 = vrot.lane.b32.xlu0 %v1022, 112
  %v1440 = vpop.permute.xlu0 %1439
  %1441 = vrot.lane.b32.xlu0 %v1023, 112
  %v1442 = vpop.permute.xlu0 %1441
  %1443 = vrot.lane.b32.xlu0 %v1024, 112
  %v1444 = vpop.permute.xlu0 %1443
  %1445 = vrot.lane.b32.xlu0 %v1025, 112
  %v1446 = vpop.permute.xlu0 %1445
  %1447 = vrot.lane.b32.xlu0 %v1026, 112
  %v1448 = vpop.permute.xlu0 %1447
  %1449 = vrot.lane.b32.xlu0 %v1027, 112
  %v1450 = vpop.permute.xlu0 %1449
  %1451 = vrot.lane.b32.xlu0 %v1028, 112
  %v1452 = vpop.permute.xlu0 %1451
  %1453 = vrot.lane.b32.xlu0 %v1029, 112
  %v1454 = vpop.permute.xlu0 %1453
  %1455 = vrot.lane.b32.xlu0 %v1030, 112
  %v1456 = vpop.permute.xlu0 %1455
  %1457 = vrot.lane.b32.xlu0 %v1031, 112
  %v1458 = vpop.permute.xlu0 %1457
  %1459 = vrot.lane.b32.xlu0 %v1032, 112
  %v1460 = vpop.permute.xlu0 %1459
  %1461 = vrot.lane.b32.xlu0 %v1033, 112
  %v1462 = vpop.permute.xlu0 %1461
  %1463 = vrot.lane.b32.xlu0 %v1034, 112
  %v1464 = vpop.permute.xlu0 %1463
  %1465 = vrot.lane.b32.xlu0 %v1035, 112
  %v1466 = vpop.permute.xlu0 %1465
  %1467 = vrot.lane.b32.xlu0 %v1036, 112
  %v1468 = vpop.permute.xlu0 %1467
  %vm1485 = vcmask 130048
  %v1486 = vsel %vm1485, %v46, %v1054
  %v1487 = vsel %vm1485, %v47, %v1056
  %v1488 = vsel %vm1485, %v48, %v1058
  %v1489 = vsel %vm1485, %v49, %v1060
  %v1490 = vsel %vm1485, %v50, %v1062
  %v1491 = vsel %vm1485, %v51, %v1064
  %v1492 = vsel %vm1485, %v52, %v1066
  %v1493 = vsel %vm1485, %v53, %v1068
  %v1494 = vsel %vm1485, %v54, %v1070
  %v1495 = vsel %vm1485, %v55, %v1072
  %v1496 = vsel %vm1485, %v56, %v1074
  %v1497 = vsel %vm1485, %v57, %v1076
  %v1498 = vsel %vm1485, %v58, %v1078
  %v1499 = vsel %vm1485, %v59, %v1080
  %v1500 = vsel %vm1485, %v60, %v1082
  %v1501 = vsel %vm1485, %v61, %v1084
  %vm1502 = vcmask 261120
  %v1503 = vsel %vm1502, %v1486, %v1118
  %v1504 = vsel %vm1502, %v1487, %v1120
  %v1505 = vsel %vm1502, %v1488, %v1122
  %v1506 = vsel %vm1502, %v1489, %v1124
  %v1507 = vsel %vm1502, %v1490, %v1126
  %v1508 = vsel %vm1502, %v1491, %v1128
  %v1509 = vsel %vm1502, %v1492, %v1130
  %v1510 = vsel %vm1502, %v1493, %v1132
  %v1511 = vsel %vm1502, %v1494, %v1134
  %v1512 = vsel %vm1502, %v1495, %v1136
  %v1513 = vsel %vm1502, %v1496, %v1138
  %v1514 = vsel %vm1502, %v1497, %v1140
  %v1515 = vsel %vm1502, %v1498, %v1142
  %v1516 = vsel %vm1502, %v1499, %v1144
  %v1517 = vsel %vm1502, %v1500, %v1146
  %v1518 = vsel %vm1502, %v1501, %v1148
  %vm1519 = vcmask 392192
  %v1520 = vsel %vm1519, %v1503, %v1182
  %v1521 = vsel %vm1519, %v1504, %v1184
  %v1522 = vsel %vm1519, %v1505, %v1186
  %v1523 = vsel %vm1519, %v1506, %v1188
  %v1524 = vsel %vm1519, %v1507, %v1190
  %v1525 = vsel %vm1519, %v1508, %v1192
  %v1526 = vsel %vm1519, %v1509, %v1194
  %v1527 = vsel %vm1519, %v1510, %v1196
  %v1528 = vsel %vm1519, %v1511, %v1198
  %v1529 = vsel %vm1519, %v1512, %v1200
  %v1530 = vsel %vm1519, %v1513, %v1202
  %v1531 = vsel %vm1519, %v1514, %v1204
  %v1532 = vsel %vm1519, %v1515, %v1206
  %v1533 = vsel %vm1519, %v1516, %v1208
  %v1534 = vsel %vm1519, %v1517, %v1210
  %v1535 = vsel %vm1519, %v1518, %v1212
  %vm1536 = vcmask 523264
  %v1537 = vsel %vm1536, %v1520, %v1246
  %v1538 = vsel %vm1536, %v1521, %v1248
  %v1539 = vsel %vm1536, %v1522, %v1250
  %v1540 = vsel %vm1536, %v1523, %v1252
  %v1541 = vsel %vm1536, %v1524, %v1254
  %v1542 = vsel %vm1536, %v1525, %v1256
  %v1543 = vsel %vm1536, %v1526, %v1258
  %v1544 = vsel %vm1536, %v1527, %v1260
  %v1545 = vsel %vm1536, %v1528, %v1262
  %v1546 = vsel %vm1536, %v1529, %v1264
  %v1547 = vsel %vm1536, %v1530, %v1266
  %v1548 = vsel %vm1536, %v1531, %v1268
  %v1549 = vsel %vm1536, %v1532, %v1270
  %v1550 = vsel %vm1536, %v1533, %v1272
  %v1551 = vsel %vm1536, %v1534, %v1274
  %v1552 = vsel %vm1536, %v1535, %v1276
  %vm1553 = vcmask 654336
  %v1554 = vsel %vm1553, %v1537, %v1310
  %v1555 = vsel %vm1553, %v1538, %v1312
  %v1556 = vsel %vm1553, %v1539, %v1314
  %v1557 = vsel %vm1553, %v1540, %v1316
  %v1558 = vsel %vm1553, %v1541, %v1318
  %v1559 = vsel %vm1553, %v1542, %v1320
  %v1560 = vsel %vm1553, %v1543, %v1322
  %v1561 = vsel %vm1553, %v1544, %v1324
  %v1562 = vsel %vm1553, %v1545, %v1326
  %v1563 = vsel %vm1553, %v1546, %v1328
  %v1564 = vsel %vm1553, %v1547, %v1330
  %v1565 = vsel %vm1553, %v1548, %v1332
  %v1566 = vsel %vm1553, %v1549, %v1334
  %v1567 = vsel %vm1553, %v1550, %v1336
  %v1568 = vsel %vm1553, %v1551, %v1338
  %v1569 = vsel %vm1553, %v1552, %v1340
  %vm1570 = vcmask 785408
  %v1571 = vsel %vm1570, %v1554, %v1374
  %v1572 = vsel %vm1570, %v1555, %v1376
  %v1573 = vsel %vm1570, %v1556, %v1378
  %v1574 = vsel %vm1570, %v1557, %v1380
  %v1575 = vsel %vm1570, %v1558, %v1382
  %v1576 = vsel %vm1570, %v1559, %v1384
  %v1577 = vsel %vm1570, %v1560, %v1386
  %v1578 = vsel %vm1570, %v1561, %v1388
  %v1579 = vsel %vm1570, %v1562, %v1390
  %v1580 = vsel %vm1570, %v1563, %v1392
  %v1581 = vsel %vm1570, %v1564, %v1394
  %v1582 = vsel %vm1570, %v1565, %v1396
  %v1583 = vsel %vm1570, %v1566, %v1398
  %v1584 = vsel %vm1570, %v1567, %v1400
  %v1585 = vsel %vm1570, %v1568, %v1402
  %v1586 = vsel %vm1570, %v1569, %v1404
  %vm1587 = vcmask 916480
  %v1588 = vsel %vm1587, %v1571, %v1438
  %v1589 = vsel %vm1587, %v1572, %v1440
  %v1590 = vsel %vm1587, %v1573, %v1442
  %v1591 = vsel %vm1587, %v1574, %v1444
  %v1592 = vsel %vm1587, %v1575, %v1446
  %v1593 = vsel %vm1587, %v1576, %v1448
  %v1594 = vsel %vm1587, %v1577, %v1450
  %v1595 = vsel %vm1587, %v1578, %v1452
  %v1596 = vsel %vm1587, %v1579, %v1454
  %v1597 = vsel %vm1587, %v1580, %v1456
  %v1598 = vsel %vm1587, %v1581, %v1458
  %v1599 = vsel %vm1587, %v1582, %v1460
  %v1600 = vsel %vm1587, %v1583, %v1462
  %v1601 = vsel %vm1587, %v1584, %v1464
  %v1602 = vsel %vm1587, %v1585, %v1466
  %v1603 = vsel %vm1587, %v1586, %v1468
  %v1604 = vpack.c.bf16 %v1589, %v1588
  %v1605 = vpack.c.bf16 %v1591, %v1590
  %v1606 = vpack.c.bf16 %v1593, %v1592
  %v1607 = vpack.c.bf16 %v1595, %v1594
  %v1608 = vpack.c.bf16 %v1597, %v1596
  %v1609 = vpack.c.bf16 %v1599, %v1598
  %v1610 = vpack.c.bf16 %v1601, %v1600
  %v1611 = vpack.c.bf16 %v1603, %v1602
  %v1612 = vld [vmem:[%s2] sm:$0xf]
  %v1613 = vld [vmem:[%s2 + $0x4] sm:$0xf]
  %v1614 = vld [vmem:[%s2 + $0x8] sm:$0xf]
  %v1615 = vld [vmem:[%s2 + $0xc] sm:$0xf]
  %v1616 = vld [vmem:[%s2 + $0x10] sm:$0xf]
  %v1617 = vld [vmem:[%s2 + $0x14] sm:$0xf]
  %v1618 = vld [vmem:[%s2 + $0x18] sm:$0xf]
  %v1619 = vld [vmem:[%s2 + $0x1c] sm:$0xf]
  %v1620 = vld [vmem:[%s2 + $0x20] sm:$0xf]
  %v1621 = vld [vmem:[%s2 + $0x24] sm:$0xf]
  %v1622 = vld [vmem:[%s2 + $0x28] sm:$0xf]
  %v1623 = vld [vmem:[%s2 + $0x2c] sm:$0xf]
  %v1624 = vld [vmem:[%s2 + $0x30] sm:$0xf]
  %v1625 = vld [vmem:[%s2 + $0x34] sm:$0xf]
  %v1626 = vld [vmem:[%s2 + $0x38] sm:$0xf]
  %v1627 = vld [vmem:[%s2 + $0x3c] sm:$0xf]
  %v1628 = vld [vmem:[%s3] sm:$0x1]
  %v1630 = vlaneseq
  %v1631 = vshrl.u32 %v1630, 7
  %v1632 = vsub.s32 0, %v1631
  %v1633 = vrot.slane %v1628, %v1632
  %v1651 = vunpack.c.l.b16 %v1612
  %v1652 = vunpack.c.l.b16 %v1613
  %v1653 = vunpack.c.l.b16 %v1614
  %v1654 = vunpack.c.l.b16 %v1615
  %v1655 = vunpack.c.l.b16 %v1616
  %v1656 = vunpack.c.l.b16 %v1617
  %v1657 = vunpack.c.l.b16 %v1618
  %v1658 = vunpack.c.l.b16 %v1619
  %v1659 = vunpack.c.l.b16 %v1620
  %v1660 = vunpack.c.l.b16 %v1621
  %v1661 = vunpack.c.l.b16 %v1622
  %v1662 = vunpack.c.l.b16 %v1623
  %v1663 = vunpack.c.l.b16 %v1624
  %v1664 = vunpack.c.l.b16 %v1625
  %v1665 = vunpack.c.l.b16 %v1626
  %v1666 = vunpack.c.l.b16 %v1627
  %v1667 = vpack.c.b16 %v1652, %v1651
  %v1668 = vpack.c.b16 %v1654, %v1653
  %v1669 = vpack.c.b16 %v1656, %v1655
  %v1670 = vpack.c.b16 %v1658, %v1657
  %v1671 = vpack.c.b16 %v1660, %v1659
  %v1672 = vpack.c.b16 %v1662, %v1661
  %v1673 = vpack.c.b16 %v1664, %v1663
  %v1674 = vpack.c.b16 %v1666, %v1665
  %1683 = vmatprep.subr.bf16.mxu0 0
  %1684 = vmatpush1.bf16.msra.mxu0 %v1667
  %1685 = vmatprep.subr.bf16.mxu0 0
  %1686 = vmatpush1.bf16.msra.mxu0 %v1668
  %1687 = vmatprep.subr.bf16.mxu0 0
  %1688 = vmatpush1.bf16.msra.mxu0 %v1669
  %1689 = vmatprep.subr.bf16.mxu0 0
  %1690 = vmatpush1.bf16.msra.mxu0 %v1670
  %1691 = vmatprep.subr.bf16.mxu0 0
  %1692 = vmatpush1.bf16.msra.mxu0 %v1671
  %1693 = vmatprep.subr.bf16.mxu0 0
  %1694 = vmatpush1.bf16.msra.mxu0 %v1672
  %1695 = vmatprep.subr.bf16.mxu0 0
  %1696 = vmatpush1.bf16.msra.mxu0 %v1673
  %1697 = vmatprep.subr.bf16.mxu0 0
  %1698 = vmatpush1.bf16.msra.mxu0 %v1674
  %1699 = vmatprep.subr.bf16.mxu0 0
  %1700 = vmatpush1.bf16.msra.mxu0 0
  %1701 = vmatprep.subr.bf16.mxu0 0
  %1702 = vmatpush1.bf16.msra.mxu0 0
  %1703 = vmatprep.subr.bf16.mxu0 0
  %1704 = vmatpush1.bf16.msra.mxu0 0
  %1705 = vmatprep.subr.bf16.mxu0 0
  %1706 = vmatpush1.bf16.msra.mxu0 0
  %1707 = vmatprep.subr.bf16.mxu0 0
  %1708 = vmatpush1.bf16.msra.mxu0 0
  %1709 = vmatprep.subr.bf16.mxu0 0
  %1710 = vmatpush1.bf16.msra.mxu0 0
  %1711 = vmatprep.subr.bf16.mxu0 0
  %1712 = vmatpush1.bf16.msra.mxu0 0
  %1713 = vmatprep.subr.bf16.mxu0 0
  %1714 = vmatpush1.bf16.msra.mxu0 0
  %1715 = vmatprep.mubr.bf16.mxu0 0
  %1716 = vmatmul.mubr.bf16.gmra.mrb[0].mxu0 %v1604
  %v1717 = vpop.f32.mrb[0].mxu0
  %v1718 = vadd.f32 %v1633, %v1717
  %v1719 = vpop.f32.mrb[0].mxu0
  %v1720 = vpop.f32.mrb[0].mxu0
  %v1721 = vadd.f32 %v1633, %v1720
  %v1722 = vpop.f32.mrb[0].mxu0
  %1723 = vmatprep.mubr.bf16.mxu0 0
  %1724 = vmatmul.mubr.bf16.gmra.mrb[0].mxu0 %v1605
  %v1725 = vpop.f32.mrb[0].mxu0
  %v1726 = vadd.f32 %v1633, %v1725
  %v1727 = vpop.f32.mrb[0].mxu0
  %v1728 = vpop.f32.mrb[0].mxu0
  %v1729 = vadd.f32 %v1633, %v1728
  %v1730 = vpop.f32.mrb[0].mxu0
  %1731 = vmatprep.mubr.bf16.mxu0 0
  %1732 = vmatmul.mubr.bf16.gmra.mrb[0].mxu0 %v1606
  %v1733 = vpop.f32.mrb[0].mxu0
  %v1734 = vadd.f32 %v1633, %v1733
  %v1735 = vpop.f32.mrb[0].mxu0
  %v1736 = vpop.f32.mrb[0].mxu0
  %v1737 = vadd.f32 %v1633, %v1736
  %v1738 = vpop.f32.mrb[0].mxu0
  %1739 = vmatprep.mubr.bf16.mxu0 0
  %1740 = vmatmul.mubr.bf16.gmra.mrb[0].mxu0 %v1607
  %v1741 = vpop.f32.mrb[0].mxu0
  %v1742 = vadd.f32 %v1633, %v1741
  %v1743 = vpop.f32.mrb[0].mxu0
  %v1744 = vpop.f32.mrb[0].mxu0
  %v1745 = vadd.f32 %v1633, %v1744
  %v1746 = vpop.f32.mrb[0].mxu0
  %1747 = vmatprep.mubr.bf16.mxu0 0
  %1748 = vmatmul.mubr.bf16.gmra.mrb[0].mxu0 %v1608
  %v1749 = vpop.f32.mrb[0].mxu0
  %v1750 = vadd.f32 %v1633, %v1749
  %v1751 = vpop.f32.mrb[0].mxu0
  %v1752 = vpop.f32.mrb[0].mxu0
  %v1753 = vadd.f32 %v1633, %v1752
  %v1754 = vpop.f32.mrb[0].mxu0
  %1755 = vmatprep.mubr.bf16.mxu0 0
  %1756 = vmatmul.mubr.bf16.gmra.mrb[0].mxu0 %v1609
  %v1757 = vpop.f32.mrb[0].mxu0
  %v1758 = vadd.f32 %v1633, %v1757
  %v1759 = vpop.f32.mrb[0].mxu0
  %v1760 = vpop.f32.mrb[0].mxu0
  %v1761 = vadd.f32 %v1633, %v1760
  %v1762 = vpop.f32.mrb[0].mxu0
  %1763 = vmatprep.mubr.bf16.mxu0 0
  %1764 = vmatmul.mubr.bf16.gmra.mrb[0].mxu0 %v1610
  %v1765 = vpop.f32.mrb[0].mxu0
  %v1766 = vadd.f32 %v1633, %v1765
  %v1767 = vpop.f32.mrb[0].mxu0
  %v1768 = vpop.f32.mrb[0].mxu0
  %v1769 = vadd.f32 %v1633, %v1768
  %v1770 = vpop.f32.mrb[0].mxu0
  %1771 = vmatprep.mubr.bf16.mxu0 0
  %1772 = vmatmul.mubr.bf16.gmra.mrb[0].mxu0 %v1611
  %v1773 = vpop.f32.mrb[0].mxu0
  %v1774 = vadd.f32 %v1633, %v1773
  %v1775 = vpop.f32.mrb[0].mxu0
  %v1776 = vpop.f32.mrb[0].mxu0
  %v1777 = vadd.f32 %v1633, %v1776
  %v1778 = vpop.f32.mrb[0].mxu0
  %1779 = vdwg.mxu0
  %v1780 = vmax.f32 %v1718, 0.0
  %v1781 = vmax.f32 %v1721, 0.0
  %v1782 = vmax.f32 %v1726, 0.0
  %v1783 = vmax.f32 %v1729, 0.0
  %v1784 = vmax.f32 %v1734, 0.0
  %v1785 = vmax.f32 %v1737, 0.0
  %v1786 = vmax.f32 %v1742, 0.0
  %v1787 = vmax.f32 %v1745, 0.0
  %v1788 = vmax.f32 %v1750, 0.0
  %v1789 = vmax.f32 %v1753, 0.0
  %v1790 = vmax.f32 %v1758, 0.0
  %v1791 = vmax.f32 %v1761, 0.0
  %v1792 = vmax.f32 %v1766, 0.0
  %v1793 = vmax.f32 %v1769, 0.0
  %v1794 = vmax.f32 %v1774, 0.0
  %v1795 = vmax.f32 %v1777, 0.0
  %1812 = vrot.lane.b32.xlu0 %v1718, 64
  %v1813 = vpop.permute.xlu0 %1812
  %1814 = vrot.lane.b32.xlu0 %v1721, 64
  %v1815 = vpop.permute.xlu0 %1814
  %1816 = vrot.lane.b32.xlu0 %v1726, 64
  %v1817 = vpop.permute.xlu0 %1816
  %1818 = vrot.lane.b32.xlu0 %v1729, 64
  %v1819 = vpop.permute.xlu0 %1818
  %1820 = vrot.lane.b32.xlu0 %v1734, 64
  %v1821 = vpop.permute.xlu0 %1820
  %1822 = vrot.lane.b32.xlu0 %v1737, 64
  %v1823 = vpop.permute.xlu0 %1822
  %1824 = vrot.lane.b32.xlu0 %v1742, 64
  %v1825 = vpop.permute.xlu0 %1824
  %1826 = vrot.lane.b32.xlu0 %v1745, 64
  %v1827 = vpop.permute.xlu0 %1826
  %1828 = vrot.lane.b32.xlu0 %v1750, 64
  %v1829 = vpop.permute.xlu0 %1828
  %1830 = vrot.lane.b32.xlu0 %v1753, 64
  %v1831 = vpop.permute.xlu0 %1830
  %1832 = vrot.lane.b32.xlu0 %v1758, 64
  %v1833 = vpop.permute.xlu0 %1832
  %1834 = vrot.lane.b32.xlu0 %v1761, 64
  %v1835 = vpop.permute.xlu0 %1834
  %1836 = vrot.lane.b32.xlu0 %v1766, 64
  %v1837 = vpop.permute.xlu0 %1836
  %1838 = vrot.lane.b32.xlu0 %v1769, 64
  %v1839 = vpop.permute.xlu0 %1838
  %1840 = vrot.lane.b32.xlu0 %v1774, 64
  %v1841 = vpop.permute.xlu0 %1840
  %1842 = vrot.lane.b32.xlu0 %v1777, 64
  %v1843 = vpop.permute.xlu0 %1842
  %v1860 = vadd.f32 %v1780, %v1813
  %v1861 = vadd.f32 %v1781, %v1815
  %v1862 = vadd.f32 %v1782, %v1817
  %v1863 = vadd.f32 %v1783, %v1819
  %v1864 = vadd.f32 %v1784, %v1821
  %v1865 = vadd.f32 %v1785, %v1823
  %v1866 = vadd.f32 %v1786, %v1825
  %v1867 = vadd.f32 %v1787, %v1827
  %v1868 = vadd.f32 %v1788, %v1829
  %v1869 = vadd.f32 %v1789, %v1831
  %v1870 = vadd.f32 %v1790, %v1833
  %v1871 = vadd.f32 %v1791, %v1835
  %v1872 = vadd.f32 %v1792, %v1837
  %v1873 = vadd.f32 %v1793, %v1839
  %v1874 = vadd.f32 %v1794, %v1841
  %v1875 = vadd.f32 %v1795, %v1843
  %v1876 = vpack.c.bf16 %v1861, %v1860
  %v1877 = vpack.c.bf16 %v1863, %v1862
  %v1878 = vpack.c.bf16 %v1865, %v1864
  %v1879 = vpack.c.bf16 %v1867, %v1866
  %v1880 = vpack.c.bf16 %v1869, %v1868
  %v1881 = vpack.c.bf16 %v1871, %v1870
  %v1882 = vpack.c.bf16 %v1873, %v1872
  %v1883 = vpack.c.bf16 %v1875, %v1874
  %1884 = vmatprep.subr.bf16.mxu0 0
  %1885 = vmatpush1.bf16.msra.mxu0 %v1876
  %1886 = vmatprep.subr.bf16.mxu0 0
  %1887 = vmatpush1.bf16.msra.mxu0 %v1877
  %1888 = vmatprep.subr.bf16.mxu0 0
  %1889 = vmatpush1.bf16.msra.mxu0 %v1878
  %1890 = vmatprep.subr.bf16.mxu0 0
  %1891 = vmatpush1.bf16.msra.mxu0 %v1879
  %1892 = vmatprep.subr.bf16.mxu0 0
  %1893 = vmatpush1.bf16.msra.mxu0 %v1880
  %1894 = vmatprep.subr.bf16.mxu0 0
  %1895 = vmatpush1.bf16.msra.mxu0 %v1881
  %1896 = vmatprep.subr.bf16.mxu0 0
  %1897 = vmatpush1.bf16.msra.mxu0 %v1882
  %1898 = vmatprep.subr.bf16.mxu0 0
  %1899 = vmatpush1.bf16.msra.mxu0 %v1883
  %1900 = vmatprep.subr.bf16.mxu0 0
  %1901 = vmatpush1.bf16.msra.mxu0 0
  %1902 = vmatprep.subr.bf16.mxu0 0
  %1903 = vmatpush1.bf16.msra.mxu0 0
  %1904 = vmatprep.subr.bf16.mxu0 0
  %1905 = vmatpush1.bf16.msra.mxu0 0
  %1906 = vmatprep.subr.bf16.mxu0 0
  %1907 = vmatpush1.bf16.msra.mxu0 0
  %1908 = vmatprep.subr.bf16.mxu0 0
  %1909 = vmatpush1.bf16.msra.mxu0 0
  %1910 = vmatprep.subr.bf16.mxu0 0
  %1911 = vmatpush1.bf16.msra.mxu0 0
  %1912 = vmatprep.subr.bf16.mxu0 0
  %1913 = vmatpush1.bf16.msra.mxu0 0
  %1914 = vmatprep.subr.bf16.mxu0 0
  %1915 = vmatpush1.bf16.msra.mxu0 0
  %1916 = vmatprep.mubr.bf16.mxu0 0
  %1917 = vmatmul.mubr.bf16.gmra.mrb[0].mxu0 %v102
  %v1918 = vpop.f32.mrb[0].mxu0
  %v1919 = vadd.f32 0.0, %v1918
  %v1920 = vpop.f32.mrb[0].mxu0
  %v1921 = vpop.f32.mrb[0].mxu0
  %v1922 = vadd.f32 0.0, %v1921
  %v1923 = vpop.f32.mrb[0].mxu0
  %1924 = vmatprep.mubr.bf16.mxu0 0
  %1925 = vmatmul.mubr.bf16.gmra.mrb[0].mxu0 %v103
  %v1926 = vpop.f32.mrb[0].mxu0
  %v1927 = vadd.f32 0.0, %v1926
  %v1928 = vpop.f32.mrb[0].mxu0
  %v1929 = vpop.f32.mrb[0].mxu0
  %v1930 = vadd.f32 0.0, %v1929
  %v1931 = vpop.f32.mrb[0].mxu0
  %1932 = vmatprep.mubr.bf16.mxu0 0
  %1933 = vmatmul.mubr.bf16.gmra.mrb[0].mxu0 %v104
  %v1934 = vpop.f32.mrb[0].mxu0
  %v1935 = vadd.f32 0.0, %v1934
  %v1936 = vpop.f32.mrb[0].mxu0
  %v1937 = vpop.f32.mrb[0].mxu0
  %v1938 = vadd.f32 0.0, %v1937
  %v1939 = vpop.f32.mrb[0].mxu0
  %1940 = vmatprep.mubr.bf16.mxu0 0
  %1941 = vmatmul.mubr.bf16.gmra.mrb[0].mxu0 %v105
  %v1942 = vpop.f32.mrb[0].mxu0
  %v1943 = vadd.f32 0.0, %v1942
  %v1944 = vpop.f32.mrb[0].mxu0
  %v1945 = vpop.f32.mrb[0].mxu0
  %v1946 = vadd.f32 0.0, %v1945
  %v1947 = vpop.f32.mrb[0].mxu0
  %1948 = vmatprep.mubr.bf16.mxu0 0
  %1949 = vmatmul.mubr.bf16.gmra.mrb[0].mxu0 %v106
  %v1950 = vpop.f32.mrb[0].mxu0
  %v1951 = vadd.f32 0.0, %v1950
  %v1952 = vpop.f32.mrb[0].mxu0
  %v1953 = vpop.f32.mrb[0].mxu0
  %v1954 = vadd.f32 0.0, %v1953
  %v1955 = vpop.f32.mrb[0].mxu0
  %1956 = vmatprep.mubr.bf16.mxu0 0
  %1957 = vmatmul.mubr.bf16.gmra.mrb[0].mxu0 %v107
  %v1958 = vpop.f32.mrb[0].mxu0
  %v1959 = vadd.f32 0.0, %v1958
  %v1960 = vpop.f32.mrb[0].mxu0
  %v1961 = vpop.f32.mrb[0].mxu0
  %v1962 = vadd.f32 0.0, %v1961
  %v1963 = vpop.f32.mrb[0].mxu0
  %1964 = vmatprep.mubr.bf16.mxu0 0
  %1965 = vmatmul.mubr.bf16.gmra.mrb[0].mxu0 %v108
  %v1966 = vpop.f32.mrb[0].mxu0
  %v1967 = vadd.f32 0.0, %v1966
  %v1968 = vpop.f32.mrb[0].mxu0
  %v1969 = vpop.f32.mrb[0].mxu0
  %v1970 = vadd.f32 0.0, %v1969
  %v1971 = vpop.f32.mrb[0].mxu0
  %1972 = vmatprep.mubr.bf16.mxu0 0
  %1973 = vmatmul.mubr.bf16.gmra.mrb[0].mxu0 %v109
  %v1974 = vpop.f32.mrb[0].mxu0
  %v1975 = vadd.f32 0.0, %v1974
  %v1976 = vpop.f32.mrb[0].mxu0
  %v1977 = vpop.f32.mrb[0].mxu0
  %v1978 = vadd.f32 0.0, %v1977
  %v1979 = vpop.f32.mrb[0].mxu0
  %1980 = vdwg.mxu0
  %v1981 = vpack.c.bf16 %v1922, %v1919
  %v1982 = vpack.c.bf16 %v1930, %v1927
  %v1983 = vpack.c.bf16 %v1938, %v1935
  %v1984 = vpack.c.bf16 %v1946, %v1943
  %v1985 = vpack.c.bf16 %v1954, %v1951
  %v1986 = vpack.c.bf16 %v1962, %v1959
  %v1987 = vpack.c.bf16 %v1970, %v1967
  %v1988 = vpack.c.bf16 %v1978, %v1975
  %1989 = vmatprep.subr.bf16.mxu0 0
  %1990 = vmatpush1.bf16.msra.mxu0 %v1981
  %1991 = vmatprep.subr.bf16.mxu0 0
  %1992 = vmatpush1.bf16.msra.mxu0 %v1982
  %1993 = vmatprep.subr.bf16.mxu0 0
  %1994 = vmatpush1.bf16.msra.mxu0 %v1983
  %1995 = vmatprep.subr.bf16.mxu0 0
  %1996 = vmatpush1.bf16.msra.mxu0 %v1984
  %1997 = vmatprep.subr.bf16.mxu0 0
  %1998 = vmatpush1.bf16.msra.mxu0 %v1985
  %1999 = vmatprep.subr.bf16.mxu0 0
  %2000 = vmatpush1.bf16.msra.mxu0 %v1986
  %2001 = vmatprep.subr.bf16.mxu0 0
  %2002 = vmatpush1.bf16.msra.mxu0 %v1987
  %2003 = vmatprep.subr.bf16.mxu0 0
  %2004 = vmatpush1.bf16.msra.mxu0 %v1988
  %2005 = vmatprep.subr.bf16.mxu0 0
  %2006 = vmatpush1.bf16.msra.mxu0 0
  %2007 = vmatprep.subr.bf16.mxu0 0
  %2008 = vmatpush1.bf16.msra.mxu0 0
  %2009 = vmatprep.subr.bf16.mxu0 0
  %2010 = vmatpush1.bf16.msra.mxu0 0
  %2011 = vmatprep.subr.bf16.mxu0 0
  %2012 = vmatpush1.bf16.msra.mxu0 0
  %2013 = vmatprep.subr.bf16.mxu0 0
  %2014 = vmatpush1.bf16.msra.mxu0 0
  %2015 = vmatprep.subr.bf16.mxu0 0
  %2016 = vmatpush1.bf16.msra.mxu0 0
  %2017 = vmatprep.subr.bf16.mxu0 0
  %2018 = vmatpush1.bf16.msra.mxu0 0
  %2019 = vmatprep.subr.bf16.mxu0 0
  %2020 = vmatpush1.bf16.msra.mxu0 0
  %2021 = vmatprep.mubr.bf16.mxu0 0
  %2022 = vmatmul.mubr.bf16.gmra.mrb[0].mxu0 %v102
  %v2023 = vpop.f32.mrb[0].mxu0
  %v2024 = vadd.f32 0.0, %v2023
  %v2025 = vpop.f32.mrb[0].mxu0
  %v2026 = vpop.f32.mrb[0].mxu0
  %v2027 = vadd.f32 0.0, %v2026
  %v2028 = vpop.f32.mrb[0].mxu0
  %2029 = vmatprep.mubr.bf16.mxu0 0
  %2030 = vmatmul.mubr.bf16.gmra.mrb[0].mxu0 %v103
  %v2031 = vpop.f32.mrb[0].mxu0
  %v2032 = vadd.f32 0.0, %v2031
  %v2033 = vpop.f32.mrb[0].mxu0
  %v2034 = vpop.f32.mrb[0].mxu0
  %v2035 = vadd.f32 0.0, %v2034
  %v2036 = vpop.f32.mrb[0].mxu0
  %2037 = vmatprep.mubr.bf16.mxu0 0
  %2038 = vmatmul.mubr.bf16.gmra.mrb[0].mxu0 %v104
  %v2039 = vpop.f32.mrb[0].mxu0
  %v2040 = vadd.f32 0.0, %v2039
  %v2041 = vpop.f32.mrb[0].mxu0
  %v2042 = vpop.f32.mrb[0].mxu0
  %v2043 = vadd.f32 0.0, %v2042
  %v2044 = vpop.f32.mrb[0].mxu0
  %2045 = vmatprep.mubr.bf16.mxu0 0
  %2046 = vmatmul.mubr.bf16.gmra.mrb[0].mxu0 %v105
  %v2047 = vpop.f32.mrb[0].mxu0
  %v2048 = vadd.f32 0.0, %v2047
  %v2049 = vpop.f32.mrb[0].mxu0
  %v2050 = vpop.f32.mrb[0].mxu0
  %v2051 = vadd.f32 0.0, %v2050
  %v2052 = vpop.f32.mrb[0].mxu0
  %2053 = vmatprep.mubr.bf16.mxu0 0
  %2054 = vmatmul.mubr.bf16.gmra.mrb[0].mxu0 %v106
  %v2055 = vpop.f32.mrb[0].mxu0
  %v2056 = vadd.f32 0.0, %v2055
  %v2057 = vpop.f32.mrb[0].mxu0
  %v2058 = vpop.f32.mrb[0].mxu0
  %v2059 = vadd.f32 0.0, %v2058
  %v2060 = vpop.f32.mrb[0].mxu0
  %2061 = vmatprep.mubr.bf16.mxu0 0
  %2062 = vmatmul.mubr.bf16.gmra.mrb[0].mxu0 %v107
  %v2063 = vpop.f32.mrb[0].mxu0
  %v2064 = vadd.f32 0.0, %v2063
  %v2065 = vpop.f32.mrb[0].mxu0
  %v2066 = vpop.f32.mrb[0].mxu0
  %v2067 = vadd.f32 0.0, %v2066
  %v2068 = vpop.f32.mrb[0].mxu0
  %2069 = vmatprep.mubr.bf16.mxu0 0
  %2070 = vmatmul.mubr.bf16.gmra.mrb[0].mxu0 %v108
  %v2071 = vpop.f32.mrb[0].mxu0
  %v2072 = vadd.f32 0.0, %v2071
  %v2073 = vpop.f32.mrb[0].mxu0
  %v2074 = vpop.f32.mrb[0].mxu0
  %v2075 = vadd.f32 0.0, %v2074
  %v2076 = vpop.f32.mrb[0].mxu0
  %2077 = vmatprep.mubr.bf16.mxu0 0
  %2078 = vmatmul.mubr.bf16.gmra.mrb[0].mxu0 %v109
  %v2079 = vpop.f32.mrb[0].mxu0
  %v2080 = vadd.f32 0.0, %v2079
  %v2081 = vpop.f32.mrb[0].mxu0
  %v2082 = vpop.f32.mrb[0].mxu0
  %v2083 = vadd.f32 0.0, %v2082
  %v2084 = vpop.f32.mrb[0].mxu0
  %2085 = vdwg.mxu0
  %v2086 = vmul.f32 %v2024, 2.0
  %v2087 = vmul.f32 %v2027, 2.0
  %v2088 = vmul.f32 %v2032, 2.0
  %v2089 = vmul.f32 %v2035, 2.0
  %v2090 = vmul.f32 %v2040, 2.0
  %v2091 = vmul.f32 %v2043, 2.0
  %v2092 = vmul.f32 %v2048, 2.0
  %v2093 = vmul.f32 %v2051, 2.0
  %v2094 = vmul.f32 %v2056, 2.0
  %v2095 = vmul.f32 %v2059, 2.0
  %v2096 = vmul.f32 %v2064, 2.0
  %v2097 = vmul.f32 %v2067, 2.0
  %v2098 = vmul.f32 %v2072, 2.0
  %v2099 = vmul.f32 %v2075, 2.0
  %v2100 = vmul.f32 %v2080, 2.0
  %v2101 = vmul.f32 %v2083, 2.0
  %v2102 = vsub.f32 %v2086, %v1860
  %v2103 = vsub.f32 %v2087, %v1861
  %v2104 = vsub.f32 %v2088, %v1862
  %v2105 = vsub.f32 %v2089, %v1863
  %v2106 = vsub.f32 %v2090, %v1864
  %v2107 = vsub.f32 %v2091, %v1865
  %v2108 = vsub.f32 %v2092, %v1866
  %v2109 = vsub.f32 %v2093, %v1867
  %v2110 = vsub.f32 %v2094, %v1868
  %v2111 = vsub.f32 %v2095, %v1869
  %v2112 = vsub.f32 %v2096, %v1870
  %v2113 = vsub.f32 %v2097, %v1871
  %v2114 = vsub.f32 %v2098, %v1872
  %v2115 = vsub.f32 %v2099, %v1873
  %v2116 = vsub.f32 %v2100, %v1874
  %v2117 = vsub.f32 %v2101, %v1875
  %v2118 = vpack.c.bf16 %v2103, %v2102
  %v2119 = vpack.c.bf16 %v2105, %v2104
  %v2120 = vpack.c.bf16 %v2107, %v2106
  %v2121 = vpack.c.bf16 %v2109, %v2108
  %v2122 = vpack.c.bf16 %v2111, %v2110
  %v2123 = vpack.c.bf16 %v2113, %v2112
  %v2124 = vpack.c.bf16 %v2115, %v2114
  %v2125 = vpack.c.bf16 %v2117, %v2116
  %2126 = vmatprep.subr.bf16.mxu0 0
  %2127 = vmatpush1.bf16.msra.mxu0 %v2118
  %2128 = vmatprep.subr.bf16.mxu0 0
  %2129 = vmatpush1.bf16.msra.mxu0 %v2119
  %2130 = vmatprep.subr.bf16.mxu0 0
  %2131 = vmatpush1.bf16.msra.mxu0 %v2120
  %2132 = vmatprep.subr.bf16.mxu0 0
  %2133 = vmatpush1.bf16.msra.mxu0 %v2121
  %2134 = vmatprep.subr.bf16.mxu0 0
  %2135 = vmatpush1.bf16.msra.mxu0 %v2122
  %2136 = vmatprep.subr.bf16.mxu0 0
  %2137 = vmatpush1.bf16.msra.mxu0 %v2123
  %2138 = vmatprep.subr.bf16.mxu0 0
  %2139 = vmatpush1.bf16.msra.mxu0 %v2124
  %2140 = vmatprep.subr.bf16.mxu0 0
  %2141 = vmatpush1.bf16.msra.mxu0 %v2125
  %2142 = vmatprep.subr.bf16.mxu0 0
  %2143 = vmatpush1.bf16.msra.mxu0 0
  %2144 = vmatprep.subr.bf16.mxu0 0
  %2145 = vmatpush1.bf16.msra.mxu0 0
  %2146 = vmatprep.subr.bf16.mxu0 0
  %2147 = vmatpush1.bf16.msra.mxu0 0
  %2148 = vmatprep.subr.bf16.mxu0 0
  %2149 = vmatpush1.bf16.msra.mxu0 0
  %2150 = vmatprep.subr.bf16.mxu0 0
  %2151 = vmatpush1.bf16.msra.mxu0 0
  %2152 = vmatprep.subr.bf16.mxu0 0
  %2153 = vmatpush1.bf16.msra.mxu0 0
  %2154 = vmatprep.subr.bf16.mxu0 0
  %2155 = vmatpush1.bf16.msra.mxu0 0
  %2156 = vmatprep.subr.bf16.mxu0 0
  %2157 = vmatpush1.bf16.msra.mxu0 0
  %2158 = vmatprep.mubr.bf16.mxu0 0
  %2159 = vmatmul.mubr.bf16.gmra.mrb[0].mxu0 %v102
  %v2160 = vpop.f32.mrb[0].mxu0
  %v2161 = vadd.f32 0.0, %v2160
  %v2162 = vpop.f32.mrb[0].mxu0
  %v2163 = vpop.f32.mrb[0].mxu0
  %v2164 = vadd.f32 0.0, %v2163
  %v2165 = vpop.f32.mrb[0].mxu0
  %2166 = vmatprep.mubr.bf16.mxu0 0
  %2167 = vmatmul.mubr.bf16.gmra.mrb[0].mxu0 %v103
  %v2168 = vpop.f32.mrb[0].mxu0
  %v2169 = vadd.f32 0.0, %v2168
  %v2170 = vpop.f32.mrb[0].mxu0
  %v2171 = vpop.f32.mrb[0].mxu0
  %v2172 = vadd.f32 0.0, %v2171
  %v2173 = vpop.f32.mrb[0].mxu0
  %2174 = vmatprep.mubr.bf16.mxu0 0
  %2175 = vmatmul.mubr.bf16.gmra.mrb[0].mxu0 %v104
  %v2176 = vpop.f32.mrb[0].mxu0
  %v2177 = vadd.f32 0.0, %v2176
  %v2178 = vpop.f32.mrb[0].mxu0
  %v2179 = vpop.f32.mrb[0].mxu0
  %v2180 = vadd.f32 0.0, %v2179
  %v2181 = vpop.f32.mrb[0].mxu0
  %2182 = vmatprep.mubr.bf16.mxu0 0
  %2183 = vmatmul.mubr.bf16.gmra.mrb[0].mxu0 %v105
  %v2184 = vpop.f32.mrb[0].mxu0
  %v2185 = vadd.f32 0.0, %v2184
  %v2186 = vpop.f32.mrb[0].mxu0
  %v2187 = vpop.f32.mrb[0].mxu0
  %v2188 = vadd.f32 0.0, %v2187
  %v2189 = vpop.f32.mrb[0].mxu0
  %2190 = vmatprep.mubr.bf16.mxu0 0
  %2191 = vmatmul.mubr.bf16.gmra.mrb[0].mxu0 %v106
  %v2192 = vpop.f32.mrb[0].mxu0
  %v2193 = vadd.f32 0.0, %v2192
  %v2194 = vpop.f32.mrb[0].mxu0
  %v2195 = vpop.f32.mrb[0].mxu0
  %v2196 = vadd.f32 0.0, %v2195
  %v2197 = vpop.f32.mrb[0].mxu0
  %2198 = vmatprep.mubr.bf16.mxu0 0
  %2199 = vmatmul.mubr.bf16.gmra.mrb[0].mxu0 %v107
  %v2200 = vpop.f32.mrb[0].mxu0
  %v2201 = vadd.f32 0.0, %v2200
  %v2202 = vpop.f32.mrb[0].mxu0
  %v2203 = vpop.f32.mrb[0].mxu0
  %v2204 = vadd.f32 0.0, %v2203
  %v2205 = vpop.f32.mrb[0].mxu0
  %2206 = vmatprep.mubr.bf16.mxu0 0
  %2207 = vmatmul.mubr.bf16.gmra.mrb[0].mxu0 %v108
  %v2208 = vpop.f32.mrb[0].mxu0
  %v2209 = vadd.f32 0.0, %v2208
  %v2210 = vpop.f32.mrb[0].mxu0
  %v2211 = vpop.f32.mrb[0].mxu0
  %v2212 = vadd.f32 0.0, %v2211
  %v2213 = vpop.f32.mrb[0].mxu0
  %2214 = vmatprep.mubr.bf16.mxu0 0
  %2215 = vmatmul.mubr.bf16.gmra.mrb[0].mxu0 %v109
  %v2216 = vpop.f32.mrb[0].mxu0
  %v2217 = vadd.f32 0.0, %v2216
  %v2218 = vpop.f32.mrb[0].mxu0
  %v2219 = vpop.f32.mrb[0].mxu0
  %v2220 = vadd.f32 0.0, %v2219
  %v2221 = vpop.f32.mrb[0].mxu0
  %2222 = vdwg.mxu0
  %v2223 = vmul.f32 %v2161, 2.0
  %v2224 = vmul.f32 %v2164, 2.0
  %v2225 = vmul.f32 %v2169, 2.0
  %v2226 = vmul.f32 %v2172, 2.0
  %v2227 = vmul.f32 %v2177, 2.0
  %v2228 = vmul.f32 %v2180, 2.0
  %v2229 = vmul.f32 %v2185, 2.0
  %v2230 = vmul.f32 %v2188, 2.0
  %v2231 = vmul.f32 %v2193, 2.0
  %v2232 = vmul.f32 %v2196, 2.0
  %v2233 = vmul.f32 %v2201, 2.0
  %v2234 = vmul.f32 %v2204, 2.0
  %v2235 = vmul.f32 %v2209, 2.0
  %v2236 = vmul.f32 %v2212, 2.0
  %v2237 = vmul.f32 %v2217, 2.0
  %v2238 = vmul.f32 %v2220, 2.0
  %v2239 = vsub.f32 %v2223, %v1919
  %v2240 = vsub.f32 %v2224, %v1922
  %v2241 = vsub.f32 %v2225, %v1927
  %v2242 = vsub.f32 %v2226, %v1930
  %v2243 = vsub.f32 %v2227, %v1935
  %v2244 = vsub.f32 %v2228, %v1938
  %v2245 = vsub.f32 %v2229, %v1943
  %v2246 = vsub.f32 %v2230, %v1946
  %v2247 = vsub.f32 %v2231, %v1951
  %v2248 = vsub.f32 %v2232, %v1954
  %v2249 = vsub.f32 %v2233, %v1959
  %v2250 = vsub.f32 %v2234, %v1962
  %v2251 = vsub.f32 %v2235, %v1967
  %v2252 = vsub.f32 %v2236, %v1970
  %v2253 = vsub.f32 %v2237, %v1975
  %v2254 = vsub.f32 %v2238, %v1978
  %v2255 = vpack.c.bf16 %v2240, %v2239
  %v2256 = vpack.c.bf16 %v2242, %v2241
  %v2257 = vpack.c.bf16 %v2244, %v2243
  %v2258 = vpack.c.bf16 %v2246, %v2245
  %v2259 = vpack.c.bf16 %v2248, %v2247
  %v2260 = vpack.c.bf16 %v2250, %v2249
  %v2261 = vpack.c.bf16 %v2252, %v2251
  %v2262 = vpack.c.bf16 %v2254, %v2253
  %2263 = vmatprep.subr.bf16.mxu0 0
  %2264 = vmatpush1.bf16.msra.mxu0 %v2255
  %2265 = vmatprep.subr.bf16.mxu0 0
  %2266 = vmatpush1.bf16.msra.mxu0 %v2256
  %2267 = vmatprep.subr.bf16.mxu0 0
  %2268 = vmatpush1.bf16.msra.mxu0 %v2257
  %2269 = vmatprep.subr.bf16.mxu0 0
  %2270 = vmatpush1.bf16.msra.mxu0 %v2258
  %2271 = vmatprep.subr.bf16.mxu0 0
  %2272 = vmatpush1.bf16.msra.mxu0 %v2259
  %2273 = vmatprep.subr.bf16.mxu0 0
  %2274 = vmatpush1.bf16.msra.mxu0 %v2260
  %2275 = vmatprep.subr.bf16.mxu0 0
  %2276 = vmatpush1.bf16.msra.mxu0 %v2261
  %2277 = vmatprep.subr.bf16.mxu0 0
  %2278 = vmatpush1.bf16.msra.mxu0 %v2262
  %2279 = vmatprep.subr.bf16.mxu0 0
  %2280 = vmatpush1.bf16.msra.mxu0 0
  %2281 = vmatprep.subr.bf16.mxu0 0
  %2282 = vmatpush1.bf16.msra.mxu0 0
  %2283 = vmatprep.subr.bf16.mxu0 0
  %2284 = vmatpush1.bf16.msra.mxu0 0
  %2285 = vmatprep.subr.bf16.mxu0 0
  %2286 = vmatpush1.bf16.msra.mxu0 0
  %2287 = vmatprep.subr.bf16.mxu0 0
  %2288 = vmatpush1.bf16.msra.mxu0 0
  %2289 = vmatprep.subr.bf16.mxu0 0
  %2290 = vmatpush1.bf16.msra.mxu0 0
  %2291 = vmatprep.subr.bf16.mxu0 0
  %2292 = vmatpush1.bf16.msra.mxu0 0
  %2293 = vmatprep.subr.bf16.mxu0 0
  %2294 = vmatpush1.bf16.msra.mxu0 0
  %2295 = vmatprep.mubr.bf16.mxu0 0
  %2296 = vmatmul.mubr.bf16.gmra.mrb[0].mxu0 %v102
  %v2297 = vpop.f32.mrb[0].mxu0
  %v2298 = vadd.f32 0.0, %v2297
  %v2299 = vpop.f32.mrb[0].mxu0
  %v2300 = vpop.f32.mrb[0].mxu0
  %v2301 = vadd.f32 0.0, %v2300
  %v2302 = vpop.f32.mrb[0].mxu0
  %2303 = vmatprep.mubr.bf16.mxu0 0
  %2304 = vmatmul.mubr.bf16.gmra.mrb[0].mxu0 %v103
  %v2305 = vpop.f32.mrb[0].mxu0
  %v2306 = vadd.f32 0.0, %v2305
  %v2307 = vpop.f32.mrb[0].mxu0
  %v2308 = vpop.f32.mrb[0].mxu0
  %v2309 = vadd.f32 0.0, %v2308
  %v2310 = vpop.f32.mrb[0].mxu0
  %2311 = vmatprep.mubr.bf16.mxu0 0
  %2312 = vmatmul.mubr.bf16.gmra.mrb[0].mxu0 %v104
  %v2313 = vpop.f32.mrb[0].mxu0
  %v2314 = vadd.f32 0.0, %v2313
  %v2315 = vpop.f32.mrb[0].mxu0
  %v2316 = vpop.f32.mrb[0].mxu0
  %v2317 = vadd.f32 0.0, %v2316
  %v2318 = vpop.f32.mrb[0].mxu0
  %2319 = vmatprep.mubr.bf16.mxu0 0
  %2320 = vmatmul.mubr.bf16.gmra.mrb[0].mxu0 %v105
  %v2321 = vpop.f32.mrb[0].mxu0
  %v2322 = vadd.f32 0.0, %v2321
  %v2323 = vpop.f32.mrb[0].mxu0
  %v2324 = vpop.f32.mrb[0].mxu0
  %v2325 = vadd.f32 0.0, %v2324
  %v2326 = vpop.f32.mrb[0].mxu0
  %2327 = vmatprep.mubr.bf16.mxu0 0
  %2328 = vmatmul.mubr.bf16.gmra.mrb[0].mxu0 %v106
  %v2329 = vpop.f32.mrb[0].mxu0
  %v2330 = vadd.f32 0.0, %v2329
  %v2331 = vpop.f32.mrb[0].mxu0
  %v2332 = vpop.f32.mrb[0].mxu0
  %v2333 = vadd.f32 0.0, %v2332
  %v2334 = vpop.f32.mrb[0].mxu0
  %2335 = vmatprep.mubr.bf16.mxu0 0
  %2336 = vmatmul.mubr.bf16.gmra.mrb[0].mxu0 %v107
  %v2337 = vpop.f32.mrb[0].mxu0
  %v2338 = vadd.f32 0.0, %v2337
  %v2339 = vpop.f32.mrb[0].mxu0
  %v2340 = vpop.f32.mrb[0].mxu0
  %v2341 = vadd.f32 0.0, %v2340
  %v2342 = vpop.f32.mrb[0].mxu0
  %2343 = vmatprep.mubr.bf16.mxu0 0
  %2344 = vmatmul.mubr.bf16.gmra.mrb[0].mxu0 %v108
  %v2345 = vpop.f32.mrb[0].mxu0
  %v2346 = vadd.f32 0.0, %v2345
  %v2347 = vpop.f32.mrb[0].mxu0
  %v2348 = vpop.f32.mrb[0].mxu0
  %v2349 = vadd.f32 0.0, %v2348
  %v2350 = vpop.f32.mrb[0].mxu0
  %2351 = vmatprep.mubr.bf16.mxu0 0
  %2352 = vmatmul.mubr.bf16.gmra.mrb[0].mxu0 %v109
  %v2353 = vpop.f32.mrb[0].mxu0
  %v2354 = vadd.f32 0.0, %v2353
  %v2355 = vpop.f32.mrb[0].mxu0
  %v2356 = vpop.f32.mrb[0].mxu0
  %v2357 = vadd.f32 0.0, %v2356
  %v2358 = vpop.f32.mrb[0].mxu0
  %2359 = vdwg.mxu0
  %v2360 = vmul.f32 %v2298, 2.0
  %v2361 = vmul.f32 %v2301, 2.0
  %v2362 = vmul.f32 %v2306, 2.0
  %v2363 = vmul.f32 %v2309, 2.0
  %v2364 = vmul.f32 %v2314, 2.0
  %v2365 = vmul.f32 %v2317, 2.0
  %v2366 = vmul.f32 %v2322, 2.0
  %v2367 = vmul.f32 %v2325, 2.0
  %v2368 = vmul.f32 %v2330, 2.0
  %v2369 = vmul.f32 %v2333, 2.0
  %v2370 = vmul.f32 %v2338, 2.0
  %v2371 = vmul.f32 %v2341, 2.0
  %v2372 = vmul.f32 %v2346, 2.0
  %v2373 = vmul.f32 %v2349, 2.0
  %v2374 = vmul.f32 %v2354, 2.0
  %v2375 = vmul.f32 %v2357, 2.0
  %v2376 = vsub.f32 %v2360, %v2102
  %v2377 = vsub.f32 %v2361, %v2103
  %v2378 = vsub.f32 %v2362, %v2104
  %v2379 = vsub.f32 %v2363, %v2105
  %v2380 = vsub.f32 %v2364, %v2106
  %v2381 = vsub.f32 %v2365, %v2107
  %v2382 = vsub.f32 %v2366, %v2108
  %v2383 = vsub.f32 %v2367, %v2109
  %v2384 = vsub.f32 %v2368, %v2110
  %v2385 = vsub.f32 %v2369, %v2111
  %v2386 = vsub.f32 %v2370, %v2112
  %v2387 = vsub.f32 %v2371, %v2113
  %v2388 = vsub.f32 %v2372, %v2114
  %v2389 = vsub.f32 %v2373, %v2115
  %v2390 = vsub.f32 %v2374, %v2116
  %v2391 = vsub.f32 %v2375, %v2117
  %v2392 = vpack.c.bf16 %v2377, %v2376
  %v2393 = vpack.c.bf16 %v2379, %v2378
  %v2394 = vpack.c.bf16 %v2381, %v2380
  %v2395 = vpack.c.bf16 %v2383, %v2382
  %v2396 = vpack.c.bf16 %v2385, %v2384
  %v2397 = vpack.c.bf16 %v2387, %v2386
  %v2398 = vpack.c.bf16 %v2389, %v2388
  %v2399 = vpack.c.bf16 %v2391, %v2390
  %2400 = vmatprep.subr.bf16.mxu0 0
  %2401 = vmatpush1.bf16.msra.mxu0 %v2392
  %2402 = vmatprep.subr.bf16.mxu0 0
  %2403 = vmatpush1.bf16.msra.mxu0 %v2393
  %2404 = vmatprep.subr.bf16.mxu0 0
  %2405 = vmatpush1.bf16.msra.mxu0 %v2394
  %2406 = vmatprep.subr.bf16.mxu0 0
  %2407 = vmatpush1.bf16.msra.mxu0 %v2395
  %2408 = vmatprep.subr.bf16.mxu0 0
  %2409 = vmatpush1.bf16.msra.mxu0 %v2396
  %2410 = vmatprep.subr.bf16.mxu0 0
  %2411 = vmatpush1.bf16.msra.mxu0 %v2397
  %2412 = vmatprep.subr.bf16.mxu0 0
  %2413 = vmatpush1.bf16.msra.mxu0 %v2398
  %2414 = vmatprep.subr.bf16.mxu0 0
  %2415 = vmatpush1.bf16.msra.mxu0 %v2399
  %2416 = vmatprep.subr.bf16.mxu0 0
  %2417 = vmatpush1.bf16.msra.mxu0 0
  %2418 = vmatprep.subr.bf16.mxu0 0
  %2419 = vmatpush1.bf16.msra.mxu0 0
  %2420 = vmatprep.subr.bf16.mxu0 0
  %2421 = vmatpush1.bf16.msra.mxu0 0
  %2422 = vmatprep.subr.bf16.mxu0 0
  %2423 = vmatpush1.bf16.msra.mxu0 0
  %2424 = vmatprep.subr.bf16.mxu0 0
  %2425 = vmatpush1.bf16.msra.mxu0 0
  %2426 = vmatprep.subr.bf16.mxu0 0
  %2427 = vmatpush1.bf16.msra.mxu0 0
  %2428 = vmatprep.subr.bf16.mxu0 0
  %2429 = vmatpush1.bf16.msra.mxu0 0
  %2430 = vmatprep.subr.bf16.mxu0 0
  %2431 = vmatpush1.bf16.msra.mxu0 0
  %2432 = vmatprep.mubr.bf16.mxu0 0
  %2433 = vmatmul.mubr.bf16.gmra.mrb[0].mxu0 %v102
  %v2434 = vpop.f32.mrb[0].mxu0
  %v2435 = vadd.f32 0.0, %v2434
  %v2436 = vpop.f32.mrb[0].mxu0
  %v2437 = vpop.f32.mrb[0].mxu0
  %v2438 = vadd.f32 0.0, %v2437
  %v2439 = vpop.f32.mrb[0].mxu0
  %2440 = vmatprep.mubr.bf16.mxu0 0
  %2441 = vmatmul.mubr.bf16.gmra.mrb[0].mxu0 %v103
  %v2442 = vpop.f32.mrb[0].mxu0
  %v2443 = vadd.f32 0.0, %v2442
  %v2444 = vpop.f32.mrb[0].mxu0
  %v2445 = vpop.f32.mrb[0].mxu0
  %v2446 = vadd.f32 0.0, %v2445
  %v2447 = vpop.f32.mrb[0].mxu0
  %2448 = vmatprep.mubr.bf16.mxu0 0
  %2449 = vmatmul.mubr.bf16.gmra.mrb[0].mxu0 %v104
  %v2450 = vpop.f32.mrb[0].mxu0
  %v2451 = vadd.f32 0.0, %v2450
  %v2452 = vpop.f32.mrb[0].mxu0
  %v2453 = vpop.f32.mrb[0].mxu0
  %v2454 = vadd.f32 0.0, %v2453
  %v2455 = vpop.f32.mrb[0].mxu0
  %2456 = vmatprep.mubr.bf16.mxu0 0
  %2457 = vmatmul.mubr.bf16.gmra.mrb[0].mxu0 %v105
  %v2458 = vpop.f32.mrb[0].mxu0
  %v2459 = vadd.f32 0.0, %v2458
  %v2460 = vpop.f32.mrb[0].mxu0
  %v2461 = vpop.f32.mrb[0].mxu0
  %v2462 = vadd.f32 0.0, %v2461
  %v2463 = vpop.f32.mrb[0].mxu0
  %2464 = vmatprep.mubr.bf16.mxu0 0
  %2465 = vmatmul.mubr.bf16.gmra.mrb[0].mxu0 %v106
  %v2466 = vpop.f32.mrb[0].mxu0
  %v2467 = vadd.f32 0.0, %v2466
  %v2468 = vpop.f32.mrb[0].mxu0
  %v2469 = vpop.f32.mrb[0].mxu0
  %v2470 = vadd.f32 0.0, %v2469
  %v2471 = vpop.f32.mrb[0].mxu0
  %2472 = vmatprep.mubr.bf16.mxu0 0
  %2473 = vmatmul.mubr.bf16.gmra.mrb[0].mxu0 %v107
  %v2474 = vpop.f32.mrb[0].mxu0
  %v2475 = vadd.f32 0.0, %v2474
  %v2476 = vpop.f32.mrb[0].mxu0
  %v2477 = vpop.f32.mrb[0].mxu0
  %v2478 = vadd.f32 0.0, %v2477
  %v2479 = vpop.f32.mrb[0].mxu0
  %2480 = vmatprep.mubr.bf16.mxu0 0
  %2481 = vmatmul.mubr.bf16.gmra.mrb[0].mxu0 %v108
  %v2482 = vpop.f32.mrb[0].mxu0
  %v2483 = vadd.f32 0.0, %v2482
  %v2484 = vpop.f32.mrb[0].mxu0
  %v2485 = vpop.f32.mrb[0].mxu0
  %v2486 = vadd.f32 0.0, %v2485
  %v2487 = vpop.f32.mrb[0].mxu0
  %2488 = vmatprep.mubr.bf16.mxu0 0
  %2489 = vmatmul.mubr.bf16.gmra.mrb[0].mxu0 %v109
  %v2490 = vpop.f32.mrb[0].mxu0
  %v2491 = vadd.f32 0.0, %v2490
  %v2492 = vpop.f32.mrb[0].mxu0
  %v2493 = vpop.f32.mrb[0].mxu0
  %v2494 = vadd.f32 0.0, %v2493
  %v2495 = vpop.f32.mrb[0].mxu0
  %2496 = vdwg.mxu0
  %v2497 = vmul.f32 %v2435, 2.0
  %v2498 = vmul.f32 %v2438, 2.0
  %v2499 = vmul.f32 %v2443, 2.0
  %v2500 = vmul.f32 %v2446, 2.0
  %v2501 = vmul.f32 %v2451, 2.0
  %v2502 = vmul.f32 %v2454, 2.0
  %v2503 = vmul.f32 %v2459, 2.0
  %v2504 = vmul.f32 %v2462, 2.0
  %v2505 = vmul.f32 %v2467, 2.0
  %v2506 = vmul.f32 %v2470, 2.0
  %v2507 = vmul.f32 %v2475, 2.0
  %v2508 = vmul.f32 %v2478, 2.0
  %v2509 = vmul.f32 %v2483, 2.0
  %v2510 = vmul.f32 %v2486, 2.0
  %v2511 = vmul.f32 %v2491, 2.0
  %v2512 = vmul.f32 %v2494, 2.0
  %v2513 = vsub.f32 %v2497, %v2239
  %v2514 = vsub.f32 %v2498, %v2240
  %v2515 = vsub.f32 %v2499, %v2241
  %v2516 = vsub.f32 %v2500, %v2242
  %v2517 = vsub.f32 %v2501, %v2243
  %v2518 = vsub.f32 %v2502, %v2244
  %v2519 = vsub.f32 %v2503, %v2245
  %v2520 = vsub.f32 %v2504, %v2246
  %v2521 = vsub.f32 %v2505, %v2247
  %v2522 = vsub.f32 %v2506, %v2248
  %v2523 = vsub.f32 %v2507, %v2249
  %v2524 = vsub.f32 %v2508, %v2250
  %v2525 = vsub.f32 %v2509, %v2251
  %v2526 = vsub.f32 %v2510, %v2252
  %v2527 = vsub.f32 %v2511, %v2253
  %v2528 = vsub.f32 %v2512, %v2254
  %v2529 = vpack.c.bf16 %v2514, %v2513
  %v2530 = vpack.c.bf16 %v2516, %v2515
  %v2531 = vpack.c.bf16 %v2518, %v2517
  %v2532 = vpack.c.bf16 %v2520, %v2519
  %v2533 = vpack.c.bf16 %v2522, %v2521
  %v2534 = vpack.c.bf16 %v2524, %v2523
  %v2535 = vpack.c.bf16 %v2526, %v2525
  %v2536 = vpack.c.bf16 %v2528, %v2527
  %2537 = vmatprep.subr.bf16.mxu0 0
  %2538 = vmatpush1.bf16.msra.mxu0 %v2529
  %2539 = vmatprep.subr.bf16.mxu0 0
  %2540 = vmatpush1.bf16.msra.mxu0 %v2530
  %2541 = vmatprep.subr.bf16.mxu0 0
  %2542 = vmatpush1.bf16.msra.mxu0 %v2531
  %2543 = vmatprep.subr.bf16.mxu0 0
  %2544 = vmatpush1.bf16.msra.mxu0 %v2532
  %2545 = vmatprep.subr.bf16.mxu0 0
  %2546 = vmatpush1.bf16.msra.mxu0 %v2533
  %2547 = vmatprep.subr.bf16.mxu0 0
  %2548 = vmatpush1.bf16.msra.mxu0 %v2534
  %2549 = vmatprep.subr.bf16.mxu0 0
  %2550 = vmatpush1.bf16.msra.mxu0 %v2535
  %2551 = vmatprep.subr.bf16.mxu0 0
  %2552 = vmatpush1.bf16.msra.mxu0 %v2536
  %2553 = vmatprep.subr.bf16.mxu0 0
  %2554 = vmatpush1.bf16.msra.mxu0 0
  %2555 = vmatprep.subr.bf16.mxu0 0
  %2556 = vmatpush1.bf16.msra.mxu0 0
  %2557 = vmatprep.subr.bf16.mxu0 0
  %2558 = vmatpush1.bf16.msra.mxu0 0
  %2559 = vmatprep.subr.bf16.mxu0 0
  %2560 = vmatpush1.bf16.msra.mxu0 0
  %2561 = vmatprep.subr.bf16.mxu0 0
  %2562 = vmatpush1.bf16.msra.mxu0 0
  %2563 = vmatprep.subr.bf16.mxu0 0
  %2564 = vmatpush1.bf16.msra.mxu0 0
  %2565 = vmatprep.subr.bf16.mxu0 0
  %2566 = vmatpush1.bf16.msra.mxu0 0
  %2567 = vmatprep.subr.bf16.mxu0 0
  %2568 = vmatpush1.bf16.msra.mxu0 0
  %2569 = vmatprep.mubr.bf16.mxu0 0
  %2570 = vmatmul.mubr.bf16.gmra.mrb[0].mxu0 %v102
  %v2571 = vpop.f32.mrb[0].mxu0
  %v2572 = vadd.f32 0.0, %v2571
  %v2573 = vpop.f32.mrb[0].mxu0
  %v2574 = vpop.f32.mrb[0].mxu0
  %v2575 = vadd.f32 0.0, %v2574
  %v2576 = vpop.f32.mrb[0].mxu0
  %2577 = vmatprep.mubr.bf16.mxu0 0
  %2578 = vmatmul.mubr.bf16.gmra.mrb[0].mxu0 %v103
  %v2579 = vpop.f32.mrb[0].mxu0
  %v2580 = vadd.f32 0.0, %v2579
  %v2581 = vpop.f32.mrb[0].mxu0
  %v2582 = vpop.f32.mrb[0].mxu0
  %v2583 = vadd.f32 0.0, %v2582
  %v2584 = vpop.f32.mrb[0].mxu0
  %2585 = vmatprep.mubr.bf16.mxu0 0
  %2586 = vmatmul.mubr.bf16.gmra.mrb[0].mxu0 %v104
  %v2587 = vpop.f32.mrb[0].mxu0
  %v2588 = vadd.f32 0.0, %v2587
  %v2589 = vpop.f32.mrb[0].mxu0
  %v2590 = vpop.f32.mrb[0].mxu0
  %v2591 = vadd.f32 0.0, %v2590
  %v2592 = vpop.f32.mrb[0].mxu0
  %2593 = vmatprep.mubr.bf16.mxu0 0
  %2594 = vmatmul.mubr.bf16.gmra.mrb[0].mxu0 %v105
  %v2595 = vpop.f32.mrb[0].mxu0
  %v2596 = vadd.f32 0.0, %v2595
  %v2597 = vpop.f32.mrb[0].mxu0
  %v2598 = vpop.f32.mrb[0].mxu0
  %v2599 = vadd.f32 0.0, %v2598
  %v2600 = vpop.f32.mrb[0].mxu0
  %2601 = vmatprep.mubr.bf16.mxu0 0
  %2602 = vmatmul.mubr.bf16.gmra.mrb[0].mxu0 %v106
  %v2603 = vpop.f32.mrb[0].mxu0
  %v2604 = vadd.f32 0.0, %v2603
  %v2605 = vpop.f32.mrb[0].mxu0
  %v2606 = vpop.f32.mrb[0].mxu0
  %v2607 = vadd.f32 0.0, %v2606
  %v2608 = vpop.f32.mrb[0].mxu0
  %2609 = vmatprep.mubr.bf16.mxu0 0
  %2610 = vmatmul.mubr.bf16.gmra.mrb[0].mxu0 %v107
  %v2611 = vpop.f32.mrb[0].mxu0
  %v2612 = vadd.f32 0.0, %v2611
  %v2613 = vpop.f32.mrb[0].mxu0
  %v2614 = vpop.f32.mrb[0].mxu0
  %v2615 = vadd.f32 0.0, %v2614
  %v2616 = vpop.f32.mrb[0].mxu0
  %2617 = vmatprep.mubr.bf16.mxu0 0
  %2618 = vmatmul.mubr.bf16.gmra.mrb[0].mxu0 %v108
  %v2619 = vpop.f32.mrb[0].mxu0
  %v2620 = vadd.f32 0.0, %v2619
  %v2621 = vpop.f32.mrb[0].mxu0
  %v2622 = vpop.f32.mrb[0].mxu0
  %v2623 = vadd.f32 0.0, %v2622
  %v2624 = vpop.f32.mrb[0].mxu0
  %2625 = vmatprep.mubr.bf16.mxu0 0
  %2626 = vmatmul.mubr.bf16.gmra.mrb[0].mxu0 %v109
  %v2627 = vpop.f32.mrb[0].mxu0
  %v2628 = vadd.f32 0.0, %v2627
  %v2629 = vpop.f32.mrb[0].mxu0
  %v2630 = vpop.f32.mrb[0].mxu0
  %v2631 = vadd.f32 0.0, %v2630
  %v2632 = vpop.f32.mrb[0].mxu0
  %2633 = vdwg.mxu0
  %v2634 = vmul.f32 %v2572, 2.0
  %v2635 = vmul.f32 %v2575, 2.0
  %v2636 = vmul.f32 %v2580, 2.0
  %v2637 = vmul.f32 %v2583, 2.0
  %v2638 = vmul.f32 %v2588, 2.0
  %v2639 = vmul.f32 %v2591, 2.0
  %v2640 = vmul.f32 %v2596, 2.0
  %v2641 = vmul.f32 %v2599, 2.0
  %v2642 = vmul.f32 %v2604, 2.0
  %v2643 = vmul.f32 %v2607, 2.0
  %v2644 = vmul.f32 %v2612, 2.0
  %v2645 = vmul.f32 %v2615, 2.0
  %v2646 = vmul.f32 %v2620, 2.0
  %v2647 = vmul.f32 %v2623, 2.0
  %v2648 = vmul.f32 %v2628, 2.0
  %v2649 = vmul.f32 %v2631, 2.0
  %v2650 = vsub.f32 %v2634, %v2376
  %v2651 = vsub.f32 %v2635, %v2377
  %v2652 = vsub.f32 %v2636, %v2378
  %v2653 = vsub.f32 %v2637, %v2379
  %v2654 = vsub.f32 %v2638, %v2380
  %v2655 = vsub.f32 %v2639, %v2381
  %v2656 = vsub.f32 %v2640, %v2382
  %v2657 = vsub.f32 %v2641, %v2383
  %v2658 = vsub.f32 %v2642, %v2384
  %v2659 = vsub.f32 %v2643, %v2385
  %v2660 = vsub.f32 %v2644, %v2386
  %v2661 = vsub.f32 %v2645, %v2387
  %v2662 = vsub.f32 %v2646, %v2388
  %v2663 = vsub.f32 %v2647, %v2389
  %v2664 = vsub.f32 %v2648, %v2390
  %v2665 = vsub.f32 %v2649, %v2391
  %v2666 = vpack.c.bf16 %v2651, %v2650
  %v2667 = vpack.c.bf16 %v2653, %v2652
  %v2668 = vpack.c.bf16 %v2655, %v2654
  %v2669 = vpack.c.bf16 %v2657, %v2656
  %v2670 = vpack.c.bf16 %v2659, %v2658
  %v2671 = vpack.c.bf16 %v2661, %v2660
  %v2672 = vpack.c.bf16 %v2663, %v2662
  %v2673 = vpack.c.bf16 %v2665, %v2664
  %2674 = vmatprep.subr.bf16.mxu0 0
  %2675 = vmatpush1.bf16.msra.mxu0 %v2666
  %2676 = vmatprep.subr.bf16.mxu0 0
  %2677 = vmatpush1.bf16.msra.mxu0 %v2667
  %2678 = vmatprep.subr.bf16.mxu0 0
  %2679 = vmatpush1.bf16.msra.mxu0 %v2668
  %2680 = vmatprep.subr.bf16.mxu0 0
  %2681 = vmatpush1.bf16.msra.mxu0 %v2669
  %2682 = vmatprep.subr.bf16.mxu0 0
  %2683 = vmatpush1.bf16.msra.mxu0 %v2670
  %2684 = vmatprep.subr.bf16.mxu0 0
  %2685 = vmatpush1.bf16.msra.mxu0 %v2671
  %2686 = vmatprep.subr.bf16.mxu0 0
  %2687 = vmatpush1.bf16.msra.mxu0 %v2672
  %2688 = vmatprep.subr.bf16.mxu0 0
  %2689 = vmatpush1.bf16.msra.mxu0 %v2673
  %2690 = vmatprep.subr.bf16.mxu0 0
  %2691 = vmatpush1.bf16.msra.mxu0 0
  %2692 = vmatprep.subr.bf16.mxu0 0
  %2693 = vmatpush1.bf16.msra.mxu0 0
  %2694 = vmatprep.subr.bf16.mxu0 0
  %2695 = vmatpush1.bf16.msra.mxu0 0
  %2696 = vmatprep.subr.bf16.mxu0 0
  %2697 = vmatpush1.bf16.msra.mxu0 0
  %2698 = vmatprep.subr.bf16.mxu0 0
  %2699 = vmatpush1.bf16.msra.mxu0 0
  %2700 = vmatprep.subr.bf16.mxu0 0
  %2701 = vmatpush1.bf16.msra.mxu0 0
  %2702 = vmatprep.subr.bf16.mxu0 0
  %2703 = vmatpush1.bf16.msra.mxu0 0
  %2704 = vmatprep.subr.bf16.mxu0 0
  %2705 = vmatpush1.bf16.msra.mxu0 0
  %2706 = vmatprep.mubr.bf16.mxu0 0
  %2707 = vmatmul.mubr.bf16.gmra.mrb[0].mxu0 %v102
  %v2708 = vpop.f32.mrb[0].mxu0
  %v2709 = vadd.f32 0.0, %v2708
  %v2710 = vpop.f32.mrb[0].mxu0
  %v2711 = vpop.f32.mrb[0].mxu0
  %v2712 = vadd.f32 0.0, %v2711
  %v2713 = vpop.f32.mrb[0].mxu0
  %2714 = vmatprep.mubr.bf16.mxu0 0
  %2715 = vmatmul.mubr.bf16.gmra.mrb[0].mxu0 %v103
  %v2716 = vpop.f32.mrb[0].mxu0
  %v2717 = vadd.f32 0.0, %v2716
  %v2718 = vpop.f32.mrb[0].mxu0
  %v2719 = vpop.f32.mrb[0].mxu0
  %v2720 = vadd.f32 0.0, %v2719
  %v2721 = vpop.f32.mrb[0].mxu0
  %2722 = vmatprep.mubr.bf16.mxu0 0
  %2723 = vmatmul.mubr.bf16.gmra.mrb[0].mxu0 %v104
  %v2724 = vpop.f32.mrb[0].mxu0
  %v2725 = vadd.f32 0.0, %v2724
  %v2726 = vpop.f32.mrb[0].mxu0
  %v2727 = vpop.f32.mrb[0].mxu0
  %v2728 = vadd.f32 0.0, %v2727
  %v2729 = vpop.f32.mrb[0].mxu0
  %2730 = vmatprep.mubr.bf16.mxu0 0
  %2731 = vmatmul.mubr.bf16.gmra.mrb[0].mxu0 %v105
  %v2732 = vpop.f32.mrb[0].mxu0
  %v2733 = vadd.f32 0.0, %v2732
  %v2734 = vpop.f32.mrb[0].mxu0
  %v2735 = vpop.f32.mrb[0].mxu0
  %v2736 = vadd.f32 0.0, %v2735
  %v2737 = vpop.f32.mrb[0].mxu0
  %2738 = vmatprep.mubr.bf16.mxu0 0
  %2739 = vmatmul.mubr.bf16.gmra.mrb[0].mxu0 %v106
  %v2740 = vpop.f32.mrb[0].mxu0
  %v2741 = vadd.f32 0.0, %v2740
  %v2742 = vpop.f32.mrb[0].mxu0
  %v2743 = vpop.f32.mrb[0].mxu0
  %v2744 = vadd.f32 0.0, %v2743
  %v2745 = vpop.f32.mrb[0].mxu0
  %2746 = vmatprep.mubr.bf16.mxu0 0
  %2747 = vmatmul.mubr.bf16.gmra.mrb[0].mxu0 %v107
  %v2748 = vpop.f32.mrb[0].mxu0
  %v2749 = vadd.f32 0.0, %v2748
  %v2750 = vpop.f32.mrb[0].mxu0
  %v2751 = vpop.f32.mrb[0].mxu0
  %v2752 = vadd.f32 0.0, %v2751
  %v2753 = vpop.f32.mrb[0].mxu0
  %2754 = vmatprep.mubr.bf16.mxu0 0
  %2755 = vmatmul.mubr.bf16.gmra.mrb[0].mxu0 %v108
  %v2756 = vpop.f32.mrb[0].mxu0
  %v2757 = vadd.f32 0.0, %v2756
  %v2758 = vpop.f32.mrb[0].mxu0
  %v2759 = vpop.f32.mrb[0].mxu0
  %v2760 = vadd.f32 0.0, %v2759
  %v2761 = vpop.f32.mrb[0].mxu0
  %2762 = vmatprep.mubr.bf16.mxu0 0
  %2763 = vmatmul.mubr.bf16.gmra.mrb[0].mxu0 %v109
  %v2764 = vpop.f32.mrb[0].mxu0
  %v2765 = vadd.f32 0.0, %v2764
  %v2766 = vpop.f32.mrb[0].mxu0
  %v2767 = vpop.f32.mrb[0].mxu0
  %v2768 = vadd.f32 0.0, %v2767
  %v2769 = vpop.f32.mrb[0].mxu0
  %2770 = vdwg.mxu0
  %v2771 = vmul.f32 %v2709, 2.0
  %v2772 = vmul.f32 %v2712, 2.0
  %v2773 = vmul.f32 %v2717, 2.0
  %v2774 = vmul.f32 %v2720, 2.0
  %v2775 = vmul.f32 %v2725, 2.0
  %v2776 = vmul.f32 %v2728, 2.0
  %v2777 = vmul.f32 %v2733, 2.0
  %v2778 = vmul.f32 %v2736, 2.0
  %v2779 = vmul.f32 %v2741, 2.0
  %v2780 = vmul.f32 %v2744, 2.0
  %v2781 = vmul.f32 %v2749, 2.0
  %v2782 = vmul.f32 %v2752, 2.0
  %v2783 = vmul.f32 %v2757, 2.0
  %v2784 = vmul.f32 %v2760, 2.0
  %v2785 = vmul.f32 %v2765, 2.0
  %v2786 = vmul.f32 %v2768, 2.0
  %v2787 = vsub.f32 %v2771, %v2513
  %v2788 = vsub.f32 %v2772, %v2514
  %v2789 = vsub.f32 %v2773, %v2515
  %v2790 = vsub.f32 %v2774, %v2516
  %v2791 = vsub.f32 %v2775, %v2517
  %v2792 = vsub.f32 %v2776, %v2518
  %v2793 = vsub.f32 %v2777, %v2519
  %v2794 = vsub.f32 %v2778, %v2520
  %v2795 = vsub.f32 %v2779, %v2521
  %v2796 = vsub.f32 %v2780, %v2522
  %v2797 = vsub.f32 %v2781, %v2523
  %v2798 = vsub.f32 %v2782, %v2524
  %v2799 = vsub.f32 %v2783, %v2525
  %v2800 = vsub.f32 %v2784, %v2526
  %v2801 = vsub.f32 %v2785, %v2527
  %v2802 = vsub.f32 %v2786, %v2528
  %2819 = vrot.lane.b32.xlu0 %v1919, 64
  %v2820 = vpop.permute.xlu0 %2819
  %2821 = vrot.lane.b32.xlu0 %v1922, 64
  %v2822 = vpop.permute.xlu0 %2821
  %2823 = vrot.lane.b32.xlu0 %v1927, 64
  %v2824 = vpop.permute.xlu0 %2823
  %2825 = vrot.lane.b32.xlu0 %v1930, 64
  %v2826 = vpop.permute.xlu0 %2825
  %2827 = vrot.lane.b32.xlu0 %v1935, 64
  %v2828 = vpop.permute.xlu0 %2827
  %2829 = vrot.lane.b32.xlu0 %v1938, 64
  %v2830 = vpop.permute.xlu0 %2829
  %2831 = vrot.lane.b32.xlu0 %v1943, 64
  %v2832 = vpop.permute.xlu0 %2831
  %2833 = vrot.lane.b32.xlu0 %v1946, 64
  %v2834 = vpop.permute.xlu0 %2833
  %2835 = vrot.lane.b32.xlu0 %v1951, 64
  %v2836 = vpop.permute.xlu0 %2835
  %2837 = vrot.lane.b32.xlu0 %v1954, 64
  %v2838 = vpop.permute.xlu0 %2837
  %2839 = vrot.lane.b32.xlu0 %v1959, 64
  %v2840 = vpop.permute.xlu0 %2839
  %2841 = vrot.lane.b32.xlu0 %v1962, 64
  %v2842 = vpop.permute.xlu0 %2841
  %2843 = vrot.lane.b32.xlu0 %v1967, 64
  %v2844 = vpop.permute.xlu0 %2843
  %2845 = vrot.lane.b32.xlu0 %v1970, 64
  %v2846 = vpop.permute.xlu0 %2845
  %2847 = vrot.lane.b32.xlu0 %v1975, 64
  %v2848 = vpop.permute.xlu0 %2847
  %2849 = vrot.lane.b32.xlu0 %v1978, 64
  %v2850 = vpop.permute.xlu0 %2849
  %2883 = vrot.lane.b32.xlu0 %v2239, 64
  %v2884 = vpop.permute.xlu0 %2883
  %2885 = vrot.lane.b32.xlu0 %v2240, 64
  %v2886 = vpop.permute.xlu0 %2885
  %2887 = vrot.lane.b32.xlu0 %v2241, 64
  %v2888 = vpop.permute.xlu0 %2887
  %2889 = vrot.lane.b32.xlu0 %v2242, 64
  %v2890 = vpop.permute.xlu0 %2889
  %2891 = vrot.lane.b32.xlu0 %v2243, 64
  %v2892 = vpop.permute.xlu0 %2891
  %2893 = vrot.lane.b32.xlu0 %v2244, 64
  %v2894 = vpop.permute.xlu0 %2893
  %2895 = vrot.lane.b32.xlu0 %v2245, 64
  %v2896 = vpop.permute.xlu0 %2895
  %2897 = vrot.lane.b32.xlu0 %v2246, 64
  %v2898 = vpop.permute.xlu0 %2897
  %2899 = vrot.lane.b32.xlu0 %v2247, 64
  %v2900 = vpop.permute.xlu0 %2899
  %2901 = vrot.lane.b32.xlu0 %v2248, 64
  %v2902 = vpop.permute.xlu0 %2901
  %2903 = vrot.lane.b32.xlu0 %v2249, 64
  %v2904 = vpop.permute.xlu0 %2903
  %2905 = vrot.lane.b32.xlu0 %v2250, 64
  %v2906 = vpop.permute.xlu0 %2905
  %2907 = vrot.lane.b32.xlu0 %v2251, 64
  %v2908 = vpop.permute.xlu0 %2907
  %2909 = vrot.lane.b32.xlu0 %v2252, 64
  %v2910 = vpop.permute.xlu0 %2909
  %2911 = vrot.lane.b32.xlu0 %v2253, 64
  %v2912 = vpop.permute.xlu0 %2911
  %2913 = vrot.lane.b32.xlu0 %v2254, 64
  %v2914 = vpop.permute.xlu0 %2913
  %2947 = vrot.lane.b32.xlu0 %v2513, 64
  %v2948 = vpop.permute.xlu0 %2947
  %2949 = vrot.lane.b32.xlu0 %v2514, 64
  %v2950 = vpop.permute.xlu0 %2949
  %2951 = vrot.lane.b32.xlu0 %v2515, 64
  %v2952 = vpop.permute.xlu0 %2951
  %2953 = vrot.lane.b32.xlu0 %v2516, 64
  %v2954 = vpop.permute.xlu0 %2953
  %2955 = vrot.lane.b32.xlu0 %v2517, 64
  %v2956 = vpop.permute.xlu0 %2955
  %2957 = vrot.lane.b32.xlu0 %v2518, 64
  %v2958 = vpop.permute.xlu0 %2957
  %2959 = vrot.lane.b32.xlu0 %v2519, 64
  %v2960 = vpop.permute.xlu0 %2959
  %2961 = vrot.lane.b32.xlu0 %v2520, 64
  %v2962 = vpop.permute.xlu0 %2961
  %2963 = vrot.lane.b32.xlu0 %v2521, 64
  %v2964 = vpop.permute.xlu0 %2963
  %2965 = vrot.lane.b32.xlu0 %v2522, 64
  %v2966 = vpop.permute.xlu0 %2965
  %2967 = vrot.lane.b32.xlu0 %v2523, 64
  %v2968 = vpop.permute.xlu0 %2967
  %2969 = vrot.lane.b32.xlu0 %v2524, 64
  %v2970 = vpop.permute.xlu0 %2969
  %2971 = vrot.lane.b32.xlu0 %v2525, 64
  %v2972 = vpop.permute.xlu0 %2971
  %2973 = vrot.lane.b32.xlu0 %v2526, 64
  %v2974 = vpop.permute.xlu0 %2973
  %2975 = vrot.lane.b32.xlu0 %v2527, 64
  %v2976 = vpop.permute.xlu0 %2975
  %2977 = vrot.lane.b32.xlu0 %v2528, 64
  %v2978 = vpop.permute.xlu0 %2977
  %3011 = vrot.lane.b32.xlu0 %v2787, 64
  %v3012 = vpop.permute.xlu0 %3011
  %3013 = vrot.lane.b32.xlu0 %v2788, 64
  %v3014 = vpop.permute.xlu0 %3013
  %3015 = vrot.lane.b32.xlu0 %v2789, 64
  %v3016 = vpop.permute.xlu0 %3015
  %3017 = vrot.lane.b32.xlu0 %v2790, 64
  %v3018 = vpop.permute.xlu0 %3017
  %3019 = vrot.lane.b32.xlu0 %v2791, 64
  %v3020 = vpop.permute.xlu0 %3019
  %3021 = vrot.lane.b32.xlu0 %v2792, 64
  %v3022 = vpop.permute.xlu0 %3021
  %3023 = vrot.lane.b32.xlu0 %v2793, 64
  %v3024 = vpop.permute.xlu0 %3023
  %3025 = vrot.lane.b32.xlu0 %v2794, 64
  %v3026 = vpop.permute.xlu0 %3025
  %3027 = vrot.lane.b32.xlu0 %v2795, 64
  %v3028 = vpop.permute.xlu0 %3027
  %3029 = vrot.lane.b32.xlu0 %v2796, 64
  %v3030 = vpop.permute.xlu0 %3029
  %3031 = vrot.lane.b32.xlu0 %v2797, 64
  %v3032 = vpop.permute.xlu0 %3031
  %3033 = vrot.lane.b32.xlu0 %v2798, 64
  %v3034 = vpop.permute.xlu0 %3033
  %3035 = vrot.lane.b32.xlu0 %v2799, 64
  %v3036 = vpop.permute.xlu0 %3035
  %3037 = vrot.lane.b32.xlu0 %v2800, 64
  %v3038 = vpop.permute.xlu0 %3037
  %3039 = vrot.lane.b32.xlu0 %v2801, 64
  %v3040 = vpop.permute.xlu0 %3039
  %3041 = vrot.lane.b32.xlu0 %v2802, 64
  %v3042 = vpop.permute.xlu0 %3041
  %v3059 = vsel %vm1536, %v1860, %v2820
  %v3060 = vsel %vm1536, %v1861, %v2822
  %v3061 = vsel %vm1536, %v1862, %v2824
  %v3062 = vsel %vm1536, %v1863, %v2826
  %v3063 = vsel %vm1536, %v1864, %v2828
  %v3064 = vsel %vm1536, %v1865, %v2830
  %v3065 = vsel %vm1536, %v1866, %v2832
  %v3066 = vsel %vm1536, %v1867, %v2834
  %v3067 = vsel %vm1536, %v1868, %v2836
  %v3068 = vsel %vm1536, %v1869, %v2838
  %v3069 = vsel %vm1536, %v1870, %v2840
  %v3070 = vsel %vm1536, %v1871, %v2842
  %v3071 = vsel %vm1536, %v1872, %v2844
  %v3072 = vsel %vm1536, %v1873, %v2846
  %v3073 = vsel %vm1536, %v1874, %v2848
  %v3074 = vsel %vm1536, %v1875, %v2850
  %v3075 = vsel %vm1536, %v2102, %v2884
  %v3076 = vsel %vm1536, %v2103, %v2886
  %v3077 = vsel %vm1536, %v2104, %v2888
  %v3078 = vsel %vm1536, %v2105, %v2890
  %v3079 = vsel %vm1536, %v2106, %v2892
  %v3080 = vsel %vm1536, %v2107, %v2894
  %v3081 = vsel %vm1536, %v2108, %v2896
  %v3082 = vsel %vm1536, %v2109, %v2898
  %v3083 = vsel %vm1536, %v2110, %v2900
  %v3084 = vsel %vm1536, %v2111, %v2902
  %v3085 = vsel %vm1536, %v2112, %v2904
  %v3086 = vsel %vm1536, %v2113, %v2906
  %v3087 = vsel %vm1536, %v2114, %v2908
  %v3088 = vsel %vm1536, %v2115, %v2910
  %v3089 = vsel %vm1536, %v2116, %v2912
  %v3090 = vsel %vm1536, %v2117, %v2914
  %v3091 = vsel %vm1536, %v2376, %v2948
  %v3092 = vsel %vm1536, %v2377, %v2950
  %v3093 = vsel %vm1536, %v2378, %v2952
  %v3094 = vsel %vm1536, %v2379, %v2954
  %v3095 = vsel %vm1536, %v2380, %v2956
  %v3096 = vsel %vm1536, %v2381, %v2958
  %v3097 = vsel %vm1536, %v2382, %v2960
  %v3098 = vsel %vm1536, %v2383, %v2962
  %v3099 = vsel %vm1536, %v2384, %v2964
  %v3100 = vsel %vm1536, %v2385, %v2966
  %v3101 = vsel %vm1536, %v2386, %v2968
  %v3102 = vsel %vm1536, %v2387, %v2970
  %v3103 = vsel %vm1536, %v2388, %v2972
  %v3104 = vsel %vm1536, %v2389, %v2974
  %v3105 = vsel %vm1536, %v2390, %v2976
  %v3106 = vsel %vm1536, %v2391, %v2978
  %v3107 = vsel %vm1536, %v2650, %v3012
  %v3108 = vsel %vm1536, %v2651, %v3014
  %v3109 = vsel %vm1536, %v2652, %v3016
  %v3110 = vsel %vm1536, %v2653, %v3018
  %v3111 = vsel %vm1536, %v2654, %v3020
  %v3112 = vsel %vm1536, %v2655, %v3022
  %v3113 = vsel %vm1536, %v2656, %v3024
  %v3114 = vsel %vm1536, %v2657, %v3026
  %v3115 = vsel %vm1536, %v2658, %v3028
  %v3116 = vsel %vm1536, %v2659, %v3030
  %v3117 = vsel %vm1536, %v2660, %v3032
  %v3118 = vsel %vm1536, %v2661, %v3034
  %v3119 = vsel %vm1536, %v2662, %v3036
  %v3120 = vsel %vm1536, %v2663, %v3038
  %v3121 = vsel %vm1536, %v2664, %v3040
  %v3122 = vsel %vm1536, %v2665, %v3042
  %v3123 = vpack.c.bf16 %v3060, %v3059
  %v3124 = vpack.c.bf16 %v3076, %v3075
  %v3125 = vpack.c.bf16 %v3092, %v3091
  %v3126 = vpack.c.bf16 %v3108, %v3107
  %v3127 = vpack.c.bf16 %v3062, %v3061
  %v3128 = vpack.c.bf16 %v3078, %v3077
  %v3129 = vpack.c.bf16 %v3094, %v3093
  %v3130 = vpack.c.bf16 %v3110, %v3109
  %v3131 = vpack.c.bf16 %v3064, %v3063
  %v3132 = vpack.c.bf16 %v3080, %v3079
  %v3133 = vpack.c.bf16 %v3096, %v3095
  %v3134 = vpack.c.bf16 %v3112, %v3111
  %v3135 = vpack.c.bf16 %v3066, %v3065
  %v3136 = vpack.c.bf16 %v3082, %v3081
  %v3137 = vpack.c.bf16 %v3098, %v3097
  %v3138 = vpack.c.bf16 %v3114, %v3113
  %v3139 = vpack.c.bf16 %v3068, %v3067
  %v3140 = vpack.c.bf16 %v3084, %v3083
  %v3141 = vpack.c.bf16 %v3100, %v3099
  %v3142 = vpack.c.bf16 %v3116, %v3115
  %v3143 = vpack.c.bf16 %v3070, %v3069
  %v3144 = vpack.c.bf16 %v3086, %v3085
  %v3145 = vpack.c.bf16 %v3102, %v3101
  %v3146 = vpack.c.bf16 %v3118, %v3117
  %v3147 = vpack.c.bf16 %v3072, %v3071
  %v3148 = vpack.c.bf16 %v3088, %v3087
  %v3149 = vpack.c.bf16 %v3104, %v3103
  %v3150 = vpack.c.bf16 %v3120, %v3119
  %v3151 = vpack.c.bf16 %v3074, %v3073
  %v3152 = vpack.c.bf16 %v3090, %v3089
  %v3153 = vpack.c.bf16 %v3106, %v3105
  %v3154 = vpack.c.bf16 %v3122, %v3121
  %v3155 = vld [vmem:[%s4] sm:$0xf]
  %v3156 = vld [vmem:[%s4 + $0x4] sm:$0xf]
  %v3157 = vld [vmem:[%s4 + $0x8] sm:$0xf]
  %v3158 = vld [vmem:[%s4 + $0xc] sm:$0xf]
  %v3159 = vld [vmem:[%s4 + $0x10] sm:$0xf]
  %v3160 = vld [vmem:[%s4 + $0x14] sm:$0xf]
  %v3161 = vld [vmem:[%s4 + $0x18] sm:$0xf]
  %v3162 = vld [vmem:[%s4 + $0x1c] sm:$0xf]
  %v3163 = vld [vmem:[%s4 + $0x20] sm:$0xf]
  %v3164 = vld [vmem:[%s4 + $0x24] sm:$0xf]
  %v3165 = vld [vmem:[%s4 + $0x28] sm:$0xf]
  %v3166 = vld [vmem:[%s4 + $0x2c] sm:$0xf]
  %v3167 = vld [vmem:[%s4 + $0x30] sm:$0xf]
  %v3168 = vld [vmem:[%s4 + $0x34] sm:$0xf]
  %v3169 = vld [vmem:[%s4 + $0x38] sm:$0xf]
  %v3170 = vld [vmem:[%s4 + $0x3c] sm:$0xf]
  %v3171 = vld [vmem:[%s4 + $0x40] sm:$0xf]
  %v3172 = vld [vmem:[%s4 + $0x44] sm:$0xf]
  %v3173 = vld [vmem:[%s4 + $0x48] sm:$0xf]
  %v3174 = vld [vmem:[%s4 + $0x4c] sm:$0xf]
  %v3175 = vld [vmem:[%s4 + $0x50] sm:$0xf]
  %v3176 = vld [vmem:[%s4 + $0x54] sm:$0xf]
  %v3177 = vld [vmem:[%s4 + $0x58] sm:$0xf]
  %v3178 = vld [vmem:[%s4 + $0x5c] sm:$0xf]
  %v3179 = vld [vmem:[%s4 + $0x60] sm:$0xf]
  %v3180 = vld [vmem:[%s4 + $0x64] sm:$0xf]
  %v3181 = vld [vmem:[%s4 + $0x68] sm:$0xf]
  %v3182 = vld [vmem:[%s4 + $0x6c] sm:$0xf]
  %v3183 = vld [vmem:[%s4 + $0x70] sm:$0xf]
  %v3184 = vld [vmem:[%s4 + $0x74] sm:$0xf]
  %v3185 = vld [vmem:[%s4 + $0x78] sm:$0xf]
  %v3186 = vld [vmem:[%s4 + $0x7c] sm:$0xf]
  %v3187 = vld [vmem:[%s4 + $0x80] sm:$0xf]
  %v3188 = vld [vmem:[%s4 + $0x84] sm:$0xf]
  %v3189 = vld [vmem:[%s4 + $0x88] sm:$0xf]
  %v3190 = vld [vmem:[%s4 + $0x8c] sm:$0xf]
  %v3191 = vld [vmem:[%s4 + $0x90] sm:$0xf]
  %v3192 = vld [vmem:[%s4 + $0x94] sm:$0xf]
  %v3193 = vld [vmem:[%s4 + $0x98] sm:$0xf]
  %v3194 = vld [vmem:[%s4 + $0x9c] sm:$0xf]
  %v3195 = vld [vmem:[%s4 + $0xa0] sm:$0xf]
  %v3196 = vld [vmem:[%s4 + $0xa4] sm:$0xf]
  %v3197 = vld [vmem:[%s4 + $0xa8] sm:$0xf]
  %v3198 = vld [vmem:[%s4 + $0xac] sm:$0xf]
  %v3199 = vld [vmem:[%s4 + $0xb0] sm:$0xf]
  %v3200 = vld [vmem:[%s4 + $0xb4] sm:$0xf]
  %v3201 = vld [vmem:[%s4 + $0xb8] sm:$0xf]
  %v3202 = vld [vmem:[%s4 + $0xbc] sm:$0xf]
  %v3203 = vld [vmem:[%s4 + $0xc0] sm:$0xf]
  %v3204 = vld [vmem:[%s4 + $0xc4] sm:$0xf]
  %v3205 = vld [vmem:[%s4 + $0xc8] sm:$0xf]
  %v3206 = vld [vmem:[%s4 + $0xcc] sm:$0xf]
  %v3207 = vld [vmem:[%s4 + $0xd0] sm:$0xf]
  %v3208 = vld [vmem:[%s4 + $0xd4] sm:$0xf]
  %v3209 = vld [vmem:[%s4 + $0xd8] sm:$0xf]
  %v3210 = vld [vmem:[%s4 + $0xdc] sm:$0xf]
  %v3211 = vld [vmem:[%s4 + $0xe0] sm:$0xf]
  %v3212 = vld [vmem:[%s4 + $0xe4] sm:$0xf]
  %v3213 = vld [vmem:[%s4 + $0xe8] sm:$0xf]
  %v3214 = vld [vmem:[%s4 + $0xec] sm:$0xf]
  %v3215 = vld [vmem:[%s4 + $0xf0] sm:$0xf]
  %v3216 = vld [vmem:[%s4 + $0xf4] sm:$0xf]
  %v3217 = vld [vmem:[%s4 + $0xf8] sm:$0xf]
  %v3218 = vld [vmem:[%s4 + $0xfc] sm:$0xf]
  %v3219 = vld [vmem:[%s5] sm:$0x1]
  %v3221 = vlaneseq
  %v3222 = vshrl.u32 %v3221, 7
  %v3223 = vsub.s32 0, %v3222
  %v3224 = vrot.slane %v3219, %v3223
  %v3290 = vunpack.c.l.b16 %v3155
  %v3291 = vunpack.c.l.b16 %v3156
  %v3292 = vunpack.c.l.b16 %v3157
  %v3293 = vunpack.c.l.b16 %v3158
  %v3294 = vunpack.c.l.b16 %v3159
  %v3295 = vunpack.c.l.b16 %v3160
  %v3296 = vunpack.c.l.b16 %v3161
  %v3297 = vunpack.c.l.b16 %v3162
  %v3298 = vunpack.c.l.b16 %v3163
  %v3299 = vunpack.c.l.b16 %v3164
  %v3300 = vunpack.c.l.b16 %v3165
  %v3301 = vunpack.c.l.b16 %v3166
  %v3302 = vunpack.c.l.b16 %v3167
  %v3303 = vunpack.c.l.b16 %v3168
  %v3304 = vunpack.c.l.b16 %v3169
  %v3305 = vunpack.c.l.b16 %v3170
  %v3306 = vunpack.c.l.b16 %v3171
  %v3307 = vunpack.c.l.b16 %v3172
  %v3308 = vunpack.c.l.b16 %v3173
  %v3309 = vunpack.c.l.b16 %v3174
  %v3310 = vunpack.c.l.b16 %v3175
  %v3311 = vunpack.c.l.b16 %v3176
  %v3312 = vunpack.c.l.b16 %v3177
  %v3313 = vunpack.c.l.b16 %v3178
  %v3314 = vunpack.c.l.b16 %v3179
  %v3315 = vunpack.c.l.b16 %v3180
  %v3316 = vunpack.c.l.b16 %v3181
  %v3317 = vunpack.c.l.b16 %v3182
  %v3318 = vunpack.c.l.b16 %v3183
  %v3319 = vunpack.c.l.b16 %v3184
  %v3320 = vunpack.c.l.b16 %v3185
  %v3321 = vunpack.c.l.b16 %v3186
  %v3322 = vunpack.c.l.b16 %v3187
  %v3323 = vunpack.c.l.b16 %v3188
  %v3324 = vunpack.c.l.b16 %v3189
  %v3325 = vunpack.c.l.b16 %v3190
  %v3326 = vunpack.c.l.b16 %v3191
  %v3327 = vunpack.c.l.b16 %v3192
  %v3328 = vunpack.c.l.b16 %v3193
  %v3329 = vunpack.c.l.b16 %v3194
  %v3330 = vunpack.c.l.b16 %v3195
  %v3331 = vunpack.c.l.b16 %v3196
  %v3332 = vunpack.c.l.b16 %v3197
  %v3333 = vunpack.c.l.b16 %v3198
  %v3334 = vunpack.c.l.b16 %v3199
  %v3335 = vunpack.c.l.b16 %v3200
  %v3336 = vunpack.c.l.b16 %v3201
  %v3337 = vunpack.c.l.b16 %v3202
  %v3338 = vunpack.c.l.b16 %v3203
  %v3339 = vunpack.c.l.b16 %v3204
  %v3340 = vunpack.c.l.b16 %v3205
  %v3341 = vunpack.c.l.b16 %v3206
  %v3342 = vunpack.c.l.b16 %v3207
  %v3343 = vunpack.c.l.b16 %v3208
  %v3344 = vunpack.c.l.b16 %v3209
  %v3345 = vunpack.c.l.b16 %v3210
  %v3346 = vunpack.c.l.b16 %v3211
  %v3347 = vunpack.c.l.b16 %v3212
  %v3348 = vunpack.c.l.b16 %v3213
  %v3349 = vunpack.c.l.b16 %v3214
  %v3350 = vunpack.c.l.b16 %v3215
  %v3351 = vunpack.c.l.b16 %v3216
  %v3352 = vunpack.c.l.b16 %v3217
  %v3353 = vunpack.c.l.b16 %v3218
  %v3354 = vpack.c.b16 %v3291, %v3290
  %v3355 = vpack.c.b16 %v3293, %v3292
  %v3356 = vpack.c.b16 %v3295, %v3294
  %v3357 = vpack.c.b16 %v3297, %v3296
  %v3358 = vpack.c.b16 %v3299, %v3298
  %v3359 = vpack.c.b16 %v3301, %v3300
  %v3360 = vpack.c.b16 %v3303, %v3302
  %v3361 = vpack.c.b16 %v3305, %v3304
  %v3362 = vpack.c.b16 %v3307, %v3306
  %v3363 = vpack.c.b16 %v3309, %v3308
  %v3364 = vpack.c.b16 %v3311, %v3310
  %v3365 = vpack.c.b16 %v3313, %v3312
  %v3366 = vpack.c.b16 %v3315, %v3314
  %v3367 = vpack.c.b16 %v3317, %v3316
  %v3368 = vpack.c.b16 %v3319, %v3318
  %v3369 = vpack.c.b16 %v3321, %v3320
  %v3370 = vpack.c.b16 %v3323, %v3322
  %v3371 = vpack.c.b16 %v3325, %v3324
  %v3372 = vpack.c.b16 %v3327, %v3326
  %v3373 = vpack.c.b16 %v3329, %v3328
  %v3374 = vpack.c.b16 %v3331, %v3330
  %v3375 = vpack.c.b16 %v3333, %v3332
  %v3376 = vpack.c.b16 %v3335, %v3334
  %v3377 = vpack.c.b16 %v3337, %v3336
  %v3378 = vpack.c.b16 %v3339, %v3338
  %v3379 = vpack.c.b16 %v3341, %v3340
  %v3380 = vpack.c.b16 %v3343, %v3342
  %v3381 = vpack.c.b16 %v3345, %v3344
  %v3382 = vpack.c.b16 %v3347, %v3346
  %v3383 = vpack.c.b16 %v3349, %v3348
  %v3384 = vpack.c.b16 %v3351, %v3350
  %v3385 = vpack.c.b16 %v3353, %v3352
  %3418 = vmatprep.subr.bf16.mxu0 0
  %3419 = vmatpush1.bf16.msra.mxu0 %v3354
  %3420 = vmatprep.subr.bf16.mxu0 0
  %3421 = vmatpush1.bf16.msra.mxu0 %v3355
  %3422 = vmatprep.subr.bf16.mxu0 0
  %3423 = vmatpush1.bf16.msra.mxu0 %v3356
  %3424 = vmatprep.subr.bf16.mxu0 0
  %3425 = vmatpush1.bf16.msra.mxu0 %v3357
  %3426 = vmatprep.subr.bf16.mxu0 0
  %3427 = vmatpush1.bf16.msra.mxu0 %v3358
  %3428 = vmatprep.subr.bf16.mxu0 0
  %3429 = vmatpush1.bf16.msra.mxu0 %v3359
  %3430 = vmatprep.subr.bf16.mxu0 0
  %3431 = vmatpush1.bf16.msra.mxu0 %v3360
  %3432 = vmatprep.subr.bf16.mxu0 0
  %3433 = vmatpush1.bf16.msra.mxu0 %v3361
  %3434 = vmatprep.subr.bf16.mxu0 0
  %3435 = vmatpush1.bf16.msra.mxu0 %v3362
  %3436 = vmatprep.subr.bf16.mxu0 0
  %3437 = vmatpush1.bf16.msra.mxu0 %v3363
  %3438 = vmatprep.subr.bf16.mxu0 0
  %3439 = vmatpush1.bf16.msra.mxu0 %v3364
  %3440 = vmatprep.subr.bf16.mxu0 0
  %3441 = vmatpush1.bf16.msra.mxu0 %v3365
  %3442 = vmatprep.subr.bf16.mxu0 0
  %3443 = vmatpush1.bf16.msra.mxu0 %v3366
  %3444 = vmatprep.subr.bf16.mxu0 0
  %3445 = vmatpush1.bf16.msra.mxu0 %v3367
  %3446 = vmatprep.subr.bf16.mxu0 0
  %3447 = vmatpush1.bf16.msra.mxu0 %v3368
  %3448 = vmatprep.subr.bf16.mxu0 0
  %3449 = vmatpush1.bf16.msra.mxu0 %v3369
  %3450 = vmatprep.mubr.bf16.mxu0 %v3124
  %3451 = vmatmul.mubr.bf16.gmra.mrb[0].mxu0 %v3123
  %v3452 = vpop.f32.mrb[0].mxu0
  %v3453 = vadd.f32 %v3224, %v3452
  %v3454 = vpop.f32.mrb[0].mxu0
  %v3455 = vpop.f32.mrb[0].mxu0
  %v3456 = vadd.f32 %v3224, %v3455
  %v3457 = vpop.f32.mrb[0].mxu0
  %3458 = vmatprep.mubr.bf16.mxu0 %v3128
  %3459 = vmatmul.mubr.bf16.gmra.mrb[0].mxu0 %v3127
  %v3460 = vpop.f32.mrb[0].mxu0
  %v3461 = vadd.f32 %v3224, %v3460
  %v3462 = vpop.f32.mrb[0].mxu0
  %v3463 = vpop.f32.mrb[0].mxu0
  %v3464 = vadd.f32 %v3224, %v3463
  %v3465 = vpop.f32.mrb[0].mxu0
  %3466 = vmatprep.mubr.bf16.mxu0 %v3132
  %3467 = vmatmul.mubr.bf16.gmra.mrb[0].mxu0 %v3131
  %v3468 = vpop.f32.mrb[0].mxu0
  %v3469 = vadd.f32 %v3224, %v3468
  %v3470 = vpop.f32.mrb[0].mxu0
  %v3471 = vpop.f32.mrb[0].mxu0
  %v3472 = vadd.f32 %v3224, %v3471
  %v3473 = vpop.f32.mrb[0].mxu0
  %3474 = vmatprep.mubr.bf16.mxu0 %v3136
  %3475 = vmatmul.mubr.bf16.gmra.mrb[0].mxu0 %v3135
  %v3476 = vpop.f32.mrb[0].mxu0
  %v3477 = vadd.f32 %v3224, %v3476
  %v3478 = vpop.f32.mrb[0].mxu0
  %v3479 = vpop.f32.mrb[0].mxu0
  %v3480 = vadd.f32 %v3224, %v3479
  %v3481 = vpop.f32.mrb[0].mxu0
  %3482 = vmatprep.mubr.bf16.mxu0 %v3140
  %3483 = vmatmul.mubr.bf16.gmra.mrb[0].mxu0 %v3139
  %v3484 = vpop.f32.mrb[0].mxu0
  %v3485 = vadd.f32 %v3224, %v3484
  %v3486 = vpop.f32.mrb[0].mxu0
  %v3487 = vpop.f32.mrb[0].mxu0
  %v3488 = vadd.f32 %v3224, %v3487
  %v3489 = vpop.f32.mrb[0].mxu0
  %3490 = vmatprep.mubr.bf16.mxu0 %v3144
  %3491 = vmatmul.mubr.bf16.gmra.mrb[0].mxu0 %v3143
  %v3492 = vpop.f32.mrb[0].mxu0
  %v3493 = vadd.f32 %v3224, %v3492
  %v3494 = vpop.f32.mrb[0].mxu0
  %v3495 = vpop.f32.mrb[0].mxu0
  %v3496 = vadd.f32 %v3224, %v3495
  %v3497 = vpop.f32.mrb[0].mxu0
  %3498 = vmatprep.mubr.bf16.mxu0 %v3148
  %3499 = vmatmul.mubr.bf16.gmra.mrb[0].mxu0 %v3147
  %v3500 = vpop.f32.mrb[0].mxu0
  %v3501 = vadd.f32 %v3224, %v3500
  %v3502 = vpop.f32.mrb[0].mxu0
  %v3503 = vpop.f32.mrb[0].mxu0
  %v3504 = vadd.f32 %v3224, %v3503
  %v3505 = vpop.f32.mrb[0].mxu0
  %3506 = vmatprep.mubr.bf16.mxu0 %v3152
  %3507 = vmatmul.mubr.bf16.gmra.mrb[0].mxu0 %v3151
  %v3508 = vpop.f32.mrb[0].mxu0
  %v3509 = vadd.f32 %v3224, %v3508
  %v3510 = vpop.f32.mrb[0].mxu0
  %v3511 = vpop.f32.mrb[0].mxu0
  %v3512 = vadd.f32 %v3224, %v3511
  %v3513 = vpop.f32.mrb[0].mxu0
  %3514 = vdwg.mxu0
  %3515 = vmatprep.subr.bf16.mxu0 0
  %3516 = vmatpush1.bf16.msra.mxu0 %v3370
  %3517 = vmatprep.subr.bf16.mxu0 0
  %3518 = vmatpush1.bf16.msra.mxu0 %v3371
  %3519 = vmatprep.subr.bf16.mxu0 0
  %3520 = vmatpush1.bf16.msra.mxu0 %v3372
  %3521 = vmatprep.subr.bf16.mxu0 0
  %3522 = vmatpush1.bf16.msra.mxu0 %v3373
  %3523 = vmatprep.subr.bf16.mxu0 0
  %3524 = vmatpush1.bf16.msra.mxu0 %v3374
  %3525 = vmatprep.subr.bf16.mxu0 0
  %3526 = vmatpush1.bf16.msra.mxu0 %v3375
  %3527 = vmatprep.subr.bf16.mxu0 0
  %3528 = vmatpush1.bf16.msra.mxu0 %v3376
  %3529 = vmatprep.subr.bf16.mxu0 0
  %3530 = vmatpush1.bf16.msra.mxu0 %v3377
  %3531 = vmatprep.subr.bf16.mxu0 0
  %3532 = vmatpush1.bf16.msra.mxu0 %v3378
  %3533 = vmatprep.subr.bf16.mxu0 0
  %3534 = vmatpush1.bf16.msra.mxu0 %v3379
  %3535 = vmatprep.subr.bf16.mxu0 0
  %3536 = vmatpush1.bf16.msra.mxu0 %v3380
  %3537 = vmatprep.subr.bf16.mxu0 0
  %3538 = vmatpush1.bf16.msra.mxu0 %v3381
  %3539 = vmatprep.subr.bf16.mxu0 0
  %3540 = vmatpush1.bf16.msra.mxu0 %v3382
  %3541 = vmatprep.subr.bf16.mxu0 0
  %3542 = vmatpush1.bf16.msra.mxu0 %v3383
  %3543 = vmatprep.subr.bf16.mxu0 0
  %3544 = vmatpush1.bf16.msra.mxu0 %v3384
  %3545 = vmatprep.subr.bf16.mxu0 0
  %3546 = vmatpush1.bf16.msra.mxu0 %v3385
  %3547 = vmatprep.mubr.bf16.mxu0 %v3126
  %3548 = vmatmul.mubr.bf16.gmra.mrb[0].mxu0 %v3125
  %v3549 = vpop.f32.mrb[0].mxu0
  %v3550 = vadd.f32 %v3453, %v3549
  %v3551 = vpop.f32.mrb[0].mxu0
  %v3552 = vpop.f32.mrb[0].mxu0
  %v3553 = vadd.f32 %v3456, %v3552
  %v3554 = vpop.f32.mrb[0].mxu0
  %3555 = vmatprep.mubr.bf16.mxu0 %v3130
  %3556 = vmatmul.mubr.bf16.gmra.mrb[0].mxu0 %v3129
  %v3557 = vpop.f32.mrb[0].mxu0
  %v3558 = vadd.f32 %v3461, %v3557
  %v3559 = vpop.f32.mrb[0].mxu0
  %v3560 = vpop.f32.mrb[0].mxu0
  %v3561 = vadd.f32 %v3464, %v3560
  %v3562 = vpop.f32.mrb[0].mxu0
  %3563 = vmatprep.mubr.bf16.mxu0 %v3134
  %3564 = vmatmul.mubr.bf16.gmra.mrb[0].mxu0 %v3133
  %v3565 = vpop.f32.mrb[0].mxu0
  %v3566 = vadd.f32 %v3469, %v3565
  %v3567 = vpop.f32.mrb[0].mxu0
  %v3568 = vpop.f32.mrb[0].mxu0
  %v3569 = vadd.f32 %v3472, %v3568
  %v3570 = vpop.f32.mrb[0].mxu0
  %3571 = vmatprep.mubr.bf16.mxu0 %v3138
  %3572 = vmatmul.mubr.bf16.gmra.mrb[0].mxu0 %v3137
  %v3573 = vpop.f32.mrb[0].mxu0
  %v3574 = vadd.f32 %v3477, %v3573
  %v3575 = vpop.f32.mrb[0].mxu0
  %v3576 = vpop.f32.mrb[0].mxu0
  %v3577 = vadd.f32 %v3480, %v3576
  %v3578 = vpop.f32.mrb[0].mxu0
  %3579 = vmatprep.mubr.bf16.mxu0 %v3142
  %3580 = vmatmul.mubr.bf16.gmra.mrb[0].mxu0 %v3141
  %v3581 = vpop.f32.mrb[0].mxu0
  %v3582 = vadd.f32 %v3485, %v3581
  %v3583 = vpop.f32.mrb[0].mxu0
  %v3584 = vpop.f32.mrb[0].mxu0
  %v3585 = vadd.f32 %v3488, %v3584
  %v3586 = vpop.f32.mrb[0].mxu0
  %3587 = vmatprep.mubr.bf16.mxu0 %v3146
  %3588 = vmatmul.mubr.bf16.gmra.mrb[0].mxu0 %v3145
  %v3589 = vpop.f32.mrb[0].mxu0
  %v3590 = vadd.f32 %v3493, %v3589
  %v3591 = vpop.f32.mrb[0].mxu0
  %v3592 = vpop.f32.mrb[0].mxu0
  %v3593 = vadd.f32 %v3496, %v3592
  %v3594 = vpop.f32.mrb[0].mxu0
  %3595 = vmatprep.mubr.bf16.mxu0 %v3150
  %3596 = vmatmul.mubr.bf16.gmra.mrb[0].mxu0 %v3149
  %v3597 = vpop.f32.mrb[0].mxu0
  %v3598 = vadd.f32 %v3501, %v3597
  %v3599 = vpop.f32.mrb[0].mxu0
  %v3600 = vpop.f32.mrb[0].mxu0
  %v3601 = vadd.f32 %v3504, %v3600
  %v3602 = vpop.f32.mrb[0].mxu0
  %3603 = vmatprep.mubr.bf16.mxu0 %v3154
  %3604 = vmatmul.mubr.bf16.gmra.mrb[0].mxu0 %v3153
  %v3605 = vpop.f32.mrb[0].mxu0
  %v3606 = vadd.f32 %v3509, %v3605
  %v3607 = vpop.f32.mrb[0].mxu0
  %v3608 = vpop.f32.mrb[0].mxu0
  %v3609 = vadd.f32 %v3512, %v3608
  %v3610 = vpop.f32.mrb[0].mxu0
  %3611 = vdwg.mxu0
  %v3612 = vmax.f32 %v3550, 0.0
  %v3613 = vmax.f32 %v3553, 0.0
  %v3614 = vmax.f32 %v3558, 0.0
  %v3615 = vmax.f32 %v3561, 0.0
  %v3616 = vmax.f32 %v3566, 0.0
  %v3617 = vmax.f32 %v3569, 0.0
  %v3618 = vmax.f32 %v3574, 0.0
  %v3619 = vmax.f32 %v3577, 0.0
  %v3620 = vmax.f32 %v3582, 0.0
  %v3621 = vmax.f32 %v3585, 0.0
  %v3622 = vmax.f32 %v3590, 0.0
  %v3623 = vmax.f32 %v3593, 0.0
  %v3624 = vmax.f32 %v3598, 0.0
  %v3625 = vmax.f32 %v3601, 0.0
  %v3626 = vmax.f32 %v3606, 0.0
  %v3627 = vmax.f32 %v3609, 0.0
  %3644 = vrot.lane.b32.xlu0 %v3550, 96
  %v3645 = vpop.permute.xlu0 %3644
  %3646 = vrot.lane.b32.xlu0 %v3553, 96
  %v3647 = vpop.permute.xlu0 %3646
  %3648 = vrot.lane.b32.xlu0 %v3558, 96
  %v3649 = vpop.permute.xlu0 %3648
  %3650 = vrot.lane.b32.xlu0 %v3561, 96
  %v3651 = vpop.permute.xlu0 %3650
  %3652 = vrot.lane.b32.xlu0 %v3566, 96
  %v3653 = vpop.permute.xlu0 %3652
  %3654 = vrot.lane.b32.xlu0 %v3569, 96
  %v3655 = vpop.permute.xlu0 %3654
  %3656 = vrot.lane.b32.xlu0 %v3574, 96
  %v3657 = vpop.permute.xlu0 %3656
  %3658 = vrot.lane.b32.xlu0 %v3577, 96
  %v3659 = vpop.permute.xlu0 %3658
  %3660 = vrot.lane.b32.xlu0 %v3582, 96
  %v3661 = vpop.permute.xlu0 %3660
  %3662 = vrot.lane.b32.xlu0 %v3585, 96
  %v3663 = vpop.permute.xlu0 %3662
  %3664 = vrot.lane.b32.xlu0 %v3590, 96
  %v3665 = vpop.permute.xlu0 %3664
  %3666 = vrot.lane.b32.xlu0 %v3593, 96
  %v3667 = vpop.permute.xlu0 %3666
  %3668 = vrot.lane.b32.xlu0 %v3598, 96
  %v3669 = vpop.permute.xlu0 %3668
  %3670 = vrot.lane.b32.xlu0 %v3601, 96
  %v3671 = vpop.permute.xlu0 %3670
  %3672 = vrot.lane.b32.xlu0 %v3606, 96
  %v3673 = vpop.permute.xlu0 %3672
  %3674 = vrot.lane.b32.xlu0 %v3609, 96
  %v3675 = vpop.permute.xlu0 %3674
  %v3692 = vadd.f32 %v3612, %v3645
  %v3693 = vadd.f32 %v3613, %v3647
  %v3694 = vadd.f32 %v3614, %v3649
  %v3695 = vadd.f32 %v3615, %v3651
  %v3696 = vadd.f32 %v3616, %v3653
  %v3697 = vadd.f32 %v3617, %v3655
  %v3698 = vadd.f32 %v3618, %v3657
  %v3699 = vadd.f32 %v3619, %v3659
  %v3700 = vadd.f32 %v3620, %v3661
  %v3701 = vadd.f32 %v3621, %v3663
  %v3702 = vadd.f32 %v3622, %v3665
  %v3703 = vadd.f32 %v3623, %v3667
  %v3704 = vadd.f32 %v3624, %v3669
  %v3705 = vadd.f32 %v3625, %v3671
  %v3706 = vadd.f32 %v3626, %v3673
  %v3707 = vadd.f32 %v3627, %v3675
  %3724 = vrot.lane.b32.xlu0 %v46, 32
  %v3725 = vpop.permute.xlu0 %3724
  %3726 = vrot.lane.b32.xlu0 %v47, 32
  %v3727 = vpop.permute.xlu0 %3726
  %3728 = vrot.lane.b32.xlu0 %v48, 32
  %v3729 = vpop.permute.xlu0 %3728
  %3730 = vrot.lane.b32.xlu0 %v49, 32
  %v3731 = vpop.permute.xlu0 %3730
  %3732 = vrot.lane.b32.xlu0 %v50, 32
  %v3733 = vpop.permute.xlu0 %3732
  %3734 = vrot.lane.b32.xlu0 %v51, 32
  %v3735 = vpop.permute.xlu0 %3734
  %3736 = vrot.lane.b32.xlu0 %v52, 32
  %v3737 = vpop.permute.xlu0 %3736
  %3738 = vrot.lane.b32.xlu0 %v53, 32
  %v3739 = vpop.permute.xlu0 %3738
  %3740 = vrot.lane.b32.xlu0 %v54, 32
  %v3741 = vpop.permute.xlu0 %3740
  %3742 = vrot.lane.b32.xlu0 %v55, 32
  %v3743 = vpop.permute.xlu0 %3742
  %3744 = vrot.lane.b32.xlu0 %v56, 32
  %v3745 = vpop.permute.xlu0 %3744
  %3746 = vrot.lane.b32.xlu0 %v57, 32
  %v3747 = vpop.permute.xlu0 %3746
  %3748 = vrot.lane.b32.xlu0 %v58, 32
  %v3749 = vpop.permute.xlu0 %3748
  %3750 = vrot.lane.b32.xlu0 %v59, 32
  %v3751 = vpop.permute.xlu0 %3750
  %3752 = vrot.lane.b32.xlu0 %v60, 32
  %v3753 = vpop.permute.xlu0 %3752
  %3754 = vrot.lane.b32.xlu0 %v61, 32
  %v3755 = vpop.permute.xlu0 %3754
  %v3772 = vsel %vm1502, %v3692, %v3725
  %v3773 = vsel %vm1502, %v3693, %v3727
  %v3774 = vsel %vm1502, %v3694, %v3729
  %v3775 = vsel %vm1502, %v3695, %v3731
  %v3776 = vsel %vm1502, %v3696, %v3733
  %v3777 = vsel %vm1502, %v3697, %v3735
  %v3778 = vsel %vm1502, %v3698, %v3737
  %v3779 = vsel %vm1502, %v3699, %v3739
  %v3780 = vsel %vm1502, %v3700, %v3741
  %v3781 = vsel %vm1502, %v3701, %v3743
  %v3782 = vsel %vm1502, %v3702, %v3745
  %v3783 = vsel %vm1502, %v3703, %v3747
  %v3784 = vsel %vm1502, %v3704, %v3749
  %v3785 = vsel %vm1502, %v3705, %v3751
  %v3786 = vsel %vm1502, %v3706, %v3753
  %v3787 = vsel %vm1502, %v3707, %v3755
  %v3788 = vpack.c.bf16 %v3773, %v3772
  %v3789 = vpack.c.bf16 %v3775, %v3774
  %v3790 = vpack.c.bf16 %v3777, %v3776
  %v3791 = vpack.c.bf16 %v3779, %v3778
  %v3792 = vpack.c.bf16 %v3781, %v3780
  %v3793 = vpack.c.bf16 %v3783, %v3782
  %v3794 = vpack.c.bf16 %v3785, %v3784
  %v3795 = vpack.c.bf16 %v3787, %v3786
  %3796 = vmatprep.subr.bf16.mxu0 0
  %3797 = vmatpush1.bf16.msra.mxu0 %v3788
  %3798 = vmatprep.subr.bf16.mxu0 0
  %3799 = vmatpush1.bf16.msra.mxu0 %v3789
  %3800 = vmatprep.subr.bf16.mxu0 0
  %3801 = vmatpush1.bf16.msra.mxu0 %v3790
  %3802 = vmatprep.subr.bf16.mxu0 0
  %3803 = vmatpush1.bf16.msra.mxu0 %v3791
  %3804 = vmatprep.subr.bf16.mxu0 0
  %3805 = vmatpush1.bf16.msra.mxu0 %v3792
  %3806 = vmatprep.subr.bf16.mxu0 0
  %3807 = vmatpush1.bf16.msra.mxu0 %v3793
  %3808 = vmatprep.subr.bf16.mxu0 0
  %3809 = vmatpush1.bf16.msra.mxu0 %v3794
  %3810 = vmatprep.subr.bf16.mxu0 0
  %3811 = vmatpush1.bf16.msra.mxu0 %v3795
  %3812 = vmatprep.subr.bf16.mxu0 0
  %3813 = vmatpush1.bf16.msra.mxu0 0
  %3814 = vmatprep.subr.bf16.mxu0 0
  %3815 = vmatpush1.bf16.msra.mxu0 0
  %3816 = vmatprep.subr.bf16.mxu0 0
  %3817 = vmatpush1.bf16.msra.mxu0 0
  %3818 = vmatprep.subr.bf16.mxu0 0
  %3819 = vmatpush1.bf16.msra.mxu0 0
  %3820 = vmatprep.subr.bf16.mxu0 0
  %3821 = vmatpush1.bf16.msra.mxu0 0
  %3822 = vmatprep.subr.bf16.mxu0 0
  %3823 = vmatpush1.bf16.msra.mxu0 0
  %3824 = vmatprep.subr.bf16.mxu0 0
  %3825 = vmatpush1.bf16.msra.mxu0 0
  %3826 = vmatprep.subr.bf16.mxu0 0
  %3827 = vmatpush1.bf16.msra.mxu0 0
  %3828 = vmatprep.mubr.bf16.mxu0 0
  %3829 = vmatmul.mubr.bf16.gmra.mrb[0].mxu0 %v102
  %v3830 = vpop.f32.mrb[0].mxu0
  %v3831 = vadd.f32 0.0, %v3830
  %v3832 = vpop.f32.mrb[0].mxu0
  %v3833 = vpop.f32.mrb[0].mxu0
  %v3834 = vadd.f32 0.0, %v3833
  %v3835 = vpop.f32.mrb[0].mxu0
  %3836 = vmatprep.mubr.bf16.mxu0 0
  %3837 = vmatmul.mubr.bf16.gmra.mrb[0].mxu0 %v103
  %v3838 = vpop.f32.mrb[0].mxu0
  %v3839 = vadd.f32 0.0, %v3838
  %v3840 = vpop.f32.mrb[0].mxu0
  %v3841 = vpop.f32.mrb[0].mxu0
  %v3842 = vadd.f32 0.0, %v3841
  %v3843 = vpop.f32.mrb[0].mxu0
  %3844 = vmatprep.mubr.bf16.mxu0 0
  %3845 = vmatmul.mubr.bf16.gmra.mrb[0].mxu0 %v104
  %v3846 = vpop.f32.mrb[0].mxu0
  %v3847 = vadd.f32 0.0, %v3846
  %v3848 = vpop.f32.mrb[0].mxu0
  %v3849 = vpop.f32.mrb[0].mxu0
  %v3850 = vadd.f32 0.0, %v3849
  %v3851 = vpop.f32.mrb[0].mxu0
  %3852 = vmatprep.mubr.bf16.mxu0 0
  %3853 = vmatmul.mubr.bf16.gmra.mrb[0].mxu0 %v105
  %v3854 = vpop.f32.mrb[0].mxu0
  %v3855 = vadd.f32 0.0, %v3854
  %v3856 = vpop.f32.mrb[0].mxu0
  %v3857 = vpop.f32.mrb[0].mxu0
  %v3858 = vadd.f32 0.0, %v3857
  %v3859 = vpop.f32.mrb[0].mxu0
  %3860 = vmatprep.mubr.bf16.mxu0 0
  %3861 = vmatmul.mubr.bf16.gmra.mrb[0].mxu0 %v106
  %v3862 = vpop.f32.mrb[0].mxu0
  %v3863 = vadd.f32 0.0, %v3862
  %v3864 = vpop.f32.mrb[0].mxu0
  %v3865 = vpop.f32.mrb[0].mxu0
  %v3866 = vadd.f32 0.0, %v3865
  %v3867 = vpop.f32.mrb[0].mxu0
  %3868 = vmatprep.mubr.bf16.mxu0 0
  %3869 = vmatmul.mubr.bf16.gmra.mrb[0].mxu0 %v107
  %v3870 = vpop.f32.mrb[0].mxu0
  %v3871 = vadd.f32 0.0, %v3870
  %v3872 = vpop.f32.mrb[0].mxu0
  %v3873 = vpop.f32.mrb[0].mxu0
  %v3874 = vadd.f32 0.0, %v3873
  %v3875 = vpop.f32.mrb[0].mxu0
  %3876 = vmatprep.mubr.bf16.mxu0 0
  %3877 = vmatmul.mubr.bf16.gmra.mrb[0].mxu0 %v108
  %v3878 = vpop.f32.mrb[0].mxu0
  %v3879 = vadd.f32 0.0, %v3878
  %v3880 = vpop.f32.mrb[0].mxu0
  %v3881 = vpop.f32.mrb[0].mxu0
  %v3882 = vadd.f32 0.0, %v3881
  %v3883 = vpop.f32.mrb[0].mxu0
  %3884 = vmatprep.mubr.bf16.mxu0 0
  %3885 = vmatmul.mubr.bf16.gmra.mrb[0].mxu0 %v109
  %v3886 = vpop.f32.mrb[0].mxu0
  %v3887 = vadd.f32 0.0, %v3886
  %v3888 = vpop.f32.mrb[0].mxu0
  %v3889 = vpop.f32.mrb[0].mxu0
  %v3890 = vadd.f32 0.0, %v3889
  %v3891 = vpop.f32.mrb[0].mxu0
  %3892 = vdwg.mxu0
  %3909 = vrot.lane.b32.xlu0 %v3831, 48
  %v3910 = vpop.permute.xlu0 %3909
  %3911 = vrot.lane.b32.xlu0 %v3834, 48
  %v3912 = vpop.permute.xlu0 %3911
  %3913 = vrot.lane.b32.xlu0 %v3839, 48
  %v3914 = vpop.permute.xlu0 %3913
  %3915 = vrot.lane.b32.xlu0 %v3842, 48
  %v3916 = vpop.permute.xlu0 %3915
  %3917 = vrot.lane.b32.xlu0 %v3847, 48
  %v3918 = vpop.permute.xlu0 %3917
  %3919 = vrot.lane.b32.xlu0 %v3850, 48
  %v3920 = vpop.permute.xlu0 %3919
  %3921 = vrot.lane.b32.xlu0 %v3855, 48
  %v3922 = vpop.permute.xlu0 %3921
  %3923 = vrot.lane.b32.xlu0 %v3858, 48
  %v3924 = vpop.permute.xlu0 %3923
  %3925 = vrot.lane.b32.xlu0 %v3863, 48
  %v3926 = vpop.permute.xlu0 %3925
  %3927 = vrot.lane.b32.xlu0 %v3866, 48
  %v3928 = vpop.permute.xlu0 %3927
  %3929 = vrot.lane.b32.xlu0 %v3871, 48
  %v3930 = vpop.permute.xlu0 %3929
  %3931 = vrot.lane.b32.xlu0 %v3874, 48
  %v3932 = vpop.permute.xlu0 %3931
  %3933 = vrot.lane.b32.xlu0 %v3879, 48
  %v3934 = vpop.permute.xlu0 %3933
  %3935 = vrot.lane.b32.xlu0 %v3882, 48
  %v3936 = vpop.permute.xlu0 %3935
  %3937 = vrot.lane.b32.xlu0 %v3887, 48
  %v3938 = vpop.permute.xlu0 %3937
  %3939 = vrot.lane.b32.xlu0 %v3890, 48
  %v3940 = vpop.permute.xlu0 %3939
  %v3957 = vsel %vm1519, %v3772, %v3910
  %v3958 = vsel %vm1519, %v3773, %v3912
  %v3959 = vsel %vm1519, %v3774, %v3914
  %v3960 = vsel %vm1519, %v3775, %v3916
  %v3961 = vsel %vm1519, %v3776, %v3918
  %v3962 = vsel %vm1519, %v3777, %v3920
  %v3963 = vsel %vm1519, %v3778, %v3922
  %v3964 = vsel %vm1519, %v3779, %v3924
  %v3965 = vsel %vm1519, %v3780, %v3926
  %v3966 = vsel %vm1519, %v3781, %v3928
  %v3967 = vsel %vm1519, %v3782, %v3930
  %v3968 = vsel %vm1519, %v3783, %v3932
  %v3969 = vsel %vm1519, %v3784, %v3934
  %v3970 = vsel %vm1519, %v3785, %v3936
  %v3971 = vsel %vm1519, %v3786, %v3938
  %v3972 = vsel %vm1519, %v3787, %v3940
  %v3973 = vpack.c.bf16 %v3958, %v3957
  %v3974 = vpack.c.bf16 %v3960, %v3959
  %v3975 = vpack.c.bf16 %v3962, %v3961
  %v3976 = vpack.c.bf16 %v3964, %v3963
  %v3977 = vpack.c.bf16 %v3966, %v3965
  %v3978 = vpack.c.bf16 %v3968, %v3967
  %v3979 = vpack.c.bf16 %v3970, %v3969
  %v3980 = vpack.c.bf16 %v3972, %v3971
  %v3981 = vld [vmem:[%s6] sm:$0xf]
  %v3982 = vld [vmem:[%s6 + $0x4] sm:$0xf]
  %v3983 = vld [vmem:[%s6 + $0x8] sm:$0xf]
  %v3984 = vld [vmem:[%s6 + $0xc] sm:$0xf]
  %v3985 = vld [vmem:[%s6 + $0x10] sm:$0xf]
  %v3986 = vld [vmem:[%s6 + $0x14] sm:$0xf]
  %v3987 = vld [vmem:[%s6 + $0x18] sm:$0xf]
  %v3988 = vld [vmem:[%s6 + $0x1c] sm:$0xf]
  %v3989 = vld [vmem:[%s6 + $0x20] sm:$0xf]
  %v3990 = vld [vmem:[%s6 + $0x24] sm:$0xf]
  %v3991 = vld [vmem:[%s6 + $0x28] sm:$0xf]
  %v3992 = vld [vmem:[%s6 + $0x2c] sm:$0xf]
  %v3993 = vld [vmem:[%s7] sm:$0x1]
  %v3995 = vlaneseq
  %v3996 = vshrl.u32 %v3995, 7
  %v3997 = vsub.s32 0, %v3996
  %v3998 = vrot.slane %v3993, %v3997
  %v4012 = vunpack.c.l.b16 %v3981
  %v4013 = vunpack.c.l.b16 %v3982
  %v4014 = vunpack.c.l.b16 %v3983
  %v4015 = vunpack.c.l.b16 %v3984
  %v4016 = vunpack.c.l.b16 %v3985
  %v4017 = vunpack.c.l.b16 %v3986
  %v4018 = vunpack.c.l.b16 %v3987
  %v4019 = vunpack.c.l.b16 %v3988
  %v4020 = vunpack.c.l.b16 %v3989
  %v4021 = vunpack.c.l.b16 %v3990
  %v4022 = vunpack.c.l.b16 %v3991
  %v4023 = vunpack.c.l.b16 %v3992
  %v4024 = vpack.c.b16 %v4013, %v4012
  %v4025 = vpack.c.b16 %v4015, %v4014
  %v4026 = vpack.c.b16 %v4017, %v4016
  %v4027 = vpack.c.b16 %v4019, %v4018
  %v4028 = vpack.c.b16 %v4021, %v4020
  %v4029 = vpack.c.b16 %v4023, %v4022
  %v4037 = vsel %vm1570, %v3973, 0
  %v4040 = vsel %vm1570, %v3974, 0
  %v4043 = vsel %vm1570, %v3975, 0
  %v4046 = vsel %vm1570, %v3976, 0
  %v4049 = vsel %vm1570, %v3977, 0
  %v4052 = vsel %vm1570, %v3978, 0
  %v4055 = vsel %vm1570, %v3979, 0
  %v4058 = vsel %vm1570, %v3980, 0
  %4060 = vmatprep.subr.bf16.mxu0 0
  %4061 = vmatpush1.bf16.msra.mxu0 %v4024
  %4062 = vmatprep.subr.bf16.mxu0 0
  %4063 = vmatpush1.bf16.msra.mxu0 %v4025
  %4064 = vmatprep.subr.bf16.mxu0 0
  %4065 = vmatpush1.bf16.msra.mxu0 %v4026
  %4066 = vmatprep.subr.bf16.mxu0 0
  %4067 = vmatpush1.bf16.msra.mxu0 %v4027
  %4068 = vmatprep.subr.bf16.mxu0 0
  %4069 = vmatpush1.bf16.msra.mxu0 %v4028
  %4070 = vmatprep.subr.bf16.mxu0 0
  %4071 = vmatpush1.bf16.msra.mxu0 %v4029
  %4072 = vmatprep.subr.bf16.mxu0 0
  %4073 = vmatpush1.bf16.msra.mxu0 0
  %4074 = vmatprep.subr.bf16.mxu0 0
  %4075 = vmatpush1.bf16.msra.mxu0 0
  %4076 = vmatprep.subr.bf16.mxu0 0
  %4077 = vmatpush1.bf16.msra.mxu0 0
  %4078 = vmatprep.subr.bf16.mxu0 0
  %4079 = vmatpush1.bf16.msra.mxu0 0
  %4080 = vmatprep.subr.bf16.mxu0 0
  %4081 = vmatpush1.bf16.msra.mxu0 0
  %4082 = vmatprep.subr.bf16.mxu0 0
  %4083 = vmatpush1.bf16.msra.mxu0 0
  %4084 = vmatprep.subr.bf16.mxu0 0
  %4085 = vmatpush1.bf16.msra.mxu0 0
  %4086 = vmatprep.subr.bf16.mxu0 0
  %4087 = vmatpush1.bf16.msra.mxu0 0
  %4088 = vmatprep.subr.bf16.mxu0 0
  %4089 = vmatpush1.bf16.msra.mxu0 0
  %4090 = vmatprep.subr.bf16.mxu0 0
  %4091 = vmatpush1.bf16.msra.mxu0 0
  %4092 = vmatprep.mubr.bf16.mxu0 0
  %4093 = vmatmul.mubr.bf16.gmra.mrb[0].mxu0 %v4037
  %v4094 = vpop.f32.mrb[0].mxu0
  %v4095 = vadd.f32 %v3998, %v4094
  %v4096 = vpop.f32.mrb[0].mxu0
  %v4097 = vpop.f32.mrb[0].mxu0
  %v4098 = vadd.f32 %v3998, %v4097
  %v4099 = vpop.f32.mrb[0].mxu0
  %4100 = vmatprep.mubr.bf16.mxu0 0
  %4101 = vmatmul.mubr.bf16.gmra.mrb[0].mxu0 %v4040
  %v4102 = vpop.f32.mrb[0].mxu0
  %v4103 = vadd.f32 %v3998, %v4102
  %v4104 = vpop.f32.mrb[0].mxu0
  %v4105 = vpop.f32.mrb[0].mxu0
  %v4106 = vadd.f32 %v3998, %v4105
  %v4107 = vpop.f32.mrb[0].mxu0
  %4108 = vmatprep.mubr.bf16.mxu0 0
  %4109 = vmatmul.mubr.bf16.gmra.mrb[0].mxu0 %v4043
  %v4110 = vpop.f32.mrb[0].mxu0
  %v4111 = vadd.f32 %v3998, %v4110
  %v4112 = vpop.f32.mrb[0].mxu0
  %v4113 = vpop.f32.mrb[0].mxu0
  %v4114 = vadd.f32 %v3998, %v4113
  %v4115 = vpop.f32.mrb[0].mxu0
  %4116 = vmatprep.mubr.bf16.mxu0 0
  %4117 = vmatmul.mubr.bf16.gmra.mrb[0].mxu0 %v4046
  %v4118 = vpop.f32.mrb[0].mxu0
  %v4119 = vadd.f32 %v3998, %v4118
  %v4120 = vpop.f32.mrb[0].mxu0
  %v4121 = vpop.f32.mrb[0].mxu0
  %v4122 = vadd.f32 %v3998, %v4121
  %v4123 = vpop.f32.mrb[0].mxu0
  %4124 = vmatprep.mubr.bf16.mxu0 0
  %4125 = vmatmul.mubr.bf16.gmra.mrb[0].mxu0 %v4049
  %v4126 = vpop.f32.mrb[0].mxu0
  %v4127 = vadd.f32 %v3998, %v4126
  %v4128 = vpop.f32.mrb[0].mxu0
  %v4129 = vpop.f32.mrb[0].mxu0
  %v4130 = vadd.f32 %v3998, %v4129
  %v4131 = vpop.f32.mrb[0].mxu0
  %4132 = vmatprep.mubr.bf16.mxu0 0
  %4133 = vmatmul.mubr.bf16.gmra.mrb[0].mxu0 %v4052
  %v4134 = vpop.f32.mrb[0].mxu0
  %v4135 = vadd.f32 %v3998, %v4134
  %v4136 = vpop.f32.mrb[0].mxu0
  %v4137 = vpop.f32.mrb[0].mxu0
  %v4138 = vadd.f32 %v3998, %v4137
  %v4139 = vpop.f32.mrb[0].mxu0
  %4140 = vmatprep.mubr.bf16.mxu0 0
  %4141 = vmatmul.mubr.bf16.gmra.mrb[0].mxu0 %v4055
  %v4142 = vpop.f32.mrb[0].mxu0
  %v4143 = vadd.f32 %v3998, %v4142
  %v4144 = vpop.f32.mrb[0].mxu0
  %v4145 = vpop.f32.mrb[0].mxu0
  %v4146 = vadd.f32 %v3998, %v4145
  %v4147 = vpop.f32.mrb[0].mxu0
  %4148 = vmatprep.mubr.bf16.mxu0 0
  %4149 = vmatmul.mubr.bf16.gmra.mrb[0].mxu0 %v4058
  %v4150 = vpop.f32.mrb[0].mxu0
  %v4151 = vadd.f32 %v3998, %v4150
  %v4152 = vpop.f32.mrb[0].mxu0
  %v4153 = vpop.f32.mrb[0].mxu0
  %v4154 = vadd.f32 %v3998, %v4153
  %v4155 = vpop.f32.mrb[0].mxu0
  %4156 = vdwg.mxu0
  %vm4157 = vcmask 64512
  %4158 = vst.msk [vmem:[%s8] sm:$0xff] %vm4157, %v4095
  %4159 = vst.msk [vmem:[%s8 + $0x8] sm:$0xff] %vm4157, %v4098
  %4160 = vst.msk [vmem:[%s8 + $0x10] sm:$0xff] %vm4157, %v4103
  %4161 = vst.msk [vmem:[%s8 + $0x18] sm:$0xff] %vm4157, %v4106
  %4162 = vst.msk [vmem:[%s8 + $0x20] sm:$0xff] %vm4157, %v4111
  %4163 = vst.msk [vmem:[%s8 + $0x28] sm:$0xff] %vm4157, %v4114
  %4164 = vst.msk [vmem:[%s8 + $0x30] sm:$0xff] %vm4157, %v4119
  %4165 = vst.msk [vmem:[%s8 + $0x38] sm:$0xff] %vm4157, %v4122
  %4166 = vst.msk [vmem:[%s8 + $0x40] sm:$0xff] %vm4157, %v4127
  %4167 = vst.msk [vmem:[%s8 + $0x48] sm:$0xff] %vm4157, %v4130
  %4168 = vst.msk [vmem:[%s8 + $0x50] sm:$0xff] %vm4157, %v4135
  %4169 = vst.msk [vmem:[%s8 + $0x58] sm:$0xff] %vm4157, %v4138
  %4170 = vst.msk [vmem:[%s8 + $0x60] sm:$0xff] %vm4157, %v4143
  %4171 = vst.msk [vmem:[%s8 + $0x68] sm:$0xff] %vm4157, %v4146
  %4172 = vst.msk [vmem:[%s8 + $0x70] sm:$0xff] %vm4157, %v4151
  %4173 = vst.msk [vmem:[%s8 + $0x78] sm:$0xff] %vm4157, %v4154
  // Predicated region
  $region34: #{tpu_custom_call.1} parent=0 // pred_check
    _
  $region35: #{tpu_custom_call.1} parent=0 // pred_check_branch
    %4175 = sbr.rel (0) target = $region37
  $region36: #{tpu_custom_call.1} parent=0 // pred_region
    _
  $region37: #{tpu_custom_call.1} parent=0 // pred_fallthru
    _
  // Predicated region
  $region38: #{tpu_custom_call.1} parent=0 // pred_check
    _
  $region39: #{tpu_custom_call.1} parent=0 // pred_check_branch
    %4177 = sbr.rel (0) target = $region41
  $region40: #{tpu_custom_call.1} parent=0 // pred_region
    _
  $region41: #{tpu_custom_call.1} parent=0 // pred_fallthru
    _

</llo_original>
